<compile_context>
chip_gen: v6e
topology: v6e:2x2x1
jax: 0.10.0
libtpu: 0.0.40
codegen_flags: <defaults>
</compile_context>

<pallas_src>
import math
import functools

import jax
import jax.numpy as jnp
from jax import lax
from jax.experimental import pallas as pl
from jax.experimental.pallas import tpu as pltpu

D_HEAD = 64            # fixed in the PyTorch module (d_q = d_k = d_v = 64)
LN_EPS = 1e-5          # nn.LayerNorm default eps
MASK_FILL = -10000000.0


def _round_up(a, b):
    return (a + b - 1) // b * b


def _mha_kernel(x_ref, wqkv_ref, wo_ref, gamma_ref, beta_ref, o_ref,
                k_scr, v_scr, m_scr, l_scr, acc_scr, *,
                num_heads, d_model, block_q):
    """One (batch, q-block) step.

    Projects QKV for this block only, stores the block's K/V into persistent VMEM
    scratch (indexed by block id), then runs an online-softmax loop over the causally
    required K/V blocks, followed by the output projection, residual add and LayerNorm.
    """
    H = num_heads
    HN = H * D_HEAD
    qi = pl.program_id(1)
    q_start = qi * block_q
    scale = 1.0 / math.sqrt(D_HEAD)

    x = x_ref[0]                                                      # (block_q, Dp) f32

    # Fused QKV projection for this row block (bf16 MXU, f32 accumulate).
    qkv = jnp.dot(x.astype(jnp.bfloat16), wqkv_ref[...],
                  preferred_element_type=jnp.float32)                 # (block_q, 3*HN)

    # Append this block's K/V to the head-leading scratch (persists across q-blocks;
    # overwritten block-by-block when the next batch element starts, so no stale reads).
    k_new = qkv[:, HN:2 * HN].astype(jnp.bfloat16).reshape(block_q, H, D_HEAD)
    v_new = qkv[:, 2 * HN:].astype(jnp.bfloat16).reshape(block_q, H, D_HEAD)
    k_scr[qi] = jnp.transpose(k_new, (1, 0, 2))                       # (H, block_q, 64)
    v_scr[qi] = jnp.transpose(v_new, (1, 0, 2))

    # Q for this block, scale folded in, head-leading for batched MXU matmuls.
    qh = jnp.transpose((qkv[:, :HN] * scale).astype(jnp.bfloat16)
                       .reshape(block_q, H, D_HEAD), (1, 0, 2))       # (H, block_q, 64)

    # Online-softmax accumulators (re-initialized every grid step).
    m_scr[...] = jnp.full(m_scr.shape, -1e30, jnp.float32)
    l_scr[...] = jnp.zeros(l_scr.shape, jnp.float32)
    acc_scr[...] = jnp.zeros(acc_scr.shape, jnp.float32)

    # Causal block skipping: only K/V blocks 0..qi can contain unmasked positions.
    @pl.loop(0, qi + 1)
    def _kv_step(kvi):
        kv_start = kvi * block_q
        kblk = k_scr[kvi]                                             # (H, block_q, 64) bf16
        vblk = v_scr[kvi]

        # scores[h, q, k] = qh[h, q, :] . kblk[h, k, :]   (no explicit K transpose)
        s = lax.dot_general(qh, kblk, (((2,), (2,)), ((0,), (0,))),
                            preferred_element_type=jnp.float32)       # (H, bq, bq)

        row = lax.broadcasted_iota(jnp.int32, (block_q, block_q), 0) + q_start
        col = lax.broadcasted_iota(jnp.int32, (block_q, block_q), 1) + kv_start
        s = jnp.where((col > row)[None, :, :], MASK_FILL, s)

        m_prev = m_scr[...]
        m_new = jnp.maximum(m_prev, jnp.max(s, axis=-1, keepdims=True))
        alpha = jnp.exp(m_prev - m_new)
        p = jnp.exp(s - m_new)                                        # f32 (safe on v5e too)
        l_scr[...] = alpha * l_scr[...] + jnp.sum(p, axis=-1, keepdims=True)
        pv = lax.dot_general(p.astype(jnp.bfloat16), vblk,
                             (((2,), (1,)), ((0,), (0,))),
                             preferred_element_type=jnp.float32)      # (H, bq, 64)
        acc_scr[...] = alpha * acc_scr[...] + pv
        m_scr[...] = m_new

    # Finalize softmax (EUP approx reciprocal) and merge heads once per q-block.
    ctx = acc_scr[...] * pl.reciprocal(l_scr[...], approx=True)       # (H, bq, 64) f32
    attn = jnp.transpose(ctx, (1, 0, 2)).reshape(block_q, HN).astype(jnp.bfloat16)

    out = jnp.dot(attn, wo_ref[...], preferred_element_type=jnp.float32)  # (bq, Dp)

    # Residual (f32, exact) + LayerNorm over the *real* d_model features.
    # Padded feature columns of `out` and `x` are exactly zero, so plain sums / d_model
    # give the correct mean; the variance uses an explicit validity mask.
    y = out + x.astype(jnp.float32)
    Dp = y.shape[-1]
    inv_d = 1.0 / d_model
    mean = jnp.sum(y, axis=-1, keepdims=True) * inv_d
    valid = lax.broadcasted_iota(jnp.int32, (1, Dp), 1) < d_model
    diff = jnp.where(valid, y - mean, 0.0)
    var = jnp.sum(diff * diff, axis=-1, keepdims=True) * inv_d
    normed = diff * lax.rsqrt(var + LN_EPS)
    o_ref[0] = (normed * gamma_ref[...] + beta_ref[...]).astype(o_ref.dtype)


def multi_head_attn(x, wq, wk, wv, wo, gamma, beta, *, num_heads, block_q_max=None):
    B, S, D = x.shape
    HN = num_heads * D_HEAD
    assert wq.shape == (D, HN) and wk.shape == (D, HN) and wv.shape == (D, HN)
    assert wo.shape == (HN, D)

    # --- generation-aware sizing (v7x: 64 MiB VMEM -> smaller q tiles; v5e/v6e: 128 MiB) ---
    try:
        vmem_cap = int(pltpu.get_tpu_info().vmem_capacity_bytes)
    except Exception:
        vmem_cap = 64 << 20
    if block_q_max is None:
        block_q_max = 128 if vmem_cap <= (80 << 20) else 256
    block_q_max = max(8, _round_up(int(block_q_max), 8))

    Dp = _round_up(max(D, 128), 128)               # lane-dense model dim (unmasked vst)
    S8 = _round_up(S, 8)
    if S8 <= block_q_max:
        block_q, S_pad = S8, S8
    else:
        block_q = block_q_max
        S_pad = _round_up(S8, block_q)
    n_qb = S_pad // block_q

    # --- host-side layout prep: lane-dense padding, fused QKV, bf16 weights ---
    x_p = jnp.pad(x, ((0, 0), (0, S_pad - S), (0, Dp - D)))
    wqkv = jnp.pad(jnp.concatenate([wq, wk, wv], axis=1),
                   ((0, Dp - D), (0, 0))).astype(jnp.bfloat16)        # (Dp, 3*HN)
    wo_p = jnp.pad(wo, ((0, 0), (0, Dp - D))).astype(jnp.bfloat16)    # (HN, Dp)
    gamma_p = jnp.pad(gamma.reshape(1, D), ((0, 0), (0, Dp - D))).astype(jnp.float32)
    beta_p = jnp.pad(beta.reshape(1, D), ((0, 0), (0, Dp - D))).astype(jnp.float32)

    # --- scoped-VMEM estimate (already counts double buffers; no blanket 2x) ---
    f32, bf16, lane = 4, 2, 128
    est = (
        4 * block_q * Dp * f32                                   # x-in + out blocks (double-buffered)
        + 2 * (bf16 * (Dp * 3 * HN + HN * Dp) + 2 * f32 * Dp)    # weights + gamma/beta (worst case 2 bufs)
        + 2 * bf16 * num_heads * S_pad * lane                    # K/V scratch (64 -> 128 lane pad)
        + f32 * num_heads * block_q * 3 * lane                   # m/l/acc scratch (lane-padded)
        + (f32 + bf16) * block_q * 3 * HN                        # qkv f32 + bf16 head-split copies
        + 3 * f32 * num_heads * block_q * block_q                # per-block scores / probs / mask
        + f32 * num_heads * block_q * lane                       # per-block pv
        + f32 * block_q * (HN + 4 * Dp)                          # head merge, out-proj, residual, LN temps
    )
    vmem_limit = int(min(int(0.75 * vmem_cap), max(est, 16 << 20)))

    kernel = functools.partial(_mha_kernel, num_heads=num_heads, d_model=D,
                               block_q=block_q)

    scratch_shapes = [
        pltpu.VMEM((n_qb, num_heads, block_q, D_HEAD), jnp.bfloat16),  # K (persists over qi)
        pltpu.VMEM((n_qb, num_heads, block_q, D_HEAD), jnp.bfloat16),  # V (persists over qi)
        pltpu.VMEM((num_heads, block_q, 1), jnp.float32),              # running max
        pltpu.VMEM((num_heads, block_q, 1), jnp.float32),              # running denom
        pltpu.VMEM((num_heads, block_q, D_HEAD), jnp.float32),         # running ctx
    ]

    def _call(single_buffer_weights):
        if single_buffer_weights and hasattr(pl, "Buffered"):
            def const_spec(shape):
                # Constant-index weights: fetched once, single VMEM buffer.
                return pl.BlockSpec(shape, lambda b, qi: (0, 0),
                                    pipeline_mode=pl.Buffered(1))
        else:
            def const_spec(shape):
                return pl.BlockSpec(shape, lambda b, qi: (0, 0))

        return pl.pallas_call(
            kernel,
            out_shape=jax.ShapeDtypeStruct((B, S_pad, Dp), x.dtype),
            grid=(B, n_qb),
            in_specs=[
                pl.BlockSpec((1, block_q, Dp), lambda b, qi: (b, qi, 0)),  # x q-block
                const_spec((Dp, 3 * HN)),                                   # fused Wqkv (bf16)
                const_spec((HN, Dp)),                                       # Wo (bf16)
                const_spec((1, Dp)),                                        # LayerNorm gamma
                const_spec((1, Dp)),                                        # LayerNorm beta
            ],
            out_specs=pl.BlockSpec((1, block_q, Dp), lambda b, qi: (b, qi, 0)),
            scratch_shapes=scratch_shapes,
            compiler_params=pltpu.CompilerParams(
                # batch axis -> megacore; q-block axis carries the K/V scratch -> arbitrary
                dimension_semantics=("parallel", "arbitrary"),
                vmem_limit_bytes=vmem_limit),
        )(x_p, wqkv, wo_p, gamma_p, beta_p)

    try:
        out_p = _call(True)
    except Exception:
        # Fallback if this JAX build rejects pipeline_mode=pl.Buffered(1).
        out_p = _call(False)

    return out_p[:, :S, :D]


def _reference(x, wq, wk, wv, wo, gamma, beta, num_heads):
    """Pure-JAX f32 reference mirroring the PyTorch forward."""
    B, S, D = x.shape
    Q = (x @ wq).reshape(B, S, num_heads, D_HEAD).transpose(0, 2, 1, 3)
    K = (x @ wk).reshape(B, S, num_heads, D_HEAD).transpose(0, 2, 1, 3)
    V = (x @ wv).reshape(B, S, num_heads, D_HEAD).transpose(0, 2, 1, 3)
    scores = jnp.einsum("bhqd,bhkd->bhqk", Q, K) / math.sqrt(D_HEAD)
    mask = jnp.triu(jnp.ones((S, S), dtype=bool), k=1)
    scores = jnp.where(mask[None, None], MASK_FILL, scores)
    attn = jax.nn.softmax(scores, axis=-1)
    out = jnp.einsum("bhqk,bhkd->bhqd", attn, V).transpose(0, 2, 1, 3).reshape(B, S, -1)
    out = out @ wo
    y = out + x
    mean = jnp.mean(y, axis=-1, keepdims=True)
    var = jnp.mean((y - mean) ** 2, axis=-1, keepdims=True)
    return (y - mean) / jnp.sqrt(var + LN_EPS) * gamma + beta


if __name__ == "__main__":
    # Small shapes consistent with the module: batch=2, seq=8, d_model=32, heads=2.
    B, S, D, H = 2, 8, 32, 2
    key = jax.random.PRNGKey(0)
    kx, kq, kk, kv, ko, kx2 = jax.random.split(key, 6)

    x = jax.random.normal(kx, (B, S, D), dtype=jnp.float32)
    # Deterministic synthetic weights (nn.Linear, bias=False), stored as (in, out).
    wq = jax.random.normal(kq, (D, H * D_HEAD), dtype=jnp.float32) * (1.0 / math.sqrt(D))
    wk = jax.random.normal(kk, (D, H * D_HEAD), dtype=jnp.float32) * (1.0 / math.sqrt(D))
    wv = jax.random.normal(kv, (D, H * D_HEAD), dtype=jnp.float32) * (1.0 / math.sqrt(D))
    wo = jax.random.normal(ko, (H * D_HEAD, D), dtype=jnp.float32) * (1.0 / math.sqrt(H * D_HEAD))
    gamma = jnp.ones((D,), dtype=jnp.float32)     # LayerNorm default init
    beta = jnp.zeros((D,), dtype=jnp.float32)

    # Single q-block path (S fits one block).
    out = multi_head_attn(x, wq, wk, wv, wo, gamma, beta, num_heads=H)
    out = jax.block_until_ready(out)
    ref = _reference(x, wq, wk, wv, wo, gamma, beta, num_heads=H)
    assert out.shape == (B, S, D)
    # bf16 matmul inputs + approx reciprocal -> looser tolerance vs the f32 reference.
    assert jnp.allclose(out, ref, atol=5e-2, rtol=5e-2), "mismatch vs reference (single block)"

    # Multi-q-block path (4 q-blocks): exercises the cross-step K/V scratch carry,
    # online softmax, and causal block skipping.
    S2 = 32
    x2 = jax.random.normal(kx2, (B, S2, D), dtype=jnp.float32)
    out2 = multi_head_attn(x2, wq, wk, wv, wo, gamma, beta, num_heads=H, block_q_max=8)
    out2 = jax.block_until_ready(out2)
    ref2 = _reference(x2, wq, wk, wv, wo, gamma, beta, num_heads=H)
    assert out2.shape == (B, S2, D)
    assert jnp.allclose(out2, ref2, atol=5e-2, rtol=5e-2), "mismatch vs reference (tiled)"

    print("KERNEL_OK")
</pallas_src>

<mosaic_0001>
module attributes {stable_mosaic.version = 11 : i64} {
  func.func @_mha_kernel(%arg0: i32, %arg1: i32, %arg2: memref<1x8x128xf32, #tpu.memory_space<vmem>>, %arg3: memref<128x384xbf16, #tpu.memory_space<vmem>>, %arg4: memref<128x128xbf16, #tpu.memory_space<vmem>>, %arg5: memref<1x128xf32, #tpu.memory_space<vmem>>, %arg6: memref<1x128xf32, #tpu.memory_space<vmem>>, %arg7: memref<1x8x128xf32, #tpu.memory_space<vmem>>, %arg8: memref<1x2x8x64xbf16, #tpu.memory_space<vmem>>, %arg9: memref<1x2x8x64xbf16, #tpu.memory_space<vmem>>, %arg10: memref<2x8x1xf32, #tpu.memory_space<vmem>>, %arg11: memref<2x8x1xf32, #tpu.memory_space<vmem>>, %arg12: memref<2x8x64xf32, #tpu.memory_space<vmem>>) attributes {dimension_semantics = [#tpu.dimension_semantics<parallel>, #tpu.dimension_semantics<arbitrary>], iteration_bounds = array<i64: 2, 1>, scalar_prefetch = 0 : i64, scratch_operands = 5 : i64, tpu.core_type = #tpu.core_type<tc>, window_params = [{transform_indices = @transform_0, window_bounds = array<i64: 1, 8, 128>}, {pipeline_mode = #tpu.pipeline_mode<synchronous>, transform_indices = @transform_1, window_bounds = array<i64: 128, 384>}, {pipeline_mode = #tpu.pipeline_mode<synchronous>, transform_indices = @transform_2, window_bounds = array<i64: 128, 128>}, {pipeline_mode = #tpu.pipeline_mode<synchronous>, transform_indices = @transform_3, window_bounds = array<i64: 1, 128>}, {pipeline_mode = #tpu.pipeline_mode<synchronous>, transform_indices = @transform_4, window_bounds = array<i64: 1, 128>}, {transform_indices = @transform_5, window_bounds = array<i64: 1, 8, 128>}]} {
    %c8_i32 = arith.constant 8 : i32
    %0 = arith.muli %arg1, %c8_i32 : i32
    %c0 = arith.constant 0 : index
    %c0_0 = arith.constant 0 : index
    %c0_1 = arith.constant 0 : index
    %1 = vector.load %arg2[%c0, %c0_0, %c0_1] : memref<1x8x128xf32, #tpu.memory_space<vmem>>, vector<1x8x128xf32>
    %2 = vector.shape_cast %1 : vector<1x8x128xf32> to vector<8x128xf32>
    %3 = arith.truncf %2 : vector<8x128xf32> to vector<8x128xbf16>
    %c0_2 = arith.constant 0 : index
    %c0_3 = arith.constant 0 : index
    %4 = vector.load %arg3[%c0_2, %c0_3] : memref<128x384xbf16, #tpu.memory_space<vmem>>, vector<128x384xbf16>
    %cst = arith.constant dense<0.000000e+00> : vector<8x384xf32>
    %5 = tpu.matmul %3, %4, %cst {dimension_numbers = #tpu.dot_dimension_numbers<[1], [0], [0], [1], [0, 0, 1, 1], [], []>} : vector<8x128xbf16>, vector<128x384xbf16>, vector<8x384xf32> -> vector<8x384xf32>
    %6 = vector.extract_strided_slice %5 {offsets = [0, 128], sizes = [8, 128], strides = [1, 1]} : vector<8x384xf32> to vector<8x128xf32>
    %7 = arith.truncf %6 : vector<8x128xf32> to vector<8x128xbf16>
    %8 = vector.shape_cast %7 : vector<8x128xbf16> to vector<8x2x64xbf16>
    %9 = vector.extract_strided_slice %5 {offsets = [0, 256], sizes = [8, 128], strides = [1, 1]} : vector<8x384xf32> to vector<8x128xf32>
    %10 = arith.truncf %9 : vector<8x128xf32> to vector<8x128xbf16>
    %11 = vector.shape_cast %10 : vector<8x128xbf16> to vector<8x2x64xbf16>
    %12 = tpu.transpose %8, [1, 0, 2] : vector<8x2x64xbf16> -> vector<2x8x64xbf16>
    %13 = arith.index_cast %arg1 : i32 to index
    %c0_4 = arith.constant 0 : index
    %c0_5 = arith.constant 0 : index
    %c0_6 = arith.constant 0 : index
    %14 = vector.load %arg8[%13, %c0_4, %c0_5, %c0_6] : memref<1x2x8x64xbf16, #tpu.memory_space<vmem>>, vector<1x2x8x64xbf16>
    %15 = vector.shape_cast %14 : vector<1x2x8x64xbf16> to vector<2x8x64xbf16>
    %16 = vector.shape_cast %12 : vector<2x8x64xbf16> to vector<1x2x8x64xbf16>
    tpu.vector_store %arg8[%13, %c0_4, %c0_5, %c0_6], %16 {strides = array<i32>} : memref<1x2x8x64xbf16, #tpu.memory_space<vmem>>, vector<1x2x8x64xbf16>,
    %17 = tpu.transpose %11, [1, 0, 2] : vector<8x2x64xbf16> -> vector<2x8x64xbf16>
    %18 = arith.index_cast %arg1 : i32 to index
    %c0_7 = arith.constant 0 : index
    %c0_8 = arith.constant 0 : index
    %c0_9 = arith.constant 0 : index
    %19 = vector.load %arg9[%18, %c0_7, %c0_8, %c0_9] : memref<1x2x8x64xbf16, #tpu.memory_space<vmem>>, vector<1x2x8x64xbf16>
    %20 = vector.shape_cast %19 : vector<1x2x8x64xbf16> to vector<2x8x64xbf16>
    %21 = vector.shape_cast %17 : vector<2x8x64xbf16> to vector<1x2x8x64xbf16>
    tpu.vector_store %arg9[%18, %c0_7, %c0_8, %c0_9], %21 {strides = array<i32>} : memref<1x2x8x64xbf16, #tpu.memory_space<vmem>>, vector<1x2x8x64xbf16>,
    %22 = vector.extract_strided_slice %5 {offsets = [0, 0], sizes = [8, 128], strides = [1, 1]} : vector<8x384xf32> to vector<8x128xf32>
    %cst_10 = arith.constant 1.250000e-01 : f32
    %23 = vector.broadcast %cst_10 : f32 to vector<8x128xf32>
    %24 = arith.mulf %22, %23 : vector<8x128xf32>
    %25 = arith.truncf %24 : vector<8x128xf32> to vector<8x128xbf16>
    %26 = vector.shape_cast %25 : vector<8x128xbf16> to vector<8x2x64xbf16>
    %27 = tpu.transpose %26, [1, 0, 2] : vector<8x2x64xbf16> -> vector<2x8x64xbf16>
    %cst_11 = arith.constant -1.000000e+30 : f32
    %28 = vector.broadcast %cst_11 : f32 to vector<2x8x1xf32>
    %c0_12 = arith.constant 0 : index
    %c0_13 = arith.constant 0 : index
    %c0_14 = arith.constant 0 : index
    %29 = vector.load %arg10[%c0_12, %c0_13, %c0_14] : memref<2x8x1xf32, #tpu.memory_space<vmem>>, vector<2x8x1xf32>
    tpu.vector_store %arg10[%c0_12, %c0_13, %c0_14], %28 {strides = array<i32>} : memref<2x8x1xf32, #tpu.memory_space<vmem>>, vector<2x8x1xf32>,
    %cst_15 = arith.constant 0.000000e+00 : f32
    %30 = vector.broadcast %cst_15 : f32 to vector<2x8x1xf32>
    %c0_16 = arith.constant 0 : index
    %c0_17 = arith.constant 0 : index
    %c0_18 = arith.constant 0 : index
    %31 = vector.load %arg11[%c0_16, %c0_17, %c0_18] : memref<2x8x1xf32, #tpu.memory_space<vmem>>, vector<2x8x1xf32>
    tpu.vector_store %arg11[%c0_16, %c0_17, %c0_18], %30 {strides = array<i32>} : memref<2x8x1xf32, #tpu.memory_space<vmem>>, vector<2x8x1xf32>,
    %cst_19 = arith.constant 0.000000e+00 : f32
    %32 = vector.broadcast %cst_19 : f32 to vector<2x8x64xf32>
    %c0_20 = arith.constant 0 : index
    %c0_21 = arith.constant 0 : index
    %c0_22 = arith.constant 0 : index
    %33 = vector.load %arg12[%c0_20, %c0_21, %c0_22] : memref<2x8x64xf32, #tpu.memory_space<vmem>>, vector<2x8x64xf32>
    tpu.vector_store %arg12[%c0_20, %c0_21, %c0_22], %32 {strides = array<i32>} : memref<2x8x64xf32, #tpu.memory_space<vmem>>, vector<2x8x64xf32>,
    %c1_i32 = arith.constant 1 : i32
    %34 = arith.addi %arg1, %c1_i32 : i32
    %c0_i32 = arith.constant 0 : i32
    %35 = arith.subi %34, %c0_i32 : i32
    %c1_i32_23 = arith.constant 1 : i32
    %c1_i32_24 = arith.constant 1 : i32
    %36 = arith.subi %c1_i32_23, %c1_i32_24 : i32
    %37 = arith.addi %35, %36 : i32
    %c1_i32_25 = arith.constant 1 : i32
    %38 = arith.divsi %37, %c1_i32_25 : i32
    %c1_i32_26 = arith.constant 1 : i32
    %c0_i32_27 = arith.constant 0 : i32
    %c0_i32_28 = arith.constant 0 : i32
    %39 = arith.subi %38, %c0_i32_28 : i32
    %40 = arith.addi %c0_i32_28, %39 : i32
    %c1_i32_29 = arith.constant 1 : i32
    scf.for %arg13 = %c0_i32_28 to %40 step %c1_i32_29  : i32 {
      %84 = arith.muli %arg13, %c1_i32_26 : i32
      %85 = arith.addi %c0_i32_27, %84 : i32
      %c8_i32_52 = arith.constant 8 : i32
      %86 = arith.muli %85, %c8_i32_52 : i32
      %87 = arith.index_cast %85 : i32 to index
      %c0_53 = arith.constant 0 : index
      %c0_54 = arith.constant 0 : index
      %c0_55 = arith.constant 0 : index
      %88 = vector.load %arg8[%87, %c0_53, %c0_54, %c0_55] : memref<1x2x8x64xbf16, #tpu.memory_space<vmem>>, vector<1x2x8x64xbf16>
      %89 = vector.shape_cast %88 : vector<1x2x8x64xbf16> to vector<2x8x64xbf16>
      %90 = arith.index_cast %85 : i32 to index
      %c0_56 = arith.constant 0 : index
      %c0_57 = arith.constant 0 : index
      %c0_58 = arith.constant 0 : index
      %91 = vector.load %arg9[%90, %c0_56, %c0_57, %c0_58] : memref<1x2x8x64xbf16, #tpu.memory_space<vmem>>, vector<1x2x8x64xbf16>
      %92 = vector.shape_cast %91 : vector<1x2x8x64xbf16> to vector<2x8x64xbf16>
      %cst_59 = arith.constant dense<0.000000e+00> : vector<2x8x8xf32>
      %93 = tpu.matmul %27, %89, %cst_59 {dimension_numbers = #tpu.dot_dimension_numbers<[2], [2], [1], [1], [0, 0, 0, 1, 1, 1], [0], [0]>} : vector<2x8x64xbf16>, vector<2x8x64xbf16>, vector<2x8x8xf32> -> vector<2x8x8xf32>
      %94 = tpu.iota {dimensions = array<i32: 0>} : vector<8x8xi32>
      %95 = vector.broadcast %0 : i32 to vector<8x8xi32>
      %96 = arith.addi %94, %95 : vector<8x8xi32>
      %97 = tpu.iota {dimensions = array<i32: 1>} : vector<8x8xi32>
      %98 = vector.broadcast %86 : i32 to vector<8x8xi32>
      %99 = arith.addi %97, %98 : vector<8x8xi32>
      %100 = arith.cmpi sgt, %99, %96 : vector<8x8xi32>
      %101 = vector.shape_cast %100 : vector<8x8xi1> to vector<1x8x8xi1>
      %cst_60 = arith.constant -1.000000e+07 : f32
      %102 = vector.shape_cast %101 : vector<1x8x8xi1> to vector<1x8x8xi1>
      %103 = vector.broadcast %102 : vector<1x8x8xi1> to vector<2x8x8xi1>
      %104 = vector.broadcast %cst_60 : f32 to vector<2x8x8xf32>
      %105 = arith.select %103, %104, %93 : vector<2x8x8xi1>, vector<2x8x8xf32>
      %c0_61 = arith.constant 0 : index
      %c0_62 = arith.constant 0 : index
      %c0_63 = arith.constant 0 : index
      %106 = vector.load %arg10[%c0_61, %c0_62, %c0_63] : memref<2x8x1xf32, #tpu.memory_space<vmem>>, vector<2x8x1xf32>
      %cst_64 = arith.constant dense<0xFF800000> : vector<2x8xf32>
      %107 = vector.multi_reduction <maximumf>, %105, %cst_64 [2] : vector<2x8x8xf32> to vector<2x8xf32>
      %108 = vector.shape_cast %107 : vector<2x8xf32> to vector<2x8x1xf32>
      %109 = arith.maximumf %106, %108 : vector<2x8x1xf32>
      %110 = arith.subf %106, %109 : vector<2x8x1xf32>
      %111 = math.exp %110 : vector<2x8x1xf32>
      %112 = vector.broadcast %109 : vector<2x8x1xf32> to vector<2x8x8xf32>
      %113 = arith.subf %105, %112 : vector<2x8x8xf32>
      %114 = math.exp %113 : vector<2x8x8xf32>
      %c0_65 = arith.constant 0 : index
      %c0_66 = arith.constant 0 : index
      %c0_67 = arith.constant 0 : index
      %115 = vector.load %arg11[%c0_65, %c0_66, %c0_67] : memref<2x8x1xf32, #tpu.memory_space<vmem>>, vector<2x8x1xf32>
      %116 = arith.mulf %111, %115 : vector<2x8x1xf32>
      %cst_68 = arith.constant dense<0.000000e+00> : vector<2x8xf32>
      %117 = vector.multi_reduction <add>, %114, %cst_68 [2] : vector<2x8x8xf32> to vector<2x8xf32>
      %118 = vector.shape_cast %117 : vector<2x8xf32> to vector<2x8x1xf32>
      %119 = arith.addf %116, %118 : vector<2x8x1xf32>
      %c0_69 = arith.constant 0 : index
      %c0_70 = arith.constant 0 : index
      %c0_71 = arith.constant 0 : index
      %120 = vector.load %arg11[%c0_69, %c0_70, %c0_71] : memref<2x8x1xf32, #tpu.memory_space<vmem>>, vector<2x8x1xf32>
      tpu.vector_store %arg11[%c0_69, %c0_70, %c0_71], %119 {strides = array<i32>} : memref<2x8x1xf32, #tpu.memory_space<vmem>>, vector<2x8x1xf32>,
      %121 = arith.truncf %114 : vector<2x8x8xf32> to vector<2x8x8xbf16>
      %cst_72 = arith.constant dense<0.000000e+00> : vector<2x8x64xf32>
      %122 = tpu.matmul %121, %92, %cst_72 {dimension_numbers = #tpu.dot_dimension_numbers<[2], [1], [1], [2], [0, 0, 0, 1, 1, 2], [0], [0]>} : vector<2x8x8xbf16>, vector<2x8x64xbf16>, vector<2x8x64xf32> -> vector<2x8x64xf32>
      %c0_73 = arith.constant 0 : index
      %c0_74 = arith.constant 0 : index
      %c0_75 = arith.constant 0 : index
      %123 = vector.load %arg12[%c0_73, %c0_74, %c0_75] : memref<2x8x64xf32, #tpu.memory_space<vmem>>, vector<2x8x64xf32>
      %124 = vector.broadcast %111 : vector<2x8x1xf32> to vector<2x8x64xf32>
      %125 = arith.mulf %124, %123 : vector<2x8x64xf32>
      %126 = arith.addf %125, %122 : vector<2x8x64xf32>
      %c0_76 = arith.constant 0 : index
      %c0_77 = arith.constant 0 : index
      %c0_78 = arith.constant 0 : index
      %127 = vector.load %arg12[%c0_76, %c0_77, %c0_78] : memref<2x8x64xf32, #tpu.memory_space<vmem>>, vector<2x8x64xf32>
      tpu.vector_store %arg12[%c0_76, %c0_77, %c0_78], %126 {strides = array<i32>} : memref<2x8x64xf32, #tpu.memory_space<vmem>>, vector<2x8x64xf32>,
      %c0_79 = arith.constant 0 : index
      %c0_80 = arith.constant 0 : index
      %c0_81 = arith.constant 0 : index
      %128 = vector.load %arg10[%c0_79, %c0_80, %c0_81] : memref<2x8x1xf32, #tpu.memory_space<vmem>>, vector<2x8x1xf32>
      tpu.vector_store %arg10[%c0_79, %c0_80, %c0_81], %109 {strides = array<i32>} : memref<2x8x1xf32, #tpu.memory_space<vmem>>, vector<2x8x1xf32>,
    }
    %c0_30 = arith.constant 0 : index
    %c0_31 = arith.constant 0 : index
    %c0_32 = arith.constant 0 : index
    %41 = vector.load %arg12[%c0_30, %c0_31, %c0_32] : memref<2x8x64xf32, #tpu.memory_space<vmem>>, vector<2x8x64xf32>
    %c0_33 = arith.constant 0 : index
    %c0_34 = arith.constant 0 : index
    %c0_35 = arith.constant 0 : index
    %42 = vector.load %arg11[%c0_33, %c0_34, %c0_35] : memref<2x8x1xf32, #tpu.memory_space<vmem>>, vector<2x8x1xf32>
    %43 = tpu.reciprocal %42 {approx = true} : vector<2x8x1xf32> -> vector<2x8x1xf32>
    %44 = vector.broadcast %43 : vector<2x8x1xf32> to vector<2x8x64xf32>
    %45 = arith.mulf %41, %44 : vector<2x8x64xf32>
    %46 = tpu.transpose %45, [1, 0, 2] : vector<2x8x64xf32> -> vector<8x2x64xf32>
    %47 = vector.shape_cast %46 : vector<8x2x64xf32> to vector<8x128xf32>
    %48 = arith.truncf %47 : vector<8x128xf32> to vector<8x128xbf16>
    %c0_36 = arith.constant 0 : index
    %c0_37 = arith.constant 0 : index
    %49 = vector.load %arg4[%c0_36, %c0_37] : memref<128x128xbf16, #tpu.memory_space<vmem>>, vector<128x128xbf16>
    %cst_38 = arith.constant dense<0.000000e+00> : vector<8x128xf32>
    %50 = tpu.matmul %48, %49, %cst_38 {dimension_numbers = #tpu.dot_dimension_numbers<[1], [0], [0], [1], [0, 0, 1, 1], [], []>} : vector<8x128xbf16>, vector<128x128xbf16>, vector<8x128xf32> -> vector<8x128xf32>
    %51 = arith.addf %50, %2 : vector<8x128xf32>
    %cst_39 = arith.constant dense<0.000000e+00> : vector<8xf32>
    %52 = vector.multi_reduction <add>, %51, %cst_39 [1] : vector<8x128xf32> to vector<8xf32>
    %53 = vector.shape_cast %52 : vector<8xf32> to vector<8x1xf32>
    %cst_40 = arith.constant 3.125000e-02 : f32
    %54 = vector.broadcast %cst_40 : f32 to vector<8x1xf32>
    %55 = arith.mulf %53, %54 : vector<8x1xf32>
    %56 = tpu.iota {dimensions = array<i32: 1>} : vector<1x128xi32>
    %c32_i32 = arith.constant 32 : i32
    %57 = vector.broadcast %c32_i32 : i32 to vector<1x128xi32>
    %58 = arith.cmpi slt, %56, %57 : vector<1x128xi32>
    %59 = vector.broadcast %55 : vector<8x1xf32> to vector<8x128xf32>
    %60 = arith.subf %51, %59 : vector<8x128xf32>
    %cst_41 = arith.constant 0.000000e+00 : f32
    %61 = vector.shape_cast %58 : vector<1x128xi1> to vector<1x128xi1>
    %62 = vector.broadcast %61 : vector<1x128xi1> to vector<8x128xi1>
    %63 = vector.broadcast %cst_41 : f32 to vector<8x128xf32>
    %64 = arith.select %62, %60, %63 : vector<8x128xi1>, vector<8x128xf32>
    %65 = arith.mulf %64, %64 : vector<8x128xf32>
    %cst_42 = arith.constant dense<0.000000e+00> : vector<8xf32>
    %66 = vector.multi_reduction <add>, %65, %cst_42 [1] : vector<8x128xf32> to vector<8xf32>
    %67 = vector.shape_cast %66 : vector<8xf32> to vector<8x1xf32>
    %cst_43 = arith.constant 3.125000e-02 : f32
    %68 = vector.broadcast %cst_43 : f32 to vector<8x1xf32>
    %69 = arith.mulf %67, %68 : vector<8x1xf32>
    %cst_44 = arith.constant 9.99999974E-6 : f32
    %70 = vector.broadcast %cst_44 : f32 to vector<8x1xf32>
    %71 = arith.addf %69, %70 : vector<8x1xf32>
    %72 = math.rsqrt %71 : vector<8x1xf32>
    %73 = vector.broadcast %72 : vector<8x1xf32> to vector<8x128xf32>
    %74 = arith.mulf %64, %73 : vector<8x128xf32>
    %c0_45 = arith.constant 0 : index
    %c0_46 = arith.constant 0 : index
    %75 = vector.load %arg5[%c0_45, %c0_46] : memref<1x128xf32, #tpu.memory_space<vmem>>, vector<1x128xf32>
    %76 = vector.broadcast %75 : vector<1x128xf32> to vector<8x128xf32>
    %77 = arith.mulf %74, %76 : vector<8x128xf32>
    %c0_47 = arith.constant 0 : index
    %c0_48 = arith.constant 0 : index
    %78 = vector.load %arg6[%c0_47, %c0_48] : memref<1x128xf32, #tpu.memory_space<vmem>>, vector<1x128xf32>
    %79 = vector.broadcast %78 : vector<1x128xf32> to vector<8x128xf32>
    %80 = arith.addf %77, %79 : vector<8x128xf32>
    %c0_49 = arith.constant 0 : index
    %c0_50 = arith.constant 0 : index
    %c0_51 = arith.constant 0 : index
    %81 = vector.load %arg7[%c0_49, %c0_50, %c0_51] : memref<1x8x128xf32, #tpu.memory_space<vmem>>, vector<1x8x128xf32>
    %82 = vector.shape_cast %81 : vector<1x8x128xf32> to vector<8x128xf32>
    %83 = vector.shape_cast %80 : vector<8x128xf32> to vector<1x8x128xf32>
    tpu.vector_store %arg7[%c0_49, %c0_50, %c0_51], %83 {strides = array<i32>} : memref<1x8x128xf32, #tpu.memory_space<vmem>>, vector<1x8x128xf32>,
    return
  }
  func.func @transform_0(%arg0: i32, %arg1: i32) -> (i32, i32, i32) {
    %c0_i32 = arith.constant 0 : i32
    %c0_i32_0 = arith.constant 0 : i32
    return %arg0, %arg1, %c0_i32 : i32, i32, i32
  }
  func.func @transform_1(%arg0: i32, %arg1: i32) -> (i32, i32) {
    %c0_i32 = arith.constant 0 : i32
    %c0_i32_0 = arith.constant 0 : i32
    %c0_i32_1 = arith.constant 0 : i32
    return %c0_i32, %c0_i32_0 : i32, i32
  }
  func.func @transform_2(%arg0: i32, %arg1: i32) -> (i32, i32) {
    %c0_i32 = arith.constant 0 : i32
    %c0_i32_0 = arith.constant 0 : i32
    %c0_i32_1 = arith.constant 0 : i32
    return %c0_i32, %c0_i32_0 : i32, i32
  }
  func.func @transform_3(%arg0: i32, %arg1: i32) -> (i32, i32) {
    %c0_i32 = arith.constant 0 : i32
    %c0_i32_0 = arith.constant 0 : i32
    %c0_i32_1 = arith.constant 0 : i32
    return %c0_i32, %c0_i32_0 : i32, i32
  }
  func.func @transform_4(%arg0: i32, %arg1: i32) -> (i32, i32) {
    %c0_i32 = arith.constant 0 : i32
    %c0_i32_0 = arith.constant 0 : i32
    %c0_i32_1 = arith.constant 0 : i32
    return %c0_i32, %c0_i32_0 : i32, i32
  }
  func.func @transform_5(%arg0: i32, %arg1: i32) -> (i32, i32, i32) {
    %c0_i32 = arith.constant 0 : i32
    %c0_i32_0 = arith.constant 0 : i32
    return %arg0, %arg1, %c0_i32 : i32, i32, i32
  }
}

module attributes {stable_mosaic.version = 11 : i64} {
  func.func @_mha_kernel(%arg0: i32, %arg1: i32, %arg2: memref<1x8x128xf32, #tpu.memory_space<vmem>>, %arg3: memref<128x384xbf16, #tpu.memory_space<vmem>>, %arg4: memref<128x128xbf16, #tpu.memory_space<vmem>>, %arg5: memref<1x128xf32, #tpu.memory_space<vmem>>, %arg6: memref<1x128xf32, #tpu.memory_space<vmem>>, %arg7: memref<1x8x128xf32, #tpu.memory_space<vmem>>, %arg8: memref<1x2x8x64xbf16, #tpu.memory_space<vmem>>, %arg9: memref<1x2x8x64xbf16, #tpu.memory_space<vmem>>, %arg10: memref<2x8x1xf32, #tpu.memory_space<vmem>>, %arg11: memref<2x8x1xf32, #tpu.memory_space<vmem>>, %arg12: memref<2x8x64xf32, #tpu.memory_space<vmem>>) attributes {dimension_semantics = [#tpu.dimension_semantics<parallel>, #tpu.dimension_semantics<arbitrary>], iteration_bounds = array<i64: 2, 1>, scalar_prefetch = 0 : i64, scratch_operands = 5 : i64, tpu.core_type = #tpu.core_type<tc>, window_params = [{transform_indices = @transform_0, window_bounds = array<i64: 1, 8, 128>}, {pipeline_mode = #tpu.pipeline_mode<synchronous>, transform_indices = @transform_1, window_bounds = array<i64: 128, 384>}, {pipeline_mode = #tpu.pipeline_mode<synchronous>, transform_indices = @transform_2, window_bounds = array<i64: 128, 128>}, {pipeline_mode = #tpu.pipeline_mode<synchronous>, transform_indices = @transform_3, window_bounds = array<i64: 1, 128>}, {pipeline_mode = #tpu.pipeline_mode<synchronous>, transform_indices = @transform_4, window_bounds = array<i64: 1, 128>}, {transform_indices = @transform_5, window_bounds = array<i64: 1, 8, 128>}]} {
    %c8_i32 = arith.constant 8 : i32
    %0 = arith.muli %arg1, %c8_i32 : i32
    %c0 = arith.constant 0 : index
    %c0_0 = arith.constant 0 : index
    %c0_1 = arith.constant 0 : index
    %1 = vector.load %arg2[%c0, %c0_0, %c0_1] : memref<1x8x128xf32, #tpu.memory_space<vmem>>, vector<1x8x128xf32>
    %2 = vector.shape_cast %1 : vector<1x8x128xf32> to vector<8x128xf32>
    %3 = arith.truncf %2 : vector<8x128xf32> to vector<8x128xbf16>
    %c0_2 = arith.constant 0 : index
    %c0_3 = arith.constant 0 : index
    %4 = vector.load %arg3[%c0_2, %c0_3] : memref<128x384xbf16, #tpu.memory_space<vmem>>, vector<128x384xbf16>
    %cst = arith.constant dense<0.000000e+00> : vector<8x384xf32>
    %5 = tpu.matmul %3, %4, %cst {dimension_numbers = #tpu.dot_dimension_numbers<[1], [0], [0], [1], [0, 0, 1, 1], [], []>} : vector<8x128xbf16>, vector<128x384xbf16>, vector<8x384xf32> -> vector<8x384xf32>
    %6 = vector.extract_strided_slice %5 {offsets = [0, 128], sizes = [8, 128], strides = [1, 1]} : vector<8x384xf32> to vector<8x128xf32>
    %7 = arith.truncf %6 : vector<8x128xf32> to vector<8x128xbf16>
    %8 = vector.shape_cast %7 : vector<8x128xbf16> to vector<8x2x64xbf16>
    %9 = vector.extract_strided_slice %5 {offsets = [0, 256], sizes = [8, 128], strides = [1, 1]} : vector<8x384xf32> to vector<8x128xf32>
    %10 = arith.truncf %9 : vector<8x128xf32> to vector<8x128xbf16>
    %11 = vector.shape_cast %10 : vector<8x128xbf16> to vector<8x2x64xbf16>
    %12 = tpu.transpose %8, [1, 0, 2] : vector<8x2x64xbf16> -> vector<2x8x64xbf16>
    %13 = arith.index_cast %arg1 : i32 to index
    %c0_4 = arith.constant 0 : index
    %c0_5 = arith.constant 0 : index
    %c0_6 = arith.constant 0 : index
    %14 = vector.load %arg8[%13, %c0_4, %c0_5, %c0_6] : memref<1x2x8x64xbf16, #tpu.memory_space<vmem>>, vector<1x2x8x64xbf16>
    %15 = vector.shape_cast %14 : vector<1x2x8x64xbf16> to vector<2x8x64xbf16>
    %16 = vector.shape_cast %12 : vector<2x8x64xbf16> to vector<1x2x8x64xbf16>
    tpu.vector_store %arg8[%13, %c0_4, %c0_5, %c0_6], %16 {strides = array<i32>} : memref<1x2x8x64xbf16, #tpu.memory_space<vmem>>, vector<1x2x8x64xbf16>,
    %17 = tpu.transpose %11, [1, 0, 2] : vector<8x2x64xbf16> -> vector<2x8x64xbf16>
    %18 = arith.index_cast %arg1 : i32 to index
    %c0_7 = arith.constant 0 : index
    %c0_8 = arith.constant 0 : index
    %c0_9 = arith.constant 0 : index
    %19 = vector.load %arg9[%18, %c0_7, %c0_8, %c0_9] : memref<1x2x8x64xbf16, #tpu.memory_space<vmem>>, vector<1x2x8x64xbf16>
    %20 = vector.shape_cast %19 : vector<1x2x8x64xbf16> to vector<2x8x64xbf16>
    %21 = vector.shape_cast %17 : vector<2x8x64xbf16> to vector<1x2x8x64xbf16>
    tpu.vector_store %arg9[%18, %c0_7, %c0_8, %c0_9], %21 {strides = array<i32>} : memref<1x2x8x64xbf16, #tpu.memory_space<vmem>>, vector<1x2x8x64xbf16>,
    %22 = vector.extract_strided_slice %5 {offsets = [0, 0], sizes = [8, 128], strides = [1, 1]} : vector<8x384xf32> to vector<8x128xf32>
    %cst_10 = arith.constant 1.250000e-01 : f32
    %23 = vector.broadcast %cst_10 : f32 to vector<8x128xf32>
    %24 = arith.mulf %22, %23 : vector<8x128xf32>
    %25 = arith.truncf %24 : vector<8x128xf32> to vector<8x128xbf16>
    %26 = vector.shape_cast %25 : vector<8x128xbf16> to vector<8x2x64xbf16>
    %27 = tpu.transpose %26, [1, 0, 2] : vector<8x2x64xbf16> -> vector<2x8x64xbf16>
    %cst_11 = arith.constant -1.000000e+30 : f32
    %28 = vector.broadcast %cst_11 : f32 to vector<2x8x1xf32>
    %c0_12 = arith.constant 0 : index
    %c0_13 = arith.constant 0 : index
    %c0_14 = arith.constant 0 : index
    %29 = vector.load %arg10[%c0_12, %c0_13, %c0_14] : memref<2x8x1xf32, #tpu.memory_space<vmem>>, vector<2x8x1xf32>
    tpu.vector_store %arg10[%c0_12, %c0_13, %c0_14], %28 {strides = array<i32>} : memref<2x8x1xf32, #tpu.memory_space<vmem>>, vector<2x8x1xf32>,
    %cst_15 = arith.constant 0.000000e+00 : f32
    %30 = vector.broadcast %cst_15 : f32 to vector<2x8x1xf32>
    %c0_16 = arith.constant 0 : index
    %c0_17 = arith.constant 0 : index
    %c0_18 = arith.constant 0 : index
    %31 = vector.load %arg11[%c0_16, %c0_17, %c0_18] : memref<2x8x1xf32, #tpu.memory_space<vmem>>, vector<2x8x1xf32>
    tpu.vector_store %arg11[%c0_16, %c0_17, %c0_18], %30 {strides = array<i32>} : memref<2x8x1xf32, #tpu.memory_space<vmem>>, vector<2x8x1xf32>,
    %cst_19 = arith.constant 0.000000e+00 : f32
    %32 = vector.broadcast %cst_19 : f32 to vector<2x8x64xf32>
    %c0_20 = arith.constant 0 : index
    %c0_21 = arith.constant 0 : index
    %c0_22 = arith.constant 0 : index
    %33 = vector.load %arg12[%c0_20, %c0_21, %c0_22] : memref<2x8x64xf32, #tpu.memory_space<vmem>>, vector<2x8x64xf32>
    tpu.vector_store %arg12[%c0_20, %c0_21, %c0_22], %32 {strides = array<i32>} : memref<2x8x64xf32, #tpu.memory_space<vmem>>, vector<2x8x64xf32>,
    %c1_i32 = arith.constant 1 : i32
    %34 = arith.addi %arg1, %c1_i32 : i32
    %c0_i32 = arith.constant 0 : i32
    %35 = arith.subi %34, %c0_i32 : i32
    %c1_i32_23 = arith.constant 1 : i32
    %c1_i32_24 = arith.constant 1 : i32
    %36 = arith.subi %c1_i32_23, %c1_i32_24 : i32
    %37 = arith.addi %35, %36 : i32
    %c1_i32_25 = arith.constant 1 : i32
    %38 = arith.divsi %37, %c1_i32_25 : i32
    %c1_i32_26 = arith.constant 1 : i32
    %c0_i32_27 = arith.constant 0 : i32
    %c0_i32_28 = arith.constant 0 : i32
    %39 = arith.subi %38, %c0_i32_28 : i32
    %40 = arith.addi %c0_i32_28, %39 : i32
    %c1_i32_29 = arith.constant 1 : i32
    scf.for %arg13 = %c0_i32_28 to %40 step %c1_i32_29  : i32 {
      %84 = arith.muli %arg13, %c1_i32_26 : i32
      %85 = arith.addi %c0_i32_27, %84 : i32
      %c8_i32_52 = arith.constant 8 : i32
      %86 = arith.muli %85, %c8_i32_52 : i32
      %87 = arith.index_cast %85 : i32 to index
      %c0_53 = arith.constant 0 : index
      %c0_54 = arith.constant 0 : index
      %c0_55 = arith.constant 0 : index
      %88 = vector.load %arg8[%87, %c0_53, %c0_54, %c0_55] : memref<1x2x8x64xbf16, #tpu.memory_space<vmem>>, vector<1x2x8x64xbf16>
      %89 = vector.shape_cast %88 : vector<1x2x8x64xbf16> to vector<2x8x64xbf16>
      %90 = arith.index_cast %85 : i32 to index
      %c0_56 = arith.constant 0 : index
      %c0_57 = arith.constant 0 : index
      %c0_58 = arith.constant 0 : index
      %91 = vector.load %arg9[%90, %c0_56, %c0_57, %c0_58] : memref<1x2x8x64xbf16, #tpu.memory_space<vmem>>, vector<1x2x8x64xbf16>
      %92 = vector.shape_cast %91 : vector<1x2x8x64xbf16> to vector<2x8x64xbf16>
      %cst_59 = arith.constant dense<0.000000e+00> : vector<2x8x8xf32>
      %93 = tpu.matmul %27, %89, %cst_59 {dimension_numbers = #tpu.dot_dimension_numbers<[2], [2], [1], [1], [0, 0, 0, 1, 1, 1], [0], [0]>} : vector<2x8x64xbf16>, vector<2x8x64xbf16>, vector<2x8x8xf32> -> vector<2x8x8xf32>
      %94 = tpu.iota {dimensions = array<i32: 0>} : vector<8x8xi32>
      %95 = vector.broadcast %0 : i32 to vector<8x8xi32>
      %96 = arith.addi %94, %95 : vector<8x8xi32>
      %97 = tpu.iota {dimensions = array<i32: 1>} : vector<8x8xi32>
      %98 = vector.broadcast %86 : i32 to vector<8x8xi32>
      %99 = arith.addi %97, %98 : vector<8x8xi32>
      %100 = arith.cmpi sgt, %99, %96 : vector<8x8xi32>
      %101 = vector.shape_cast %100 : vector<8x8xi1> to vector<1x8x8xi1>
      %cst_60 = arith.constant -1.000000e+07 : f32
      %102 = vector.shape_cast %101 : vector<1x8x8xi1> to vector<1x8x8xi1>
      %103 = vector.broadcast %102 : vector<1x8x8xi1> to vector<2x8x8xi1>
      %104 = vector.broadcast %cst_60 : f32 to vector<2x8x8xf32>
      %105 = arith.select %103, %104, %93 : vector<2x8x8xi1>, vector<2x8x8xf32>
      %c0_61 = arith.constant 0 : index
      %c0_62 = arith.constant 0 : index
      %c0_63 = arith.constant 0 : index
      %106 = vector.load %arg10[%c0_61, %c0_62, %c0_63] : memref<2x8x1xf32, #tpu.memory_space<vmem>>, vector<2x8x1xf32>
      %cst_64 = arith.constant dense<0xFF800000> : vector<2x8xf32>
      %107 = vector.multi_reduction <maximumf>, %105, %cst_64 [2] : vector<2x8x8xf32> to vector<2x8xf32>
      %108 = vector.shape_cast %107 : vector<2x8xf32> to vector<2x8x1xf32>
      %109 = arith.maximumf %106, %108 : vector<2x8x1xf32>
      %110 = arith.subf %106, %109 : vector<2x8x1xf32>
      %111 = math.exp %110 : vector<2x8x1xf32>
      %112 = vector.broadcast %109 : vector<2x8x1xf32> to vector<2x8x8xf32>
      %113 = arith.subf %105, %112 : vector<2x8x8xf32>
      %114 = math.exp %113 : vector<2x8x8xf32>
      %c0_65 = arith.constant 0 : index
      %c0_66 = arith.constant 0 : index
      %c0_67 = arith.constant 0 : index
      %115 = vector.load %arg11[%c0_65, %c0_66, %c0_67] : memref<2x8x1xf32, #tpu.memory_space<vmem>>, vector<2x8x1xf32>
      %116 = arith.mulf %111, %115 : vector<2x8x1xf32>
      %cst_68 = arith.constant dense<0.000000e+00> : vector<2x8xf32>
      %117 = vector.multi_reduction <add>, %114, %cst_68 [2] : vector<2x8x8xf32> to vector<2x8xf32>
      %118 = vector.shape_cast %117 : vector<2x8xf32> to vector<2x8x1xf32>
      %119 = arith.addf %116, %118 : vector<2x8x1xf32>
      %c0_69 = arith.constant 0 : index
      %c0_70 = arith.constant 0 : index
      %c0_71 = arith.constant 0 : index
      %120 = vector.load %arg11[%c0_69, %c0_70, %c0_71] : memref<2x8x1xf32, #tpu.memory_space<vmem>>, vector<2x8x1xf32>
      tpu.vector_store %arg11[%c0_69, %c0_70, %c0_71], %119 {strides = array<i32>} : memref<2x8x1xf32, #tpu.memory_space<vmem>>, vector<2x8x1xf32>,
      %121 = arith.truncf %114 : vector<2x8x8xf32> to vector<2x8x8xbf16>
      %cst_72 = arith.constant dense<0.000000e+00> : vector<2x8x64xf32>
      %122 = tpu.matmul %121, %92, %cst_72 {dimension_numbers = #tpu.dot_dimension_numbers<[2], [1], [1], [2], [0, 0, 0, 1, 1, 2], [0], [0]>} : vector<2x8x8xbf16>, vector<2x8x64xbf16>, vector<2x8x64xf32> -> vector<2x8x64xf32>
      %c0_73 = arith.constant 0 : index
      %c0_74 = arith.constant 0 : index
      %c0_75 = arith.constant 0 : index
      %123 = vector.load %arg12[%c0_73, %c0_74, %c0_75] : memref<2x8x64xf32, #tpu.memory_space<vmem>>, vector<2x8x64xf32>
      %124 = vector.broadcast %111 : vector<2x8x1xf32> to vector<2x8x64xf32>
      %125 = arith.mulf %124, %123 : vector<2x8x64xf32>
      %126 = arith.addf %125, %122 : vector<2x8x64xf32>
      %c0_76 = arith.constant 0 : index
      %c0_77 = arith.constant 0 : index
      %c0_78 = arith.constant 0 : index
      %127 = vector.load %arg12[%c0_76, %c0_77, %c0_78] : memref<2x8x64xf32, #tpu.memory_space<vmem>>, vector<2x8x64xf32>
      tpu.vector_store %arg12[%c0_76, %c0_77, %c0_78], %126 {strides = array<i32>} : memref<2x8x64xf32, #tpu.memory_space<vmem>>, vector<2x8x64xf32>,
      %c0_79 = arith.constant 0 : index
      %c0_80 = arith.constant 0 : index
      %c0_81 = arith.constant 0 : index
      %128 = vector.load %arg10[%c0_79, %c0_80, %c0_81] : memref<2x8x1xf32, #tpu.memory_space<vmem>>, vector<2x8x1xf32>
      tpu.vector_store %arg10[%c0_79, %c0_80, %c0_81], %109 {strides = array<i32>} : memref<2x8x1xf32, #tpu.memory_space<vmem>>, vector<2x8x1xf32>,
    }
    %c0_30 = arith.constant 0 : index
    %c0_31 = arith.constant 0 : index
    %c0_32 = arith.constant 0 : index
    %41 = vector.load %arg12[%c0_30, %c0_31, %c0_32] : memref<2x8x64xf32, #tpu.memory_space<vmem>>, vector<2x8x64xf32>
    %c0_33 = arith.constant 0 : index
    %c0_34 = arith.constant 0 : index
    %c0_35 = arith.constant 0 : index
    %42 = vector.load %arg11[%c0_33, %c0_34, %c0_35] : memref<2x8x1xf32, #tpu.memory_space<vmem>>, vector<2x8x1xf32>
    %43 = tpu.reciprocal %42 {approx = true} : vector<2x8x1xf32> -> vector<2x8x1xf32>
    %44 = vector.broadcast %43 : vector<2x8x1xf32> to vector<2x8x64xf32>
    %45 = arith.mulf %41, %44 : vector<2x8x64xf32>
    %46 = tpu.transpose %45, [1, 0, 2] : vector<2x8x64xf32> -> vector<8x2x64xf32>
    %47 = vector.shape_cast %46 : vector<8x2x64xf32> to vector<8x128xf32>
    %48 = arith.truncf %47 : vector<8x128xf32> to vector<8x128xbf16>
    %c0_36 = arith.constant 0 : index
    %c0_37 = arith.constant 0 : index
    %49 = vector.load %arg4[%c0_36, %c0_37] : memref<128x128xbf16, #tpu.memory_space<vmem>>, vector<128x128xbf16>
    %cst_38 = arith.constant dense<0.000000e+00> : vector<8x128xf32>
    %50 = tpu.matmul %48, %49, %cst_38 {dimension_numbers = #tpu.dot_dimension_numbers<[1], [0], [0], [1], [0, 0, 1, 1], [], []>} : vector<8x128xbf16>, vector<128x128xbf16>, vector<8x128xf32> -> vector<8x128xf32>
    %51 = arith.addf %50, %2 : vector<8x128xf32>
    %cst_39 = arith.constant dense<0.000000e+00> : vector<8xf32>
    %52 = vector.multi_reduction <add>, %51, %cst_39 [1] : vector<8x128xf32> to vector<8xf32>
    %53 = vector.shape_cast %52 : vector<8xf32> to vector<8x1xf32>
    %cst_40 = arith.constant 3.125000e-02 : f32
    %54 = vector.broadcast %cst_40 : f32 to vector<8x1xf32>
    %55 = arith.mulf %53, %54 : vector<8x1xf32>
    %56 = tpu.iota {dimensions = array<i32: 1>} : vector<1x128xi32>
    %c32_i32 = arith.constant 32 : i32
    %57 = vector.broadcast %c32_i32 : i32 to vector<1x128xi32>
    %58 = arith.cmpi slt, %56, %57 : vector<1x128xi32>
    %59 = vector.broadcast %55 : vector<8x1xf32> to vector<8x128xf32>
    %60 = arith.subf %51, %59 : vector<8x128xf32>
    %cst_41 = arith.constant 0.000000e+00 : f32
    %61 = vector.shape_cast %58 : vector<1x128xi1> to vector<1x128xi1>
    %62 = vector.broadcast %61 : vector<1x128xi1> to vector<8x128xi1>
    %63 = vector.broadcast %cst_41 : f32 to vector<8x128xf32>
    %64 = arith.select %62, %60, %63 : vector<8x128xi1>, vector<8x128xf32>
    %65 = arith.mulf %64, %64 : vector<8x128xf32>
    %cst_42 = arith.constant dense<0.000000e+00> : vector<8xf32>
    %66 = vector.multi_reduction <add>, %65, %cst_42 [1] : vector<8x128xf32> to vector<8xf32>
    %67 = vector.shape_cast %66 : vector<8xf32> to vector<8x1xf32>
    %cst_43 = arith.constant 3.125000e-02 : f32
    %68 = vector.broadcast %cst_43 : f32 to vector<8x1xf32>
    %69 = arith.mulf %67, %68 : vector<8x1xf32>
    %cst_44 = arith.constant 9.99999974E-6 : f32
    %70 = vector.broadcast %cst_44 : f32 to vector<8x1xf32>
    %71 = arith.addf %69, %70 : vector<8x1xf32>
    %72 = math.rsqrt %71 : vector<8x1xf32>
    %73 = vector.broadcast %72 : vector<8x1xf32> to vector<8x128xf32>
    %74 = arith.mulf %64, %73 : vector<8x128xf32>
    %c0_45 = arith.constant 0 : index
    %c0_46 = arith.constant 0 : index
    %75 = vector.load %arg5[%c0_45, %c0_46] : memref<1x128xf32, #tpu.memory_space<vmem>>, vector<1x128xf32>
    %76 = vector.broadcast %75 : vector<1x128xf32> to vector<8x128xf32>
    %77 = arith.mulf %74, %76 : vector<8x128xf32>
    %c0_47 = arith.constant 0 : index
    %c0_48 = arith.constant 0 : index
    %78 = vector.load %arg6[%c0_47, %c0_48] : memref<1x128xf32, #tpu.memory_space<vmem>>, vector<1x128xf32>
    %79 = vector.broadcast %78 : vector<1x128xf32> to vector<8x128xf32>
    %80 = arith.addf %77, %79 : vector<8x128xf32>
    %c0_49 = arith.constant 0 : index
    %c0_50 = arith.constant 0 : index
    %c0_51 = arith.constant 0 : index
    %81 = vector.load %arg7[%c0_49, %c0_50, %c0_51] : memref<1x8x128xf32, #tpu.memory_space<vmem>>, vector<1x8x128xf32>
    %82 = vector.shape_cast %81 : vector<1x8x128xf32> to vector<8x128xf32>
    %83 = vector.shape_cast %80 : vector<8x128xf32> to vector<1x8x128xf32>
    tpu.vector_store %arg7[%c0_49, %c0_50, %c0_51], %83 {strides = array<i32>} : memref<1x8x128xf32, #tpu.memory_space<vmem>>, vector<1x8x128xf32>,
    return
  }
  func.func @transform_0(%arg0: i32, %arg1: i32) -> (i32, i32, i32) {
    %c0_i32 = arith.constant 0 : i32
    %c0_i32_0 = arith.constant 0 : i32
    return %arg0, %arg1, %c0_i32 : i32, i32, i32
  }
  func.func @transform_1(%arg0: i32, %arg1: i32) -> (i32, i32) {
    %c0_i32 = arith.constant 0 : i32
    %c0_i32_0 = arith.constant 0 : i32
    %c0_i32_1 = arith.constant 0 : i32
    return %c0_i32, %c0_i32_0 : i32, i32
  }
  func.func @transform_2(%arg0: i32, %arg1: i32) -> (i32, i32) {
    %c0_i32 = arith.constant 0 : i32
    %c0_i32_0 = arith.constant 0 : i32
    %c0_i32_1 = arith.constant 0 : i32
    return %c0_i32, %c0_i32_0 : i32, i32
  }
  func.func @transform_3(%arg0: i32, %arg1: i32) -> (i32, i32) {
    %c0_i32 = arith.constant 0 : i32
    %c0_i32_0 = arith.constant 0 : i32
    %c0_i32_1 = arith.constant 0 : i32
    return %c0_i32, %c0_i32_0 : i32, i32
  }
  func.func @transform_4(%arg0: i32, %arg1: i32) -> (i32, i32) {
    %c0_i32 = arith.constant 0 : i32
    %c0_i32_0 = arith.constant 0 : i32
    %c0_i32_1 = arith.constant 0 : i32
    return %c0_i32, %c0_i32_0 : i32, i32
  }
  func.func @transform_5(%arg0: i32, %arg1: i32) -> (i32, i32, i32) {
    %c0_i32 = arith.constant 0 : i32
    %c0_i32_0 = arith.constant 0 : i32
    return %arg0, %arg1, %c0_i32 : i32, i32, i32
  }
}

</mosaic_0001>

<llo_original>
// kernel: tpu_custom_call.1
$region0: #{tpu_custom_call.1}
  #allocation0 [shape = 'u32[]', space=smem, size = 0x4, offset = 0x4, fixed_abs, tag = 'smem constant byte address 0x4 - core index']
  #allocation1 [shape = 'u32[144,128]{1,0:T(1,128)}', space=vmem, size = 0x12000, scoped, tag = 'internal scratch']
  #allocation2 [shape = 'bf16[1,2,8,64]{3,2,1,0:T(8,128)(2,1)}', space=vmem, size = 0x1000, scoped, tag = 'scratch operand']
  #allocation3 [shape = 'bf16[1,2,8,64]{3,2,1,0:T(8,128)(2,1)}', space=vmem, size = 0x1000, scoped, tag = 'scratch operand']
  #allocation4 [shape = 'f32[2,8,1]{2,1,0:T(8,128)}', space=vmem, size = 0x2000, scoped, tag = 'scratch operand']
  #allocation5 [shape = 'f32[2,8,1]{2,1,0:T(8,128)}', space=vmem, size = 0x2000, scoped, tag = 'scratch operand']
  #allocation6 [shape = 'f32[2,8,64]{2,1,0:T(8,128)}', space=vmem, size = 0x2000, scoped, tag = 'scratch operand']
  %s0 = inlined_call_operand.hbm [shape: f32[2,8,128], index: 0, kind: input, shape index: {}]
  %s1 = inlined_call_operand.hbm [shape: bf16[128,384], index: 1, kind: input, shape index: {}]
  %s2 = inlined_call_operand.hbm [shape: bf16[128,128], index: 2, kind: input, shape index: {}]
  %s3 = inlined_call_operand.vmem [shape: f32[1,128], index: 3, kind: input, shape index: {}]
  %s4 = inlined_call_operand.vmem [shape: f32[1,128], index: 4, kind: input, shape index: {}]
  %s5 = inlined_call_operand.hbm [shape: f32[2,8,128], index: 5, kind: output, shape index: {}]
  %s6 = sld [smem:[#allocation0]]
  $region72: #{tpu_custom_call.1} parent=0
    _
  %s8 = ssub.s32 1, %s6
  %s9 = scalar_select 0, %s8, %s6
  $region1: #{tpu_custom_call.1} parent=0
    #allocation7 [shape = 'u8[8192]{0}', space=vmem, size = 0x2000, scoped, tag = 'input window, operand 0']
    #allocation8 [shape = 's32[2]{0}', space=sflag, size = 0x8, scoped, tag = 'scoped memory for tpu_custom_call.1']
    #allocation9 [shape = 's32[2]{0}', space=sflag, size = 0x8, scoped, tag = 'scoped memory for tpu_custom_call.1']
    #allocation10 [shape = 'u8[98304]{0}', space=vmem, size = 0x18000, scoped, tag = 'input window, operand 1, single buffered']
    #allocation11 [shape = 's32[1]{0}', space=sflag, size = 0x4, scoped, tag = 'scoped memory for tpu_custom_call.1']
    #allocation12 [shape = 'u8[32768]{0}', space=vmem, size = 0x8000, scoped, tag = 'input window, operand 2, single buffered']
    #allocation13 [shape = 'u8[8192]{0}', space=vmem, size = 0x2000, scoped, tag = 'output window, operand 0']
    %10 = vsyncpa [#allocation8], 0
    %s11 = scalar_lea.sflag [#allocation8], 1
    %12 = vsyncpa %s11, 0
    %13 = vsyncpa [#allocation11], 0
    %14 = vsyncpa [#allocation9], 0
    %s15 = scalar_lea.sflag [#allocation9], 1
    %16 = vsyncpa %s15, 0
    loop: start=0, step=1, limit=4
    $region2: #{tpu_custom_call.1} parent=1 // loop_pre_header
      _
    $region3: #{tpu_custom_call.1} parent=1 // loop_header
      %s18 = sphi 0, %s22
      %p19 = scmp.ge.s32.totalorder %s18, 4
      %s25 = sphi 0, %s37
      %s26 = sphi 0, %s33
      %s27 = sphi 0, %s25
      %s28 = sphi 0, %s26
      %s29 = sphi 0, %s27
      %s30 = sphi 0, %s28
      %s42 = sphi 0, %s44
      %s45 = sphi 0, %s42
      %s46 = sphi 0, %s45
      %s62 = sphi 0, %s46
      %s66 = sphi 0, %s66
      %s68 = sphi 0, %s66
      %s69 = sphi 0, %s68
      %s83 = sphi 0, %s69
      %s87 = sphi 0, %s87
      %s89 = sphi 0, %s87
      %s90 = sphi 0, %s89
      %s104 = sphi 0, %s90
      %s108 = sphi 0, %s108
      %s110 = sphi 0, %s108
      %s111 = sphi 0, %s110
      %s125 = sphi 0, %s111
      %s129 = sphi 0, %s129
      %s131 = sphi 0, %s129
      %s132 = sphi 0, %s131
      %s146 = sphi 0, %s132
      %s154 = sphi 0, %s156
      %s157 = sphi 0, %s154
      %s158 = sphi 0, %s157
      %s174 = sphi 0, %s158
    $region4: #{tpu_custom_call.1} parent=1 // loop_header_branch
      %21 = sbr.rel (%p19) target = $region8
    $region5: #{tpu_custom_call.1} parent=1 // loop_body
      %s23 = ssub.s32 %s18, 1
      %s24 = ssub.s32 %s18, 2
      %s31 = sadd.s32 1, %s26
      %p32 = scmp.ge.s32.totalorder %s31, 1
      %s33 = scalar_select %p32, 0, %s31
      %s34 = sadd.s32 1, %s25
      %s35 = scalar_select %p32, %s34, %s25
      %p36 = scmp.ge.s32.totalorder %s35, 2
      %s37 = scalar_select %p36, 0, %s35
      %s38 = ssub.s32 %s25, %s37
      %s39 = ssub.s32 %s26, %s33
      %s40 = sor.u32 %s38, %s39
      %p41 = scmp.eq.s32.totalorder %s40, 0
      %s43 = sadd.s32 %s42, 1
      %s44 = scalar_select %p41, %s42, %s43
      %p47 = pneg %p41
      %p48 = scmp.eq.s32.totalorder %s18, 1
      %p49 = por %p47, %p48
      %p50 = scmp.ne.s32.totalorder %s42, %s45
      %p51 = scmp.eq.s32.totalorder %s18, 0
      %p52 = por %p50, %p51
      %p53 = scmp.ne.s32.totalorder %s42, %s45
      %p54 = scmp.eq.s32.totalorder %s23, 1
      %p55 = por %p53, %p54
      %p56 = scmp.ne.s32.totalorder %s45, %s46
      %p57 = scmp.eq.s32.totalorder %s23, 0
      %p58 = por %p56, %p57
      %p59 = scmp.ne.s32.totalorder %s45, %s46
      %p60 = scmp.eq.s32.totalorder %s24, 1
      %p61 = por %p59, %p60
      %p63 = scmp.ne.s32.totalorder %s46, %s62
      %p64 = scmp.eq.s32.totalorder %s24, 0
      %p65 = por %p63, %p64
      %s67 = sadd.s32 %s66, 1
      %p70 = scmp.eq.s32.totalorder %s18, 1
      %p71 = scmp.ne.s32.totalorder %s66, %s68
      %p72 = scmp.eq.s32.totalorder %s18, 0
      %p73 = por %p71, %p72
      %p74 = scmp.ne.s32.totalorder %s66, %s68
      %p75 = scmp.eq.s32.totalorder %s23, 1
      %p76 = por %p74, %p75
      %p77 = scmp.ne.s32.totalorder %s68, %s69
      %p78 = scmp.eq.s32.totalorder %s23, 0
      %p79 = por %p77, %p78
      %p80 = scmp.ne.s32.totalorder %s68, %s69
      %p81 = scmp.eq.s32.totalorder %s24, 1
      %p82 = por %p80, %p81
      %p84 = scmp.ne.s32.totalorder %s69, %s83
      %p85 = scmp.eq.s32.totalorder %s24, 0
      %p86 = por %p84, %p85
      %s88 = sadd.s32 %s87, 1
      %p91 = scmp.eq.s32.totalorder %s18, 1
      %p92 = scmp.ne.s32.totalorder %s87, %s89
      %p93 = scmp.eq.s32.totalorder %s18, 0
      %p94 = por %p92, %p93
      %p95 = scmp.ne.s32.totalorder %s87, %s89
      %p96 = scmp.eq.s32.totalorder %s23, 1
      %p97 = por %p95, %p96
      %p98 = scmp.ne.s32.totalorder %s89, %s90
      %p99 = scmp.eq.s32.totalorder %s23, 0
      %p100 = por %p98, %p99
      %p101 = scmp.ne.s32.totalorder %s89, %s90
      %p102 = scmp.eq.s32.totalorder %s24, 1
      %p103 = por %p101, %p102
      %p105 = scmp.ne.s32.totalorder %s90, %s104
      %p106 = scmp.eq.s32.totalorder %s24, 0
      %p107 = por %p105, %p106
      %s109 = sadd.s32 %s108, 1
      %p112 = scmp.eq.s32.totalorder %s18, 1
      %p113 = scmp.ne.s32.totalorder %s108, %s110
      %p114 = scmp.eq.s32.totalorder %s18, 0
      %p115 = por %p113, %p114
      %p116 = scmp.ne.s32.totalorder %s108, %s110
      %p117 = scmp.eq.s32.totalorder %s23, 1
      %p118 = por %p116, %p117
      %p119 = scmp.ne.s32.totalorder %s110, %s111
      %p120 = scmp.eq.s32.totalorder %s23, 0
      %p121 = por %p119, %p120
      %p122 = scmp.ne.s32.totalorder %s110, %s111
      %p123 = scmp.eq.s32.totalorder %s24, 1
      %p124 = por %p122, %p123
      %p126 = scmp.ne.s32.totalorder %s111, %s125
      %p127 = scmp.eq.s32.totalorder %s24, 0
      %p128 = por %p126, %p127
      %s130 = sadd.s32 %s129, 1
      %p133 = scmp.eq.s32.totalorder %s18, 1
      %p134 = scmp.ne.s32.totalorder %s129, %s131
      %p135 = scmp.eq.s32.totalorder %s18, 0
      %p136 = por %p134, %p135
      %p137 = scmp.ne.s32.totalorder %s129, %s131
      %p138 = scmp.eq.s32.totalorder %s23, 1
      %p139 = por %p137, %p138
      %p140 = scmp.ne.s32.totalorder %s131, %s132
      %p141 = scmp.eq.s32.totalorder %s23, 0
      %p142 = por %p140, %p141
      %p143 = scmp.ne.s32.totalorder %s131, %s132
      %p144 = scmp.eq.s32.totalorder %s24, 1
      %p145 = por %p143, %p144
      %p147 = scmp.ne.s32.totalorder %s132, %s146
      %p148 = scmp.eq.s32.totalorder %s24, 0
      %p149 = por %p147, %p148
      %s150 = ssub.s32 %s25, %s37
      %s151 = ssub.s32 %s26, %s33
      %s152 = sor.u32 %s150, %s151
      %p153 = scmp.eq.s32.totalorder %s152, 0
      %s155 = sadd.s32 %s154, 1
      %s156 = scalar_select %p153, %s154, %s155
      %p159 = pneg %p153
      %p160 = scmp.eq.s32.totalorder %s18, 1
      %p161 = por %p159, %p160
      %p162 = scmp.ne.s32.totalorder %s154, %s157
      %p163 = scmp.eq.s32.totalorder %s18, 0
      %p164 = por %p162, %p163
      %p165 = scmp.ne.s32.totalorder %s154, %s157
      %p166 = scmp.eq.s32.totalorder %s23, 1
      %p167 = por %p165, %p166
      %p168 = scmp.ne.s32.totalorder %s157, %s158
      %p169 = scmp.eq.s32.totalorder %s23, 0
      %p170 = por %p168, %p169
      %p171 = scmp.ne.s32.totalorder %s157, %s158
      %p172 = scmp.eq.s32.totalorder %s24, 1
      %p173 = por %p171, %p172
      %p175 = scmp.ne.s32.totalorder %s158, %s174
      %p176 = scmp.eq.s32.totalorder %s24, 0
      %p177 = por %p175, %p176
      %p178 = scmp.le.s32.totalorder 1, %s18
      %p179 = scmp.lt.s32.totalorder %s18, 3
      %p180 = pnand %p178, %p179
      %p181 = pneg %p180
      // Predicated region
      $region9: #{tpu_custom_call.1} parent=5 // pred_check
        _
      $region10: #{tpu_custom_call.1} parent=5 // pred_check_branch
        %183 = sbr.rel (%p180) target = $region12
      $region11: #{tpu_custom_call.1} parent=5 // pred_region
        %s184 = ssub.s32 %s18, 1
        // Predicated region
        $region13: #{tpu_custom_call.1} parent=11 // pred_check
          %p185 = pneg %p79
        $region14: #{tpu_custom_call.1} parent=11 // pred_check_branch
          %187 = sbr.rel (%p185) target = $region16
        $region15: #{tpu_custom_call.1} parent=11 // pred_region
          %s189 = ssub.s32 3072, 3072
          %190 = vsyncadd [#allocation11], %s189
          %s191 = sshll.u32 [#allocation10], 4
          %s192 = int_to_ptr.vmem [resolvable:$true] %s191
          %197 = dma.hbm_to_vmem [thread:$0]  %s1, 3072, %s192, [#allocation11], 192, 192, 12
        $region16: #{tpu_custom_call.1} parent=11 // pred_fallthru
          _
        // Predicated region
        $region17: #{tpu_custom_call.1} parent=11 // pred_check
          %p198 = pneg %p100
        $region18: #{tpu_custom_call.1} parent=11 // pred_check_branch
          %200 = sbr.rel (%p198) target = $region20
        $region19: #{tpu_custom_call.1} parent=11 // pred_region
          %s202 = ssub.s32 1024, 1024
          %203 = vsyncadd [#allocation11], %s202
          %s204 = sshll.u32 [#allocation12], 4
          %s205 = int_to_ptr.vmem [resolvable:$true] %s204
          %210 = dma.hbm_to_vmem [thread:$0]  %s2, 1024, %s205, [#allocation11], 64, 64, 4
        $region20: #{tpu_custom_call.1} parent=11 // pred_fallthru
          _
        // Predicated region
        $region21: #{tpu_custom_call.1} parent=11 // pred_check
          %p211 = pneg %p121
        $region22: #{tpu_custom_call.1} parent=11 // pred_check_branch
          %213 = sbr.rel (%p211) target = $region24
        $region23: #{tpu_custom_call.1} parent=11 // pred_region
          _
        $region24: #{tpu_custom_call.1} parent=11 // pred_fallthru
          _
        // Predicated region
        $region25: #{tpu_custom_call.1} parent=11 // pred_check
          %p214 = pneg %p142
        $region26: #{tpu_custom_call.1} parent=11 // pred_check_branch
          %216 = sbr.rel (%p214) target = $region28
        $region27: #{tpu_custom_call.1} parent=11 // pred_region
          _
        $region28: #{tpu_custom_call.1} parent=11 // pred_fallthru
          _
      $region12: #{tpu_custom_call.1} parent=5 // pred_fallthru
        _
      %p217 = scmp.lt.s32.totalorder %s18, 2
      // Predicated region
      $region29: #{tpu_custom_call.1} parent=5 // pred_check
        %p218 = pneg %p217
      $region30: #{tpu_custom_call.1} parent=5 // pred_check_branch
        %220 = sbr.rel (%p218) target = $region32
      $region31: #{tpu_custom_call.1} parent=5 // pred_region
        // Predicated region
        $region33: #{tpu_custom_call.1} parent=31 // pred_check
          %p221 = pneg %p52
        $region34: #{tpu_custom_call.1} parent=31 // pred_check_branch
          %223 = sbr.rel (%p221) target = $region36
        $region35: #{tpu_custom_call.1} parent=31 // pred_region
          %s224 = sand.u32 %s42, 1
          %s225 = scalar_lea.sflag [#allocation8], %s224
          %s226 = sand.u32 %s42, 1
          %s227 = smul.addr %s226, 8
          %s228 = scalar_lea.vmem [#allocation7], %s227
          %s230 = ssub.s32 128, 128
          %231 = vsyncadd %s225, %s230
          %s232 = sadd.s32 %s26, %s25
          %s233 = smul.addr %s232, 128
          %s234 = scalar_lea.hbm %s0, %s233
          %s236 = sshll.u32 %s228, 4
          %s237 = int_to_ptr.vmem [resolvable:$true] %s236
          %239 = dma.hbm_to_vmem [thread:$0]  %s234, 128, %s237, %s225
        $region36: #{tpu_custom_call.1} parent=31 // pred_fallthru
          _
      $region32: #{tpu_custom_call.1} parent=5 // pred_fallthru
        _
      %p240 = scmp.le.s32.totalorder 1, %s18
      %p241 = scmp.lt.s32.totalorder %s18, 3
      %p242 = pnand %p240, %p241
      %p243 = pneg %p242
      // Predicated region
      $region37: #{tpu_custom_call.1} parent=5 // pred_check
        _
      $region38: #{tpu_custom_call.1} parent=5 // pred_check_branch
        %245 = sbr.rel (%p242) target = $region40
      $region39: #{tpu_custom_call.1} parent=5 // pred_region
        %s246 = ssub.s32 %s18, 1
        %s247 = sand.u32 %s45, 1
        %s248 = scalar_lea.sflag [#allocation8], %s247
        %s249 = sand.u32 %s45, 1
        %s250 = smul.addr %s249, 8
        %s251 = scalar_lea.vmem [#allocation7], %s250
        // Predicated region
        $region41: #{tpu_custom_call.1} parent=39 // pred_check
          %p252 = pneg %p58
        $region42: #{tpu_custom_call.1} parent=39 // pred_check_branch
          %254 = sbr.rel (%p252) target = $region44
        $region43: #{tpu_custom_call.1} parent=39 // pred_region
          %255 = dma.done %s248, 128
        $region44: #{tpu_custom_call.1} parent=39 // pred_fallthru
          _
        // Predicated region
        $region45: #{tpu_custom_call.1} parent=39 // pred_check
          %p256 = pneg %p79
        $region46: #{tpu_custom_call.1} parent=39 // pred_check_branch
          %258 = sbr.rel (%p256) target = $region48
        $region47: #{tpu_custom_call.1} parent=39 // pred_region
          %259 = dma.done [#allocation11], 3072
        $region48: #{tpu_custom_call.1} parent=39 // pred_fallthru
          _
        // Predicated region
        $region49: #{tpu_custom_call.1} parent=39 // pred_check
          %p260 = pneg %p100
        $region50: #{tpu_custom_call.1} parent=39 // pred_check_branch
          %262 = sbr.rel (%p260) target = $region52
        $region51: #{tpu_custom_call.1} parent=39 // pred_region
          %263 = dma.done [#allocation11], 1024
        $region52: #{tpu_custom_call.1} parent=39 // pred_fallthru
          _
        %s264 = sand.u32 %s45, 1
        %s265 = scalar_lea.sflag [#allocation8], %s264
        %s266 = sand.u32 %s45, 1
        %s267 = smul.addr %s266, 8
        %s268 = scalar_lea.vmem [#allocation7], %s267
        %p269 = pneg %p58
        %p270 = pneg %p55
        %p271 = pneg %p79
        %p272 = pneg %p76
        %p273 = pneg %p100
        %p274 = pneg %p97
        %p275 = pneg %p121
        %p276 = pneg %p118
        %p277 = pneg %p142
        %p278 = pneg %p139
        %p279 = pneg %p170
        %p280 = pneg %p167
        %s281 = sand.u32 %s157, 1
        %s282 = scalar_lea.sflag [#allocation9], %s281
        %s283 = sand.u32 %s157, 1
        %s284 = smul.addr %s283, 8
        %s285 = scalar_lea.vmem [#allocation13], %s284
        %s287 = smul.u32 %s28, 8
        %v288 = vld [vmem:[%s251] sm:$0xff]
        %v289 = vpack.c.bf16 %v288, %v288
        %v290 = vld [vmem:[#allocation10] sm:$0xff]
        %v291 = vld [vmem:[#allocation10 + $0x8] sm:$0xf]
        %v292 = vld [vmem:[#allocation10 + $0xc] sm:$0xff]
        %v293 = vld [vmem:[#allocation10 + $0x14] sm:$0xf]
        %v294 = vld [vmem:[#allocation10 + $0x18] sm:$0xff]
        %v295 = vld [vmem:[#allocation10 + $0x20] sm:$0xf]
        %v296 = vld [vmem:[#allocation10 + $0x24] sm:$0xff]
        %v297 = vld [vmem:[#allocation10 + $0x2c] sm:$0xf]
        %v298 = vld [vmem:[#allocation10 + $0x30] sm:$0xff]
        %v299 = vld [vmem:[#allocation10 + $0x38] sm:$0xf]
        %v300 = vld [vmem:[#allocation10 + $0x3c] sm:$0xff]
        %v301 = vld [vmem:[#allocation10 + $0x44] sm:$0xf]
        %v302 = vld [vmem:[#allocation10 + $0x48] sm:$0xff]
        %v303 = vld [vmem:[#allocation10 + $0x50] sm:$0xf]
        %v304 = vld [vmem:[#allocation10 + $0x54] sm:$0xff]
        %v305 = vld [vmem:[#allocation10 + $0x5c] sm:$0xf]
        %v306 = vld [vmem:[#allocation10 + $0x60] sm:$0xff]
        %v307 = vld [vmem:[#allocation10 + $0x68] sm:$0xf]
        %v308 = vld [vmem:[#allocation10 + $0x6c] sm:$0xff]
        %v309 = vld [vmem:[#allocation10 + $0x74] sm:$0xf]
        %v310 = vld [vmem:[#allocation10 + $0x78] sm:$0xff]
        %v311 = vld [vmem:[#allocation10 + $0x80] sm:$0xf]
        %v312 = vld [vmem:[#allocation10 + $0x84] sm:$0xff]
        %v313 = vld [vmem:[#allocation10 + $0x8c] sm:$0xf]
        %v314 = vld [vmem:[#allocation10 + $0x90] sm:$0xff]
        %v315 = vld [vmem:[#allocation10 + $0x98] sm:$0xf]
        %v316 = vld [vmem:[#allocation10 + $0x9c] sm:$0xff]
        %v317 = vld [vmem:[#allocation10 + $0xa4] sm:$0xf]
        %v318 = vld [vmem:[#allocation10 + $0xa8] sm:$0xff]
        %v319 = vld [vmem:[#allocation10 + $0xb0] sm:$0xf]
        %v320 = vld [vmem:[#allocation10 + $0xb4] sm:$0xff]
        %v321 = vld [vmem:[#allocation10 + $0xbc] sm:$0xf]
        %v354 = vunpack.c.l.b16 %v290
        %v355 = vunpack.c.h.b16 %v290
        %v356 = vunpack.c.l.b16 %v291
        %v357 = vunpack.c.l.b16 %v292
        %v358 = vunpack.c.h.b16 %v292
        %v359 = vunpack.c.l.b16 %v293
        %v360 = vunpack.c.l.b16 %v294
        %v361 = vunpack.c.h.b16 %v294
        %v362 = vunpack.c.l.b16 %v295
        %v363 = vunpack.c.l.b16 %v296
        %v364 = vunpack.c.h.b16 %v296
        %v365 = vunpack.c.l.b16 %v297
        %v366 = vunpack.c.l.b16 %v298
        %v367 = vunpack.c.h.b16 %v298
        %v368 = vunpack.c.l.b16 %v299
        %v369 = vunpack.c.l.b16 %v300
        %v370 = vunpack.c.h.b16 %v300
        %v371 = vunpack.c.l.b16 %v301
        %v372 = vunpack.c.l.b16 %v302
        %v373 = vunpack.c.h.b16 %v302
        %v374 = vunpack.c.l.b16 %v303
        %v375 = vunpack.c.l.b16 %v304
        %v376 = vunpack.c.h.b16 %v304
        %v377 = vunpack.c.l.b16 %v305
        %v378 = vunpack.c.l.b16 %v306
        %v379 = vunpack.c.h.b16 %v306
        %v380 = vunpack.c.l.b16 %v307
        %v381 = vunpack.c.l.b16 %v308
        %v382 = vunpack.c.h.b16 %v308
        %v383 = vunpack.c.l.b16 %v309
        %v384 = vunpack.c.l.b16 %v310
        %v385 = vunpack.c.h.b16 %v310
        %v386 = vunpack.c.l.b16 %v311
        %v387 = vunpack.c.l.b16 %v312
        %v388 = vunpack.c.h.b16 %v312
        %v389 = vunpack.c.l.b16 %v313
        %v390 = vunpack.c.l.b16 %v314
        %v391 = vunpack.c.h.b16 %v314
        %v392 = vunpack.c.l.b16 %v315
        %v393 = vunpack.c.l.b16 %v316
        %v394 = vunpack.c.h.b16 %v316
        %v395 = vunpack.c.l.b16 %v317
        %v396 = vunpack.c.l.b16 %v318
        %v397 = vunpack.c.h.b16 %v318
        %v398 = vunpack.c.l.b16 %v319
        %v399 = vunpack.c.l.b16 %v320
        %v400 = vunpack.c.h.b16 %v320
        %v401 = vunpack.c.l.b16 %v321
        %v402 = vpack.c.b16 %v357, %v354
        %v403 = vpack.c.b16 %v358, %v355
        %v404 = vpack.c.b16 %v359, %v356
        %v405 = vpack.c.b16 %v363, %v360
        %v406 = vpack.c.b16 %v364, %v361
        %v407 = vpack.c.b16 %v365, %v362
        %v408 = vpack.c.b16 %v369, %v366
        %v409 = vpack.c.b16 %v370, %v367
        %v410 = vpack.c.b16 %v371, %v368
        %v411 = vpack.c.b16 %v375, %v372
        %v412 = vpack.c.b16 %v376, %v373
        %v413 = vpack.c.b16 %v377, %v374
        %v414 = vpack.c.b16 %v381, %v378
        %v415 = vpack.c.b16 %v382, %v379
        %v416 = vpack.c.b16 %v383, %v380
        %v417 = vpack.c.b16 %v387, %v384
        %v418 = vpack.c.b16 %v388, %v385
        %v419 = vpack.c.b16 %v389, %v386
        %v420 = vpack.c.b16 %v393, %v390
        %v421 = vpack.c.b16 %v394, %v391
        %v422 = vpack.c.b16 %v395, %v392
        %v423 = vpack.c.b16 %v399, %v396
        %v424 = vpack.c.b16 %v400, %v397
        %v425 = vpack.c.b16 %v401, %v398
        %450 = vmatprep.subr.bf16.mxu0 %v424
        %451 = vmatpush1.bf16.msra.mxu0 %v423
        %452 = vmatprep.subr.bf16.mxu0 %v421
        %453 = vmatpush1.bf16.msra.mxu0 %v420
        %454 = vmatprep.subr.bf16.mxu0 %v418
        %455 = vmatpush1.bf16.msra.mxu0 %v417
        %456 = vmatprep.subr.bf16.mxu0 %v415
        %457 = vmatpush1.bf16.msra.mxu0 %v414
        %458 = vmatprep.subr.bf16.mxu0 %v412
        %459 = vmatpush1.bf16.msra.mxu0 %v411
        %460 = vmatprep.subr.bf16.mxu0 %v409
        %461 = vmatpush1.bf16.msra.mxu0 %v408
        %462 = vmatprep.subr.bf16.mxu0 %v406
        %463 = vmatpush1.bf16.msra.mxu0 %v405
        %464 = vmatprep.subr.bf16.mxu0 %v403
        %465 = vmatpush1.bf16.msra.mxu0 %v402
        %466 = vmatprep.subr.bf16.mxu0 0
        %467 = vmatpush2.bf16.msra.mxu0 0
        %468 = vmatprep.subr.bf16.mxu0 0
        %469 = vmatpush2.bf16.msra.mxu0 0
        %470 = vmatprep.subr.bf16.mxu0 0
        %471 = vmatpush2.bf16.msra.mxu0 0
        %472 = vmatprep.subr.bf16.mxu0 0
        %473 = vmatpush2.bf16.msra.mxu0 0
        %474 = vmatprep.subr.bf16.mxu0 0
        %475 = vmatpush2.bf16.msra.mxu0 0
        %476 = vmatprep.subr.bf16.mxu0 0
        %477 = vmatpush2.bf16.msra.mxu0 0
        %478 = vmatprep.subr.bf16.mxu0 0
        %479 = vmatpush2.bf16.msra.mxu0 0
        %480 = vmatprep.subr.bf16.mxu0 0
        %481 = vmatpush2.bf16.msra.mxu0 0
        %482 = vmatprep.mubr.bf16.mxu0 0
        %483 = vmatmul.mubr.bf16.gmra.mxu0 %v289
        %v484 = vpop.f32.mrf.mxu0
        %v485 = vadd.f32 0.0, %v484
        %v486 = vpop.f32.mrf.mxu0
        %v487 = vadd.f32 0.0, %v486
        %v488 = vpop.f32.mrf.mxu0
        %v489 = vpop.f32.mrf.mxu0
        %490 = vdwg.mxu0
        %491 = vmatprep.subr.bf16.mxu0 0
        %492 = vmatpush1.bf16.msra.mxu0 %v425
        %493 = vmatprep.subr.bf16.mxu0 0
        %494 = vmatpush1.bf16.msra.mxu0 %v422
        %495 = vmatprep.subr.bf16.mxu0 0
        %496 = vmatpush1.bf16.msra.mxu0 %v419
        %497 = vmatprep.subr.bf16.mxu0 0
        %498 = vmatpush1.bf16.msra.mxu0 %v416
        %499 = vmatprep.subr.bf16.mxu0 0
        %500 = vmatpush1.bf16.msra.mxu0 %v413
        %501 = vmatprep.subr.bf16.mxu0 0
        %502 = vmatpush1.bf16.msra.mxu0 %v410
        %503 = vmatprep.subr.bf16.mxu0 0
        %504 = vmatpush1.bf16.msra.mxu0 %v407
        %505 = vmatprep.subr.bf16.mxu0 0
        %506 = vmatpush1.bf16.msra.mxu0 %v404
        %507 = vmatprep.subr.bf16.mxu0 0
        %508 = vmatpush2.bf16.msra.mxu0 0
        %509 = vmatprep.subr.bf16.mxu0 0
        %510 = vmatpush2.bf16.msra.mxu0 0
        %511 = vmatprep.subr.bf16.mxu0 0
        %512 = vmatpush2.bf16.msra.mxu0 0
        %513 = vmatprep.subr.bf16.mxu0 0
        %514 = vmatpush2.bf16.msra.mxu0 0
        %515 = vmatprep.subr.bf16.mxu0 0
        %516 = vmatpush2.bf16.msra.mxu0 0
        %517 = vmatprep.subr.bf16.mxu0 0
        %518 = vmatpush2.bf16.msra.mxu0 0
        %519 = vmatprep.subr.bf16.mxu0 0
        %520 = vmatpush2.bf16.msra.mxu0 0
        %521 = vmatprep.subr.bf16.mxu0 0
        %522 = vmatpush2.bf16.msra.mxu0 0
        %523 = vmatprep.mubr.bf16.mxu0 0
        %524 = vmatmul.mubr.bf16.gmra.mxu0 %v289
        %v525 = vpop.f32.mrf.mxu0
        %v526 = vadd.f32 0.0, %v525
        %v527 = vpop.f32.mrf.mxu0
        %v528 = vpop.f32.mrf.mxu0
        %v529 = vpop.f32.mrf.mxu0
        %530 = vdwg.mxu0
        %v531 = vpack.c.bf16 %v487, %v487
        %533 = vrot.lane.b32.xlu0 %v531, 64
        %v534 = vpop.permute.xlu0 %533
        %v536 = vunpack.c.l.s4 1983009808
        %v537 = vunpack.c.0.s8 %v536
        %v538 = vlaneseq
        %v539 = vshrl.u32 %v538, 7
        %v540 = vsub.s32 %v537, %v539
        %v541 = vrot.slane %v531, %v540
        %v542 = vcombine.high %v541, 0
        %v544 = vunpack.c.l.s4 1934713408
        %v545 = vunpack.c.0.s8 %v544
        %v546 = vlaneseq
        %v547 = vshrl.u32 %v546, 7
        %v548 = vsub.s32 %v545, %v547
        %v549 = vrot.slane %v541, %v548
        %v551 = vunpack.c.l.s4 1934713408
        %v552 = vunpack.c.0.s8 %v551
        %v553 = vlaneseq
        %v554 = vshrl.u32 %v553, 7
        %v555 = vsub.s32 %v552, %v554
        %v556 = vrot.slane %v542, %v555
        %v557 = vcombine.high %v549, 0
        %v558 = vcombine.high %v556, 0
        %v561 = vunpack.c.l.s4 1983009808
        %v562 = vunpack.c.0.s8 %v561
        %v563 = vlaneseq
        %v564 = vshrl.u32 %v563, 7
        %v565 = vsub.s32 %v562, %v564
        %v566 = vrot.slane %v534, %v565
        %v567 = vcombine.high %v566, 0
        %v569 = vunpack.c.l.s4 1934713408
        %v570 = vunpack.c.0.s8 %v569
        %v571 = vlaneseq
        %v572 = vshrl.u32 %v571, 7
        %v573 = vsub.s32 %v570, %v572
        %v574 = vrot.slane %v566, %v573
        %v576 = vunpack.c.l.s4 1934713408
        %v577 = vunpack.c.0.s8 %v576
        %v578 = vlaneseq
        %v579 = vshrl.u32 %v578, 7
        %v580 = vsub.s32 %v577, %v579
        %v581 = vrot.slane %v567, %v580
        %v582 = vcombine.high %v574, 0
        %v583 = vcombine.high %v581, 0
        %v586 = vpack.i.b16 %v574, %v549
        %v588 = vshrl.u32 %v549, 16
        %v589 = vshrl.u32 %v574, 16
        %v590 = vpack.i.b16 %v589, %v588
        %v594 = vpack.i.b16 %v582, %v557
        %v596 = vshrl.u32 %v557, 16
        %v597 = vshrl.u32 %v582, 16
        %v598 = vpack.i.b16 %v597, %v596
        %v602 = vpack.i.b16 %v581, %v556
        %v604 = vshrl.u32 %v556, 16
        %v605 = vshrl.u32 %v581, 16
        %v606 = vpack.i.b16 %v605, %v604
        %v610 = vpack.i.b16 %v583, %v558
        %v612 = vshrl.u32 %v558, 16
        %v613 = vshrl.u32 %v583, 16
        %v614 = vpack.i.b16 %v613, %v612
        %v616 = vpack.c.bf16 %v526, %v526
        %618 = vrot.lane.b32.xlu0 %v616, 64
        %v619 = vpop.permute.xlu0 %618
        %v621 = vunpack.c.l.s4 1983009808
        %v622 = vunpack.c.0.s8 %v621
        %v623 = vlaneseq
        %v624 = vshrl.u32 %v623, 7
        %v625 = vsub.s32 %v622, %v624
        %v626 = vrot.slane %v616, %v625
        %v627 = vcombine.high %v626, 0
        %v629 = vunpack.c.l.s4 1934713408
        %v630 = vunpack.c.0.s8 %v629
        %v631 = vlaneseq
        %v632 = vshrl.u32 %v631, 7
        %v633 = vsub.s32 %v630, %v632
        %v634 = vrot.slane %v626, %v633
        %v636 = vunpack.c.l.s4 1934713408
        %v637 = vunpack.c.0.s8 %v636
        %v638 = vlaneseq
        %v639 = vshrl.u32 %v638, 7
        %v640 = vsub.s32 %v637, %v639
        %v641 = vrot.slane %v627, %v640
        %v642 = vcombine.high %v634, 0
        %v643 = vcombine.high %v641, 0
        %v646 = vunpack.c.l.s4 1983009808
        %v647 = vunpack.c.0.s8 %v646
        %v648 = vlaneseq
        %v649 = vshrl.u32 %v648, 7
        %v650 = vsub.s32 %v647, %v649
        %v651 = vrot.slane %v619, %v650
        %v652 = vcombine.high %v651, 0
        %v654 = vunpack.c.l.s4 1934713408
        %v655 = vunpack.c.0.s8 %v654
        %v656 = vlaneseq
        %v657 = vshrl.u32 %v656, 7
        %v658 = vsub.s32 %v655, %v657
        %v659 = vrot.slane %v651, %v658
        %v661 = vunpack.c.l.s4 1934713408
        %v662 = vunpack.c.0.s8 %v661
        %v663 = vlaneseq
        %v664 = vshrl.u32 %v663, 7
        %v665 = vsub.s32 %v662, %v664
        %v666 = vrot.slane %v652, %v665
        %v667 = vcombine.high %v659, 0
        %v668 = vcombine.high %v666, 0
        %v671 = vpack.i.b16 %v659, %v634
        %v673 = vshrl.u32 %v634, 16
        %v674 = vshrl.u32 %v659, 16
        %v675 = vpack.i.b16 %v674, %v673
        %v679 = vpack.i.b16 %v667, %v642
        %v681 = vshrl.u32 %v642, 16
        %v682 = vshrl.u32 %v667, 16
        %v683 = vpack.i.b16 %v682, %v681
        %v687 = vpack.i.b16 %v666, %v641
        %v689 = vshrl.u32 %v641, 16
        %v690 = vshrl.u32 %v666, 16
        %v691 = vpack.i.b16 %v690, %v689
        %v695 = vpack.i.b16 %v668, %v643
        %v697 = vshrl.u32 %v643, 16
        %v698 = vshrl.u32 %v668, 16
        %v699 = vpack.i.b16 %v698, %v697
        %v701 = vcombine.low %v586, %v602
        %v703 = vunpack.c.l.s4 1983009808
        %v704 = vunpack.c.0.s8 %v703
        %v705 = vlaneseq
        %v706 = vshrl.u32 %v705, 7
        %v707 = vsub.s32 %v704, %v706
        %v708 = vrot.slane %v701, %v707
        %v709 = vcombine.low %v594, %v610
        %v711 = vunpack.c.l.s4 1983009808
        %v712 = vunpack.c.0.s8 %v711
        %v713 = vlaneseq
        %v714 = vshrl.u32 %v713, 7
        %v715 = vsub.s32 %v712, %v714
        %v716 = vrot.slane %v709, %v715
        %v717 = vcombine.low %v708, %v716
        %v719 = vunpack.c.l.s4 1934713408
        %v720 = vunpack.c.0.s8 %v719
        %v721 = vlaneseq
        %v722 = vshrl.u32 %v721, 7
        %v723 = vsub.s32 %v720, %v722
        %v724 = vrot.slane %v717, %v723
        %v725 = vcombine.low %v590, %v606
        %v727 = vunpack.c.l.s4 1983009808
        %v728 = vunpack.c.0.s8 %v727
        %v729 = vlaneseq
        %v730 = vshrl.u32 %v729, 7
        %v731 = vsub.s32 %v728, %v730
        %v732 = vrot.slane %v725, %v731
        %v733 = vcombine.low %v598, %v614
        %v735 = vunpack.c.l.s4 1983009808
        %v736 = vunpack.c.0.s8 %v735
        %v737 = vlaneseq
        %v738 = vshrl.u32 %v737, 7
        %v739 = vsub.s32 %v736, %v738
        %v740 = vrot.slane %v733, %v739
        %v741 = vcombine.low %v732, %v740
        %v743 = vunpack.c.l.s4 1934713408
        %v744 = vunpack.c.0.s8 %v743
        %v745 = vlaneseq
        %v746 = vshrl.u32 %v745, 7
        %v747 = vsub.s32 %v744, %v746
        %v748 = vrot.slane %v741, %v747
        %v751 = vpack.i.b16 %v748, %v724
        %v753 = vshrl.u32 %v724, 16
        %v754 = vshrl.u32 %v748, 16
        %v755 = vpack.i.b16 %v754, %v753
        %s757 = smul.u32 %s28, 2
        %s758 = smul.addr %s757, 4
        %s759 = scalar_lea.vmem [#allocation2], %s758
        %vm760 = vcmask 519168
        %761 = vst.msk [vmem:[%s759] sm:$0xf] %vm760, %v751
        %762 = vst.msk [vmem:[%s759 + $0x4] sm:$0xf] %vm760, %v755
        %v763 = vcombine.low %v671, %v687
        %v765 = vunpack.c.l.s4 1983009808
        %v766 = vunpack.c.0.s8 %v765
        %v767 = vlaneseq
        %v768 = vshrl.u32 %v767, 7
        %v769 = vsub.s32 %v766, %v768
        %v770 = vrot.slane %v763, %v769
        %v771 = vcombine.low %v679, %v695
        %v773 = vunpack.c.l.s4 1983009808
        %v774 = vunpack.c.0.s8 %v773
        %v775 = vlaneseq
        %v776 = vshrl.u32 %v775, 7
        %v777 = vsub.s32 %v774, %v776
        %v778 = vrot.slane %v771, %v777
        %v779 = vcombine.low %v770, %v778
        %v781 = vunpack.c.l.s4 1934713408
        %v782 = vunpack.c.0.s8 %v781
        %v783 = vlaneseq
        %v784 = vshrl.u32 %v783, 7
        %v785 = vsub.s32 %v782, %v784
        %v786 = vrot.slane %v779, %v785
        %v787 = vcombine.low %v675, %v691
        %v789 = vunpack.c.l.s4 1983009808
        %v790 = vunpack.c.0.s8 %v789
        %v791 = vlaneseq
        %v792 = vshrl.u32 %v791, 7
        %v793 = vsub.s32 %v790, %v792
        %v794 = vrot.slane %v787, %v793
        %v795 = vcombine.low %v683, %v699
        %v797 = vunpack.c.l.s4 1983009808
        %v798 = vunpack.c.0.s8 %v797
        %v799 = vlaneseq
        %v800 = vshrl.u32 %v799, 7
        %v801 = vsub.s32 %v798, %v800
        %v802 = vrot.slane %v795, %v801
        %v803 = vcombine.low %v794, %v802
        %v805 = vunpack.c.l.s4 1934713408
        %v806 = vunpack.c.0.s8 %v805
        %v807 = vlaneseq
        %v808 = vshrl.u32 %v807, 7
        %v809 = vsub.s32 %v806, %v808
        %v810 = vrot.slane %v803, %v809
        %v813 = vpack.i.b16 %v810, %v786
        %v815 = vshrl.u32 %v786, 16
        %v816 = vshrl.u32 %v810, 16
        %v817 = vpack.i.b16 %v816, %v815
        %s819 = smul.addr %s757, 4
        %s820 = scalar_lea.vmem [#allocation3], %s819
        %821 = vst.msk [vmem:[%s820] sm:$0xf] %vm760, %v813
        %822 = vst.msk [vmem:[%s820 + $0x4] sm:$0xf] %vm760, %v817
        %v823 = vmul.f32 %v485, 0.125
        %v824 = vpack.c.bf16 %v823, %v823
        %826 = vrot.lane.b32.xlu0 %v824, 64
        %v827 = vpop.permute.xlu0 %826
        %v829 = vunpack.c.l.s4 1983009808
        %v830 = vunpack.c.0.s8 %v829
        %v831 = vlaneseq
        %v832 = vshrl.u32 %v831, 7
        %v833 = vsub.s32 %v830, %v832
        %v834 = vrot.slane %v824, %v833
        %v835 = vcombine.high %v834, 0
        %v837 = vunpack.c.l.s4 1934713408
        %v838 = vunpack.c.0.s8 %v837
        %v839 = vlaneseq
        %v840 = vshrl.u32 %v839, 7
        %v841 = vsub.s32 %v838, %v840
        %v842 = vrot.slane %v834, %v841
        %v844 = vunpack.c.l.s4 1934713408
        %v845 = vunpack.c.0.s8 %v844
        %v846 = vlaneseq
        %v847 = vshrl.u32 %v846, 7
        %v848 = vsub.s32 %v845, %v847
        %v849 = vrot.slane %v835, %v848
        %v850 = vcombine.high %v842, 0
        %v851 = vcombine.high %v849, 0
        %v854 = vunpack.c.l.s4 1983009808
        %v855 = vunpack.c.0.s8 %v854
        %v856 = vlaneseq
        %v857 = vshrl.u32 %v856, 7
        %v858 = vsub.s32 %v855, %v857
        %v859 = vrot.slane %v827, %v858
        %v860 = vcombine.high %v859, 0
        %v862 = vunpack.c.l.s4 1934713408
        %v863 = vunpack.c.0.s8 %v862
        %v864 = vlaneseq
        %v865 = vshrl.u32 %v864, 7
        %v866 = vsub.s32 %v863, %v865
        %v867 = vrot.slane %v859, %v866
        %v869 = vunpack.c.l.s4 1934713408
        %v870 = vunpack.c.0.s8 %v869
        %v871 = vlaneseq
        %v872 = vshrl.u32 %v871, 7
        %v873 = vsub.s32 %v870, %v872
        %v874 = vrot.slane %v860, %v873
        %v875 = vcombine.high %v867, 0
        %v876 = vcombine.high %v874, 0
        %v879 = vpack.i.b16 %v867, %v842
        %v881 = vshrl.u32 %v842, 16
        %v882 = vshrl.u32 %v867, 16
        %v883 = vpack.i.b16 %v882, %v881
        %v887 = vpack.i.b16 %v875, %v850
        %v889 = vshrl.u32 %v850, 16
        %v890 = vshrl.u32 %v875, 16
        %v891 = vpack.i.b16 %v890, %v889
        %v895 = vpack.i.b16 %v874, %v849
        %v897 = vshrl.u32 %v849, 16
        %v898 = vshrl.u32 %v874, 16
        %v899 = vpack.i.b16 %v898, %v897
        %v903 = vpack.i.b16 %v876, %v851
        %v905 = vshrl.u32 %v851, 16
        %v906 = vshrl.u32 %v876, 16
        %v907 = vpack.i.b16 %v906, %v905
        %v909 = vcombine.low %v879, %v895
        %v911 = vunpack.c.l.s4 1983009808
        %v912 = vunpack.c.0.s8 %v911
        %v913 = vlaneseq
        %v914 = vshrl.u32 %v913, 7
        %v915 = vsub.s32 %v912, %v914
        %v916 = vrot.slane %v909, %v915
        %v917 = vcombine.low %v887, %v903
        %v919 = vunpack.c.l.s4 1983009808
        %v920 = vunpack.c.0.s8 %v919
        %v921 = vlaneseq
        %v922 = vshrl.u32 %v921, 7
        %v923 = vsub.s32 %v920, %v922
        %v924 = vrot.slane %v917, %v923
        %v925 = vcombine.low %v916, %v924
        %v927 = vunpack.c.l.s4 1934713408
        %v928 = vunpack.c.0.s8 %v927
        %v929 = vlaneseq
        %v930 = vshrl.u32 %v929, 7
        %v931 = vsub.s32 %v928, %v930
        %v932 = vrot.slane %v925, %v931
        %v933 = vcombine.low %v883, %v899
        %v935 = vunpack.c.l.s4 1983009808
        %v936 = vunpack.c.0.s8 %v935
        %v937 = vlaneseq
        %v938 = vshrl.u32 %v937, 7
        %v939 = vsub.s32 %v936, %v938
        %v940 = vrot.slane %v933, %v939
        %v941 = vcombine.low %v891, %v907
        %v943 = vunpack.c.l.s4 1983009808
        %v944 = vunpack.c.0.s8 %v943
        %v945 = vlaneseq
        %v946 = vshrl.u32 %v945, 7
        %v947 = vsub.s32 %v944, %v946
        %v948 = vrot.slane %v941, %v947
        %v949 = vcombine.low %v940, %v948
        %v951 = vunpack.c.l.s4 1934713408
        %v952 = vunpack.c.0.s8 %v951
        %v953 = vlaneseq
        %v954 = vshrl.u32 %v953, 7
        %v955 = vsub.s32 %v952, %v954
        %v956 = vrot.slane %v949, %v955
        %v959 = vpack.i.b16 %v956, %v932
        %v960 = vshrl.u32 %v932, 16
        %v961 = vshrl.u32 %v956, 16
        %v962 = vpack.i.b16 %v961, %v960
        %vm963 = vcmask 7168
        %964 = vst.msk [vmem:[#allocation4] sm:$0xff] %vm963, -1e+30
        %965 = vst.msk [vmem:[#allocation4 + $0x8] sm:$0xff] %vm963, -1e+30
        %966 = vst.msk [vmem:[#allocation5] sm:$0xff] %vm963, 0.0
        %967 = vst.msk [vmem:[#allocation5 + $0x8] sm:$0xff] %vm963, 0.0
        %vm968 = vcmask 523264
        %969 = vst.msk [vmem:[#allocation6] sm:$0xff] %vm968, 0.0
        %970 = vst.msk [vmem:[#allocation6 + $0x8] sm:$0xff] %vm968, 0.0
        %s971 = sadd.s32 %s28, 1
        // While loop
        $region53: #{tpu_custom_call.1} parent=39 // loop_pre_header
          _
        $region54: #{tpu_custom_call.1} parent=39 // loop_header
          %s973 = sphi 0, %s975
          %p974 = scmp.ge.s32.totalorder %s973, %s971
        $region55: #{tpu_custom_call.1} parent=39 // loop_header_branch
          %977 = sbr.rel (%p974) target = $region59
        $region56: #{tpu_custom_call.1} parent=39 // loop_body
          %s978 = smul.u32 %s973, 8
          %s979 = smul.u32 %s973, 2
          %s980 = smul.addr %s979, 4
          %s981 = scalar_lea.vmem [#allocation2], %s980
          %v982 = vld [vmem:[%s981] sm:$0xf]
          %v983 = vld [vmem:[%s981 + $0x4] sm:$0xf]
          %s984 = smul.addr %s979, 4
          %s985 = scalar_lea.vmem [#allocation3], %s984
          %v986 = vld [vmem:[%s985] sm:$0xf]
          %v987 = vld [vmem:[%s985 + $0x4] sm:$0xf]
          %v989 = vsel %vm968, %v959, 0
          %v992 = vsel %vm968, %v982, 0
          %994 = vmatprep.subr.bf16.mxu0 0
          %995 = vmatpush1.bf16.xpose.msra.mxu0 0
          %996 = vmatprep.subr.bf16.mxu0 0
          %997 = vmatpush1.bf16.xpose.msra.mxu0 0
          %998 = vmatprep.subr.bf16.mxu0 0
          %999 = vmatpush1.bf16.xpose.msra.mxu0 0
          %1000 = vmatprep.subr.bf16.mxu0 0
          %1001 = vmatpush1.bf16.xpose.msra.mxu0 0
          %1002 = vmatprep.subr.bf16.mxu0 0
          %1003 = vmatpush1.bf16.xpose.msra.mxu0 0
          %1004 = vmatprep.subr.bf16.mxu0 0
          %1005 = vmatpush1.bf16.xpose.msra.mxu0 0
          %1006 = vmatprep.subr.bf16.mxu0 0
          %1007 = vmatpush1.bf16.xpose.msra.mxu0 0
          %1008 = vmatprep.subr.bf16.mxu0 0
          %1009 = vmatpush1.bf16.xpose.msra.mxu0 %v992
          %1010 = vmatprep.subr.bf16.mxu0 0
          %1011 = vmatpush2.bf16.xpose.msra.mxu0 0
          %1012 = vmatprep.subr.bf16.mxu0 0
          %1013 = vmatpush2.bf16.xpose.msra.mxu0 0
          %1014 = vmatprep.subr.bf16.mxu0 0
          %1015 = vmatpush2.bf16.xpose.msra.mxu0 0
          %1016 = vmatprep.subr.bf16.mxu0 0
          %1017 = vmatpush2.bf16.xpose.msra.mxu0 0
          %1018 = vmatprep.subr.bf16.mxu0 0
          %1019 = vmatpush2.bf16.xpose.msra.mxu0 0
          %1020 = vmatprep.subr.bf16.mxu0 0
          %1021 = vmatpush2.bf16.xpose.msra.mxu0 0
          %1022 = vmatprep.subr.bf16.mxu0 0
          %1023 = vmatpush2.bf16.xpose.msra.mxu0 0
          %1024 = vmatprep.subr.bf16.mxu0 0
          %1025 = vmatpush2.bf16.xpose.msra.mxu0 0
          %1026 = vmatprep.mubr.bf16.mxu0 0
          %1027 = vmatmul.mubr.bf16.gmra.mxu0 %v989
          %v1028 = vpop.f32.mrf.mxu0
          %v1029 = vadd.f32 0.0, %v1028
          %v1030 = vpop.f32.mrf.mxu0
          %v1031 = vpop.f32.mrf.mxu0
          %v1032 = vpop.f32.mrf.mxu0
          %1033 = vdwg.mxu0
          %v1035 = vsel %vm968, %v962, 0
          %v1038 = vsel %vm968, %v983, 0
          %1040 = vmatprep.subr.bf16.mxu0 0
          %1041 = vmatpush1.bf16.xpose.msra.mxu0 0
          %1042 = vmatprep.subr.bf16.mxu0 0
          %1043 = vmatpush1.bf16.xpose.msra.mxu0 0
          %1044 = vmatprep.subr.bf16.mxu0 0
          %1045 = vmatpush1.bf16.xpose.msra.mxu0 0
          %1046 = vmatprep.subr.bf16.mxu0 0
          %1047 = vmatpush1.bf16.xpose.msra.mxu0 0
          %1048 = vmatprep.subr.bf16.mxu0 0
          %1049 = vmatpush1.bf16.xpose.msra.mxu0 0
          %1050 = vmatprep.subr.bf16.mxu0 0
          %1051 = vmatpush1.bf16.xpose.msra.mxu0 0
          %1052 = vmatprep.subr.bf16.mxu0 0
          %1053 = vmatpush1.bf16.xpose.msra.mxu0 0
          %1054 = vmatprep.subr.bf16.mxu0 0
          %1055 = vmatpush1.bf16.xpose.msra.mxu0 %v1038
          %1056 = vmatprep.subr.bf16.mxu0 0
          %1057 = vmatpush2.bf16.xpose.msra.mxu0 0
          %1058 = vmatprep.subr.bf16.mxu0 0
          %1059 = vmatpush2.bf16.xpose.msra.mxu0 0
          %1060 = vmatprep.subr.bf16.mxu0 0
          %1061 = vmatpush2.bf16.xpose.msra.mxu0 0
          %1062 = vmatprep.subr.bf16.mxu0 0
          %1063 = vmatpush2.bf16.xpose.msra.mxu0 0
          %1064 = vmatprep.subr.bf16.mxu0 0
          %1065 = vmatpush2.bf16.xpose.msra.mxu0 0
          %1066 = vmatprep.subr.bf16.mxu0 0
          %1067 = vmatpush2.bf16.xpose.msra.mxu0 0
          %1068 = vmatprep.subr.bf16.mxu0 0
          %1069 = vmatpush2.bf16.xpose.msra.mxu0 0
          %1070 = vmatprep.subr.bf16.mxu0 0
          %1071 = vmatpush2.bf16.xpose.msra.mxu0 0
          %1072 = vmatprep.mubr.bf16.mxu0 0
          %1073 = vmatmul.mubr.bf16.gmra.mxu0 %v1035
          %v1074 = vpop.f32.mrf.mxu0
          %v1075 = vadd.f32 0.0, %v1074
          %v1076 = vpop.f32.mrf.mxu0
          %v1077 = vpop.f32.mrf.mxu0
          %v1078 = vpop.f32.mrf.mxu0
          %1079 = vdwg.mxu0
          %v1080 = vlaneseq
          %v1081 = vshrl.u32 %v1080, 7
          %v1082 = vstv %s287
          %v1083 = vadd.s32 %v1081, %v1082
          %v1084 = vlaneseq
          %v1085 = vand.u32 %v1084, 127
          %v1086 = vstv %s978
          %v1087 = vadd.s32 %v1085, %v1086
          %vm1088 = vcmp.gt.s32.totalorder %v1087, %v1083
          %v1089 = vsel %vm1088, 1, 0
          %vm1090 = vcmp.eq.s32.totalorder %v1089, 1
          %v1091 = vsel %vm1090, -10000000.0, %v1029
          %v1092 = vsel %vm1090, -10000000.0, %v1075
          %v1093 = vld [vmem:[#allocation4] sm:$0xff]
          %v1094 = vld [vmem:[#allocation4 + $0x8] sm:$0xff]
          %vm1095 = vcmask 64512
          %v1096 = vsel %vm1095, %v1091, -inf
          %1097 = vmax.xlane.f32.xlu0 %v1096
          %v1098 = vpop.xlane.xlu0 %1097
          %v1099 = vsel %vm1095, %v1092, -inf
          %1100 = vmax.xlane.f32.xlu0 %v1099
          %v1101 = vpop.xlane.xlu0 %1100
          %v1102 = vmax.f32 %v1093, %v1098
          %v1103 = vmax.f32 %v1094, %v1101
          %v1104 = vsub.f32 %v1093, %v1102
          %v1105 = vsub.f32 %v1094, %v1103
          %v1106 = vmul.f32 %v1104, 1.442695
          %v1107 = vpow.pop %v1106
          %v1108 = vmul.f32 %v1105, 1.442695
          %v1109 = vpow.pop %v1108
          %1111 = vset.pattern.permute.xlu0 0
          %1112 = vperm.xlu0 %1111, %v1102
          %v1113 = vpop.permute.xlu0 %1112
          %1116 = vset.pattern.permute.xlu0 0
          %1117 = vperm.xlu0 %1116, %v1103
          %v1118 = vpop.permute.xlu0 %1117
          %v1120 = vsub.f32 %v1091, %v1113
          %v1121 = vsub.f32 %v1092, %v1118
          %v1122 = vmul.f32 %v1120, 1.442695
          %v1123 = vpow.pop %v1122
          %v1124 = vmul.f32 %v1121, 1.442695
          %v1125 = vpow.pop %v1124
          %v1126 = vld [vmem:[#allocation5] sm:$0xff]
          %v1127 = vld [vmem:[#allocation5 + $0x8] sm:$0xff]
          %v1128 = vmul.f32 %v1107, %v1126
          %v1129 = vmul.f32 %v1109, %v1127
          %v1130 = vsel %vm1095, %v1123, 0.0
          %1131 = vadd.xlane.f32.xlu0 %v1130
          %v1132 = vpop.xlane.xlu0 %1131
          %v1133 = vsel %vm1095, %v1125, 0.0
          %1134 = vadd.xlane.f32.xlu0 %v1133
          %v1135 = vpop.xlane.xlu0 %1134
          %v1136 = vadd.f32 %v1128, %v1132
          %v1137 = vadd.f32 %v1129, %v1135
          %1138 = vst.msk [vmem:[#allocation5] sm:$0xff] %vm963, %v1136
          %1139 = vst.msk [vmem:[#allocation5 + $0x8] sm:$0xff] %vm963, %v1137
          %v1140 = vpack.c.bf16 %v1123, %v1123
          %v1141 = vpack.c.bf16 %v1125, %v1125
          %v1143 = vsel %vm1095, %v1140, 0
          %vm1145 = vcmask 1043456
          %v1147 = vsel %vm1145, %v986, 0
          %1149 = vmatprep.subr.bf16.mxu0 0
          %1150 = vmatpush1.bf16.msra.mxu0 0
          %1151 = vmatprep.subr.bf16.mxu0 0
          %1152 = vmatpush1.bf16.msra.mxu0 0
          %1153 = vmatprep.subr.bf16.mxu0 0
          %1154 = vmatpush1.bf16.msra.mxu0 0
          %1155 = vmatprep.subr.bf16.mxu0 0
          %1156 = vmatpush1.bf16.msra.mxu0 0
          %1157 = vmatprep.subr.bf16.mxu0 0
          %1158 = vmatpush1.bf16.msra.mxu0 0
          %1159 = vmatprep.subr.bf16.mxu0 0
          %1160 = vmatpush1.bf16.msra.mxu0 0
          %1161 = vmatprep.subr.bf16.mxu0 0
          %1162 = vmatpush1.bf16.msra.mxu0 0
          %1163 = vmatprep.subr.bf16.mxu0 0
          %1164 = vmatpush1.bf16.msra.mxu0 %v1147
          %1165 = vmatprep.subr.bf16.mxu0 0
          %1166 = vmatpush2.bf16.msra.mxu0 0
          %1167 = vmatprep.subr.bf16.mxu0 0
          %1168 = vmatpush2.bf16.msra.mxu0 0
          %1169 = vmatprep.subr.bf16.mxu0 0
          %1170 = vmatpush2.bf16.msra.mxu0 0
          %1171 = vmatprep.subr.bf16.mxu0 0
          %1172 = vmatpush2.bf16.msra.mxu0 0
          %1173 = vmatprep.subr.bf16.mxu0 0
          %1174 = vmatpush2.bf16.msra.mxu0 0
          %1175 = vmatprep.subr.bf16.mxu0 0
          %1176 = vmatpush2.bf16.msra.mxu0 0
          %1177 = vmatprep.subr.bf16.mxu0 0
          %1178 = vmatpush2.bf16.msra.mxu0 0
          %1179 = vmatprep.subr.bf16.mxu0 0
          %1180 = vmatpush2.bf16.msra.mxu0 0
          %1181 = vmatprep.mubr.bf16.mxu0 0
          %1182 = vmatmul.mubr.bf16.gmra.mxu0 %v1143
          %v1183 = vpop.f32.mrf.mxu0
          %v1184 = vadd.f32 0.0, %v1183
          %v1185 = vpop.f32.mrf.mxu0
          %v1186 = vpop.f32.mrf.mxu0
          %v1187 = vpop.f32.mrf.mxu0
          %1188 = vdwg.mxu0
          %v1190 = vsel %vm1095, %v1141, 0
          %v1193 = vsel %vm1145, %v987, 0
          %1195 = vmatprep.subr.bf16.mxu0 0
          %1196 = vmatpush1.bf16.msra.mxu0 0
          %1197 = vmatprep.subr.bf16.mxu0 0
          %1198 = vmatpush1.bf16.msra.mxu0 0
          %1199 = vmatprep.subr.bf16.mxu0 0
          %1200 = vmatpush1.bf16.msra.mxu0 0
          %1201 = vmatprep.subr.bf16.mxu0 0
          %1202 = vmatpush1.bf16.msra.mxu0 0
          %1203 = vmatprep.subr.bf16.mxu0 0
          %1204 = vmatpush1.bf16.msra.mxu0 0
          %1205 = vmatprep.subr.bf16.mxu0 0
          %1206 = vmatpush1.bf16.msra.mxu0 0
          %1207 = vmatprep.subr.bf16.mxu0 0
          %1208 = vmatpush1.bf16.msra.mxu0 0
          %1209 = vmatprep.subr.bf16.mxu0 0
          %1210 = vmatpush1.bf16.msra.mxu0 %v1193
          %1211 = vmatprep.subr.bf16.mxu0 0
          %1212 = vmatpush2.bf16.msra.mxu0 0
          %1213 = vmatprep.subr.bf16.mxu0 0
          %1214 = vmatpush2.bf16.msra.mxu0 0
          %1215 = vmatprep.subr.bf16.mxu0 0
          %1216 = vmatpush2.bf16.msra.mxu0 0
          %1217 = vmatprep.subr.bf16.mxu0 0
          %1218 = vmatpush2.bf16.msra.mxu0 0
          %1219 = vmatprep.subr.bf16.mxu0 0
          %1220 = vmatpush2.bf16.msra.mxu0 0
          %1221 = vmatprep.subr.bf16.mxu0 0
          %1222 = vmatpush2.bf16.msra.mxu0 0
          %1223 = vmatprep.subr.bf16.mxu0 0
          %1224 = vmatpush2.bf16.msra.mxu0 0
          %1225 = vmatprep.subr.bf16.mxu0 0
          %1226 = vmatpush2.bf16.msra.mxu0 0
          %1227 = vmatprep.mubr.bf16.mxu0 0
          %1228 = vmatmul.mubr.bf16.gmra.mxu0 %v1190
          %v1229 = vpop.f32.mrf.mxu0
          %v1230 = vadd.f32 0.0, %v1229
          %v1231 = vpop.f32.mrf.mxu0
          %v1232 = vpop.f32.mrf.mxu0
          %v1233 = vpop.f32.mrf.mxu0
          %1234 = vdwg.mxu0
          %v1235 = vld [vmem:[#allocation6] sm:$0xff]
          %v1236 = vld [vmem:[#allocation6 + $0x8] sm:$0xff]
          %1238 = vset.pattern.permute.xlu0 0
          %1239 = vperm.xlu0 %1238, %v1107
          %v1240 = vpop.permute.xlu0 %1239
          %1243 = vset.pattern.permute.xlu0 0
          %1244 = vperm.xlu0 %1243, %v1109
          %v1245 = vpop.permute.xlu0 %1244
          %v1247 = vmul.f32 %v1240, %v1235
          %v1248 = vmul.f32 %v1245, %v1236
          %v1249 = vadd.f32 %v1247, %v1184
          %v1250 = vadd.f32 %v1248, %v1230
          %1251 = vst.msk [vmem:[#allocation6] sm:$0xff] %vm968, %v1249
          %1252 = vst.msk [vmem:[#allocation6 + $0x8] sm:$0xff] %vm968, %v1250
          %1253 = vst.msk [vmem:[#allocation4] sm:$0xff] %vm963, %v1102
          %1254 = vst.msk [vmem:[#allocation4 + $0x8] sm:$0xff] %vm963, %v1103
        $region57: #{tpu_custom_call.1} parent=39 // loop_footer
          %s975 = sadd.s32 %s973, 1
        $region58: #{tpu_custom_call.1} parent=39 // loop_footer_branch
          %972 = sbr.rel target = $region54
        $region59: #{tpu_custom_call.1} parent=39 // loop_exit
          _
        %v1255 = vld [vmem:[#allocation6] sm:$0xff]
        %v1256 = vld [vmem:[#allocation6 + $0x8] sm:$0xff]
        %v1257 = vld [vmem:[#allocation5] sm:$0xff]
        %v1258 = vld [vmem:[#allocation5 + $0x8] sm:$0xff]
        %v1259 = vrcp.pop %v1257
        %v1260 = vrcp.pop %v1258
        %1262 = vset.pattern.permute.xlu0 0
        %1263 = vperm.xlu0 %1262, %v1259
        %v1264 = vpop.permute.xlu0 %1263
        %1267 = vset.pattern.permute.xlu0 0
        %1268 = vperm.xlu0 %1267, %v1260
        %v1269 = vpop.permute.xlu0 %1268
        %v1271 = vmul.f32 %v1255, %v1264
        %v1272 = vmul.f32 %v1256, %v1269
        %v1273 = vcombine.high %v1271, 0.0
        %v1275 = vunpack.c.l.s4 1983009808
        %v1276 = vunpack.c.0.s8 %v1275
        %v1277 = vlaneseq
        %v1278 = vshrl.u32 %v1277, 7
        %v1279 = vsub.s32 %v1276, %v1278
        %v1280 = vrot.slane %v1271, %v1279
        %v1282 = vunpack.c.l.s4 1983009808
        %v1283 = vunpack.c.0.s8 %v1282
        %v1284 = vlaneseq
        %v1285 = vshrl.u32 %v1284, 7
        %v1286 = vsub.s32 %v1283, %v1285
        %v1287 = vrot.slane %v1273, %v1286
        %v1288 = vcombine.high %v1272, 0.0
        %v1290 = vunpack.c.l.s4 1983009808
        %v1291 = vunpack.c.0.s8 %v1290
        %v1292 = vlaneseq
        %v1293 = vshrl.u32 %v1292, 7
        %v1294 = vsub.s32 %v1291, %v1293
        %v1295 = vrot.slane %v1272, %v1294
        %v1297 = vunpack.c.l.s4 1983009808
        %v1298 = vunpack.c.0.s8 %v1297
        %v1299 = vlaneseq
        %v1300 = vshrl.u32 %v1299, 7
        %v1301 = vsub.s32 %v1298, %v1300
        %v1302 = vrot.slane %v1288, %v1301
        %v1303 = vcombine.low %v1280, %v1295
        %v1304 = vcombine.high %v1280, %v1295
        %v1306 = vunpack.c.l.s4 1934713408
        %v1307 = vunpack.c.0.s8 %v1306
        %v1308 = vlaneseq
        %v1309 = vshrl.u32 %v1308, 7
        %v1310 = vsub.s32 %v1307, %v1309
        %v1311 = vrot.slane %v1303, %v1310
        %v1313 = vunpack.c.l.s4 1934713408
        %v1314 = vunpack.c.0.s8 %v1313
        %v1315 = vlaneseq
        %v1316 = vshrl.u32 %v1315, 7
        %v1317 = vsub.s32 %v1314, %v1316
        %v1318 = vrot.slane %v1304, %v1317
        %v1319 = vcombine.low %v1287, %v1302
        %v1320 = vcombine.high %v1287, %v1302
        %v1322 = vunpack.c.l.s4 1934713408
        %v1323 = vunpack.c.0.s8 %v1322
        %v1324 = vlaneseq
        %v1325 = vshrl.u32 %v1324, 7
        %v1326 = vsub.s32 %v1323, %v1325
        %v1327 = vrot.slane %v1319, %v1326
        %v1329 = vunpack.c.l.s4 1934713408
        %v1330 = vunpack.c.0.s8 %v1329
        %v1331 = vlaneseq
        %v1332 = vshrl.u32 %v1331, 7
        %v1333 = vsub.s32 %v1330, %v1332
        %v1334 = vrot.slane %v1320, %v1333
        %v1335 = vcombine.high %v1311, 0.0
        %v1336 = vcombine.high %v1318, 0.0
        %v1337 = vcombine.high %v1327, 0.0
        %v1338 = vcombine.high %v1334, 0.0
        %v1339 = vcombine.low %v1311, %v1318
        %v1341 = vunpack.c.l.s4 1983009808
        %v1342 = vunpack.c.0.s8 %v1341
        %v1343 = vlaneseq
        %v1344 = vshrl.u32 %v1343, 7
        %v1345 = vsub.s32 %v1342, %v1344
        %v1346 = vrot.slane %v1339, %v1345
        %v1347 = vcombine.low %v1335, %v1336
        %v1349 = vunpack.c.l.s4 1983009808
        %v1350 = vunpack.c.0.s8 %v1349
        %v1351 = vlaneseq
        %v1352 = vshrl.u32 %v1351, 7
        %v1353 = vsub.s32 %v1350, %v1352
        %v1354 = vrot.slane %v1347, %v1353
        %v1355 = vcombine.low %v1327, %v1334
        %v1357 = vunpack.c.l.s4 1983009808
        %v1358 = vunpack.c.0.s8 %v1357
        %v1359 = vlaneseq
        %v1360 = vshrl.u32 %v1359, 7
        %v1361 = vsub.s32 %v1358, %v1360
        %v1362 = vrot.slane %v1355, %v1361
        %v1363 = vcombine.low %v1337, %v1338
        %v1365 = vunpack.c.l.s4 1983009808
        %v1366 = vunpack.c.0.s8 %v1365
        %v1367 = vlaneseq
        %v1368 = vshrl.u32 %v1367, 7
        %v1369 = vsub.s32 %v1366, %v1368
        %v1370 = vrot.slane %v1363, %v1369
        %v1371 = vcombine.low %v1346, %v1354
        %v1373 = vunpack.c.l.s4 1934713408
        %v1374 = vunpack.c.0.s8 %v1373
        %v1375 = vlaneseq
        %v1376 = vshrl.u32 %v1375, 7
        %v1377 = vsub.s32 %v1374, %v1376
        %v1378 = vrot.slane %v1371, %v1377
        %v1379 = vcombine.low %v1362, %v1370
        %v1381 = vunpack.c.l.s4 1934713408
        %v1382 = vunpack.c.0.s8 %v1381
        %v1383 = vlaneseq
        %v1384 = vshrl.u32 %v1383, 7
        %v1385 = vsub.s32 %v1382, %v1384
        %v1386 = vrot.slane %v1379, %v1385
        %v1387 = vcombine.low %v1378, %v1386
        %v1388 = vcombine.high %v1378, %v1386
        %1390 = vrot.lane.b32.xlu0 %v1388, 64
        %v1391 = vpop.permute.xlu0 %1390
        %v1393 = vsel %vm968, %v1387, %v1391
        %v1394 = vpack.c.bf16 %v1393, %v1393
        %v1395 = vld [vmem:[#allocation12] sm:$0xf]
        %v1396 = vld [vmem:[#allocation12 + $0x4] sm:$0xf]
        %v1397 = vld [vmem:[#allocation12 + $0x8] sm:$0xf]
        %v1398 = vld [vmem:[#allocation12 + $0xc] sm:$0xf]
        %v1399 = vld [vmem:[#allocation12 + $0x10] sm:$0xf]
        %v1400 = vld [vmem:[#allocation12 + $0x14] sm:$0xf]
        %v1401 = vld [vmem:[#allocation12 + $0x18] sm:$0xf]
        %v1402 = vld [vmem:[#allocation12 + $0x1c] sm:$0xf]
        %v1403 = vld [vmem:[#allocation12 + $0x20] sm:$0xf]
        %v1404 = vld [vmem:[#allocation12 + $0x24] sm:$0xf]
        %v1405 = vld [vmem:[#allocation12 + $0x28] sm:$0xf]
        %v1406 = vld [vmem:[#allocation12 + $0x2c] sm:$0xf]
        %v1407 = vld [vmem:[#allocation12 + $0x30] sm:$0xf]
        %v1408 = vld [vmem:[#allocation12 + $0x34] sm:$0xf]
        %v1409 = vld [vmem:[#allocation12 + $0x38] sm:$0xf]
        %v1410 = vld [vmem:[#allocation12 + $0x3c] sm:$0xf]
        %v1427 = vunpack.c.l.b16 %v1395
        %v1428 = vunpack.c.l.b16 %v1396
        %v1429 = vunpack.c.l.b16 %v1397
        %v1430 = vunpack.c.l.b16 %v1398
        %v1431 = vunpack.c.l.b16 %v1399
        %v1432 = vunpack.c.l.b16 %v1400
        %v1433 = vunpack.c.l.b16 %v1401
        %v1434 = vunpack.c.l.b16 %v1402
        %v1435 = vunpack.c.l.b16 %v1403
        %v1436 = vunpack.c.l.b16 %v1404
        %v1437 = vunpack.c.l.b16 %v1405
        %v1438 = vunpack.c.l.b16 %v1406
        %v1439 = vunpack.c.l.b16 %v1407
        %v1440 = vunpack.c.l.b16 %v1408
        %v1441 = vunpack.c.l.b16 %v1409
        %v1442 = vunpack.c.l.b16 %v1410
        %v1443 = vpack.c.b16 %v1428, %v1427
        %v1444 = vpack.c.b16 %v1430, %v1429
        %v1445 = vpack.c.b16 %v1432, %v1431
        %v1446 = vpack.c.b16 %v1434, %v1433
        %v1447 = vpack.c.b16 %v1436, %v1435
        %v1448 = vpack.c.b16 %v1438, %v1437
        %v1449 = vpack.c.b16 %v1440, %v1439
        %v1450 = vpack.c.b16 %v1442, %v1441
        %1459 = vmatprep.subr.bf16.mxu0 0
        %1460 = vmatpush1.bf16.msra.mxu0 %v1450
        %1461 = vmatprep.subr.bf16.mxu0 0
        %1462 = vmatpush1.bf16.msra.mxu0 %v1449
        %1463 = vmatprep.subr.bf16.mxu0 0
        %1464 = vmatpush1.bf16.msra.mxu0 %v1448
        %1465 = vmatprep.subr.bf16.mxu0 0
        %1466 = vmatpush1.bf16.msra.mxu0 %v1447
        %1467 = vmatprep.subr.bf16.mxu0 0
        %1468 = vmatpush1.bf16.msra.mxu0 %v1446
        %1469 = vmatprep.subr.bf16.mxu0 0
        %1470 = vmatpush1.bf16.msra.mxu0 %v1445
        %1471 = vmatprep.subr.bf16.mxu0 0
        %1472 = vmatpush1.bf16.msra.mxu0 %v1444
        %1473 = vmatprep.subr.bf16.mxu0 0
        %1474 = vmatpush1.bf16.msra.mxu0 %v1443
        %1475 = vmatprep.subr.bf16.mxu0 0
        %1476 = vmatpush2.bf16.msra.mxu0 0
        %1477 = vmatprep.subr.bf16.mxu0 0
        %1478 = vmatpush2.bf16.msra.mxu0 0
        %1479 = vmatprep.subr.bf16.mxu0 0
        %1480 = vmatpush2.bf16.msra.mxu0 0
        %1481 = vmatprep.subr.bf16.mxu0 0
        %1482 = vmatpush2.bf16.msra.mxu0 0
        %1483 = vmatprep.subr.bf16.mxu0 0
        %1484 = vmatpush2.bf16.msra.mxu0 0
        %1485 = vmatprep.subr.bf16.mxu0 0
        %1486 = vmatpush2.bf16.msra.mxu0 0
        %1487 = vmatprep.subr.bf16.mxu0 0
        %1488 = vmatpush2.bf16.msra.mxu0 0
        %1489 = vmatprep.subr.bf16.mxu0 0
        %1490 = vmatpush2.bf16.msra.mxu0 0
        %1491 = vmatprep.mubr.bf16.mxu0 0
        %1492 = vmatmul.mubr.bf16.gmra.mxu0 %v1394
        %v1493 = vpop.f32.mrf.mxu0
        %v1494 = vadd.f32 %v288, %v1493
        %v1495 = vpop.f32.mrf.mxu0
        %v1496 = vpop.f32.mrf.mxu0
        %v1497 = vpop.f32.mrf.mxu0
        %1498 = vdwg.mxu0
        %1499 = vadd.xlane.f32.xlu0 %v1494
        %v1500 = vpop.xlane.xlu0 %1499
        %v1501 = vmul.f32 %v1500, 0.03125
        %v1502 = vlaneseq
        %v1503 = vand.u32 %v1502, 127
        %vm1504 = vcmp.lt.s32.totalorder %v1503, 32
        %v1505 = vsub.f32 %v1494, %v1501
        %v1506 = vsel %vm1504, 1, 0
        %vm1507 = vcmp.eq.s32.totalorder %v1506, 1
        %v1508 = vsel %vm1507, %v1505, 0.0
        %v1509 = vmul.f32 %v1508, %v1508
        %1510 = vadd.xlane.f32.xlu0 %v1509
        %v1511 = vpop.xlane.xlu0 %1510
        %v1512 = vmul.f32 %v1511, 0.03125
        %v1513 = vadd.f32 %v1512, 1e-05
        %v1514 = vrsqrt.pop %v1513
        %v1515 = vmul.f32 %v1508, %v1514
        %v1516 = vld [vmem:[%s3] sm:$0x1]
        %v1518 = vlaneseq
        %v1519 = vshrl.u32 %v1518, 7
        %v1520 = vsub.s32 0, %v1519
        %v1521 = vrot.slane %v1516, %v1520
        %v1523 = vmul.f32 %v1515, %v1521
        %v1524 = vld [vmem:[%s4] sm:$0x1]
        %v1526 = vlaneseq
        %v1527 = vshrl.u32 %v1526, 7
        %v1528 = vsub.s32 0, %v1527
        %v1529 = vrot.slane %v1524, %v1528
        %v1531 = vadd.f32 %v1523, %v1529
        %1532 = vst [vmem:[%s285] sm:$0xff] %v1531
        %s1533 = sand.u32 %s157, 1
        %s1534 = scalar_lea.sflag [#allocation9], %s1533
        %s1535 = sand.u32 %s157, 1
        %s1536 = smul.addr %s1535, 8
        %s1537 = scalar_lea.vmem [#allocation13], %s1536
        // Predicated region
        $region60: #{tpu_custom_call.1} parent=39 // pred_check
          %p1538 = pneg %p167
        $region61: #{tpu_custom_call.1} parent=39 // pred_check_branch
          %1540 = sbr.rel (%p1538) target = $region63
        $region62: #{tpu_custom_call.1} parent=39 // pred_region
          %s1542 = ssub.s32 128, 128
          %1543 = vsyncadd %s1534, %s1542
          %s1544 = sadd.s32 %s28, %s27
          %s1545 = smul.addr %s1544, 128
          %s1546 = scalar_lea.hbm %s5, %s1545
          %s1548 = sshll.u32 %s1537, 4
          %s1549 = int_to_ptr.vmem [resolvable:$true] %s1548
          %1551 = dma.vmem_to_hbm [thread:$0]  %s1549, 128, %s1546, %s1534
        $region63: #{tpu_custom_call.1} parent=39 // pred_fallthru
          _
      $region40: #{tpu_custom_call.1} parent=5 // pred_fallthru
        _
      %p1552 = scmp.le.s32.totalorder 2, %s18
      // Predicated region
      $region64: #{tpu_custom_call.1} parent=5 // pred_check
        %p1553 = pneg %p1552
      $region65: #{tpu_custom_call.1} parent=5 // pred_check_branch
        %1555 = sbr.rel (%p1553) target = $region67
      $region66: #{tpu_custom_call.1} parent=5 // pred_region
        %s1556 = ssub.s32 %s18, 2
        // Predicated region
        $region68: #{tpu_custom_call.1} parent=66 // pred_check
          %p1557 = pneg %p173
        $region69: #{tpu_custom_call.1} parent=66 // pred_check_branch
          %1559 = sbr.rel (%p1557) target = $region71
        $region70: #{tpu_custom_call.1} parent=66 // pred_region
          %s1560 = sand.u32 %s158, 1
          %s1561 = scalar_lea.sflag [#allocation9], %s1560
          %s1562 = sand.u32 %s158, 1
          %s1563 = smul.addr %s1562, 8
          %s1564 = scalar_lea.vmem [#allocation13], %s1563
          %1565 = dma.done %s1561, 128
        $region71: #{tpu_custom_call.1} parent=66 // pred_fallthru
          _
      $region67: #{tpu_custom_call.1} parent=5 // pred_fallthru
        _
    $region6: #{tpu_custom_call.1} parent=1 // loop_footer
      %s22 = sadd.s32 1, %s18
    $region7: #{tpu_custom_call.1} parent=1 // loop_footer_branch
      %17 = sbr.rel target = $region3
    $region8: #{tpu_custom_call.1} parent=1 // loop_exit
      _
    %1566 = vsyncpa [#allocation8], 1
    %s1567 = scalar_lea.sflag [#allocation8], 1
    %1568 = vsyncpa %s1567, 1
    %1569 = vsyncpa [#allocation11], 1
    %1570 = vsyncpa [#allocation9], 1
    %s1571 = scalar_lea.sflag [#allocation9], 1
    %1572 = vsyncpa %s1571, 1

// kernel: tpu_custom_call.1
$region0: #{tpu_custom_call.1}
  #allocation0 [shape = 'u32[]', space=smem, size = 0x4, offset = 0x4, fixed_abs, tag = 'smem constant byte address 0x4 - core index']
  #allocation1 [shape = 'u32[144,128]{1,0:T(1,128)}', space=vmem, size = 0x12000, scoped, tag = 'internal scratch']
  #allocation2 [shape = 'bf16[1,2,8,64]{3,2,1,0:T(8,128)(2,1)}', space=vmem, size = 0x1000, scoped, tag = 'scratch operand']
  #allocation3 [shape = 'bf16[1,2,8,64]{3,2,1,0:T(8,128)(2,1)}', space=vmem, size = 0x1000, scoped, tag = 'scratch operand']
  #allocation4 [shape = 'f32[2,8,1]{2,1,0:T(8,128)}', space=vmem, size = 0x2000, scoped, tag = 'scratch operand']
  #allocation5 [shape = 'f32[2,8,1]{2,1,0:T(8,128)}', space=vmem, size = 0x2000, scoped, tag = 'scratch operand']
  #allocation6 [shape = 'f32[2,8,64]{2,1,0:T(8,128)}', space=vmem, size = 0x2000, scoped, tag = 'scratch operand']
  %s0 = inlined_call_operand.hbm [shape: f32[2,8,128], index: 0, kind: input, shape index: {}]
  %s1 = inlined_call_operand.hbm [shape: bf16[128,384], index: 1, kind: input, shape index: {}]
  %s2 = inlined_call_operand.hbm [shape: bf16[128,128], index: 2, kind: input, shape index: {}]
  %s3 = inlined_call_operand.vmem [shape: f32[1,128], index: 3, kind: input, shape index: {}]
  %s4 = inlined_call_operand.vmem [shape: f32[1,128], index: 4, kind: input, shape index: {}]
  %s5 = inlined_call_operand.hbm [shape: f32[2,8,128], index: 5, kind: output, shape index: {}]
  %s6 = sld [smem:[#allocation0]]
  $region72: #{tpu_custom_call.1} parent=0
    _
  %s8 = ssub.s32 1, %s6
  %s9 = scalar_select 0, %s8, %s6
  $region1: #{tpu_custom_call.1} parent=0
    #allocation7 [shape = 'u8[8192]{0}', space=vmem, size = 0x2000, scoped, tag = 'input window, operand 0']
    #allocation8 [shape = 's32[2]{0}', space=sflag, size = 0x8, scoped, tag = 'scoped memory for tpu_custom_call.1']
    #allocation9 [shape = 's32[2]{0}', space=sflag, size = 0x8, scoped, tag = 'scoped memory for tpu_custom_call.1']
    #allocation10 [shape = 'u8[98304]{0}', space=vmem, size = 0x18000, scoped, tag = 'input window, operand 1, single buffered']
    #allocation11 [shape = 's32[1]{0}', space=sflag, size = 0x4, scoped, tag = 'scoped memory for tpu_custom_call.1']
    #allocation12 [shape = 'u8[32768]{0}', space=vmem, size = 0x8000, scoped, tag = 'input window, operand 2, single buffered']
    #allocation13 [shape = 'u8[8192]{0}', space=vmem, size = 0x2000, scoped, tag = 'output window, operand 0']
    %10 = vsyncpa [#allocation8], 0
    %s11 = scalar_lea.sflag [#allocation8], 1
    %12 = vsyncpa %s11, 0
    %13 = vsyncpa [#allocation11], 0
    %14 = vsyncpa [#allocation9], 0
    %s15 = scalar_lea.sflag [#allocation9], 1
    %16 = vsyncpa %s15, 0
    loop: start=0, step=1, limit=4
    $region2: #{tpu_custom_call.1} parent=1 // loop_pre_header
      _
    $region3: #{tpu_custom_call.1} parent=1 // loop_header
      %s18 = sphi 0, %s22
      %p19 = scmp.ge.s32.totalorder %s18, 4
      %s25 = sphi 0, %s37
      %s26 = sphi 0, %s33
      %s27 = sphi 0, %s25
      %s28 = sphi 0, %s26
      %s29 = sphi 0, %s27
      %s30 = sphi 0, %s28
      %s42 = sphi 0, %s44
      %s45 = sphi 0, %s42
      %s46 = sphi 0, %s45
      %s62 = sphi 0, %s46
      %s66 = sphi 0, %s66
      %s68 = sphi 0, %s66
      %s69 = sphi 0, %s68
      %s83 = sphi 0, %s69
      %s87 = sphi 0, %s87
      %s89 = sphi 0, %s87
      %s90 = sphi 0, %s89
      %s104 = sphi 0, %s90
      %s108 = sphi 0, %s108
      %s110 = sphi 0, %s108
      %s111 = sphi 0, %s110
      %s125 = sphi 0, %s111
      %s129 = sphi 0, %s129
      %s131 = sphi 0, %s129
      %s132 = sphi 0, %s131
      %s146 = sphi 0, %s132
      %s154 = sphi 0, %s156
      %s157 = sphi 0, %s154
      %s158 = sphi 0, %s157
      %s174 = sphi 0, %s158
    $region4: #{tpu_custom_call.1} parent=1 // loop_header_branch
      %21 = sbr.rel (%p19) target = $region8
    $region5: #{tpu_custom_call.1} parent=1 // loop_body
      %s23 = ssub.s32 %s18, 1
      %s24 = ssub.s32 %s18, 2
      %s31 = sadd.s32 1, %s26
      %p32 = scmp.ge.s32.totalorder %s31, 1
      %s33 = scalar_select %p32, 0, %s31
      %s34 = sadd.s32 1, %s25
      %s35 = scalar_select %p32, %s34, %s25
      %p36 = scmp.ge.s32.totalorder %s35, 2
      %s37 = scalar_select %p36, 0, %s35
      %s38 = ssub.s32 %s25, %s37
      %s39 = ssub.s32 %s26, %s33
      %s40 = sor.u32 %s38, %s39
      %p41 = scmp.eq.s32.totalorder %s40, 0
      %s43 = sadd.s32 %s42, 1
      %s44 = scalar_select %p41, %s42, %s43
      %p47 = pneg %p41
      %p48 = scmp.eq.s32.totalorder %s18, 1
      %p49 = por %p47, %p48
      %p50 = scmp.ne.s32.totalorder %s42, %s45
      %p51 = scmp.eq.s32.totalorder %s18, 0
      %p52 = por %p50, %p51
      %p53 = scmp.ne.s32.totalorder %s42, %s45
      %p54 = scmp.eq.s32.totalorder %s23, 1
      %p55 = por %p53, %p54
      %p56 = scmp.ne.s32.totalorder %s45, %s46
      %p57 = scmp.eq.s32.totalorder %s23, 0
      %p58 = por %p56, %p57
      %p59 = scmp.ne.s32.totalorder %s45, %s46
      %p60 = scmp.eq.s32.totalorder %s24, 1
      %p61 = por %p59, %p60
      %p63 = scmp.ne.s32.totalorder %s46, %s62
      %p64 = scmp.eq.s32.totalorder %s24, 0
      %p65 = por %p63, %p64
      %s67 = sadd.s32 %s66, 1
      %p70 = scmp.eq.s32.totalorder %s18, 1
      %p71 = scmp.ne.s32.totalorder %s66, %s68
      %p72 = scmp.eq.s32.totalorder %s18, 0
      %p73 = por %p71, %p72
      %p74 = scmp.ne.s32.totalorder %s66, %s68
      %p75 = scmp.eq.s32.totalorder %s23, 1
      %p76 = por %p74, %p75
      %p77 = scmp.ne.s32.totalorder %s68, %s69
      %p78 = scmp.eq.s32.totalorder %s23, 0
      %p79 = por %p77, %p78
      %p80 = scmp.ne.s32.totalorder %s68, %s69
      %p81 = scmp.eq.s32.totalorder %s24, 1
      %p82 = por %p80, %p81
      %p84 = scmp.ne.s32.totalorder %s69, %s83
      %p85 = scmp.eq.s32.totalorder %s24, 0
      %p86 = por %p84, %p85
      %s88 = sadd.s32 %s87, 1
      %p91 = scmp.eq.s32.totalorder %s18, 1
      %p92 = scmp.ne.s32.totalorder %s87, %s89
      %p93 = scmp.eq.s32.totalorder %s18, 0
      %p94 = por %p92, %p93
      %p95 = scmp.ne.s32.totalorder %s87, %s89
      %p96 = scmp.eq.s32.totalorder %s23, 1
      %p97 = por %p95, %p96
      %p98 = scmp.ne.s32.totalorder %s89, %s90
      %p99 = scmp.eq.s32.totalorder %s23, 0
      %p100 = por %p98, %p99
      %p101 = scmp.ne.s32.totalorder %s89, %s90
      %p102 = scmp.eq.s32.totalorder %s24, 1
      %p103 = por %p101, %p102
      %p105 = scmp.ne.s32.totalorder %s90, %s104
      %p106 = scmp.eq.s32.totalorder %s24, 0
      %p107 = por %p105, %p106
      %s109 = sadd.s32 %s108, 1
      %p112 = scmp.eq.s32.totalorder %s18, 1
      %p113 = scmp.ne.s32.totalorder %s108, %s110
      %p114 = scmp.eq.s32.totalorder %s18, 0
      %p115 = por %p113, %p114
      %p116 = scmp.ne.s32.totalorder %s108, %s110
      %p117 = scmp.eq.s32.totalorder %s23, 1
      %p118 = por %p116, %p117
      %p119 = scmp.ne.s32.totalorder %s110, %s111
      %p120 = scmp.eq.s32.totalorder %s23, 0
      %p121 = por %p119, %p120
      %p122 = scmp.ne.s32.totalorder %s110, %s111
      %p123 = scmp.eq.s32.totalorder %s24, 1
      %p124 = por %p122, %p123
      %p126 = scmp.ne.s32.totalorder %s111, %s125
      %p127 = scmp.eq.s32.totalorder %s24, 0
      %p128 = por %p126, %p127
      %s130 = sadd.s32 %s129, 1
      %p133 = scmp.eq.s32.totalorder %s18, 1
      %p134 = scmp.ne.s32.totalorder %s129, %s131
      %p135 = scmp.eq.s32.totalorder %s18, 0
      %p136 = por %p134, %p135
      %p137 = scmp.ne.s32.totalorder %s129, %s131
      %p138 = scmp.eq.s32.totalorder %s23, 1
      %p139 = por %p137, %p138
      %p140 = scmp.ne.s32.totalorder %s131, %s132
      %p141 = scmp.eq.s32.totalorder %s23, 0
      %p142 = por %p140, %p141
      %p143 = scmp.ne.s32.totalorder %s131, %s132
      %p144 = scmp.eq.s32.totalorder %s24, 1
      %p145 = por %p143, %p144
      %p147 = scmp.ne.s32.totalorder %s132, %s146
      %p148 = scmp.eq.s32.totalorder %s24, 0
      %p149 = por %p147, %p148
      %s150 = ssub.s32 %s25, %s37
      %s151 = ssub.s32 %s26, %s33
      %s152 = sor.u32 %s150, %s151
      %p153 = scmp.eq.s32.totalorder %s152, 0
      %s155 = sadd.s32 %s154, 1
      %s156 = scalar_select %p153, %s154, %s155
      %p159 = pneg %p153
      %p160 = scmp.eq.s32.totalorder %s18, 1
      %p161 = por %p159, %p160
      %p162 = scmp.ne.s32.totalorder %s154, %s157
      %p163 = scmp.eq.s32.totalorder %s18, 0
      %p164 = por %p162, %p163
      %p165 = scmp.ne.s32.totalorder %s154, %s157
      %p166 = scmp.eq.s32.totalorder %s23, 1
      %p167 = por %p165, %p166
      %p168 = scmp.ne.s32.totalorder %s157, %s158
      %p169 = scmp.eq.s32.totalorder %s23, 0
      %p170 = por %p168, %p169
      %p171 = scmp.ne.s32.totalorder %s157, %s158
      %p172 = scmp.eq.s32.totalorder %s24, 1
      %p173 = por %p171, %p172
      %p175 = scmp.ne.s32.totalorder %s158, %s174
      %p176 = scmp.eq.s32.totalorder %s24, 0
      %p177 = por %p175, %p176
      %p178 = scmp.le.s32.totalorder 1, %s18
      %p179 = scmp.lt.s32.totalorder %s18, 3
      %p180 = pnand %p178, %p179
      %p181 = pneg %p180
      // Predicated region
      $region9: #{tpu_custom_call.1} parent=5 // pred_check
        _
      $region10: #{tpu_custom_call.1} parent=5 // pred_check_branch
        %183 = sbr.rel (%p180) target = $region12
      $region11: #{tpu_custom_call.1} parent=5 // pred_region
        %s184 = ssub.s32 %s18, 1
        // Predicated region
        $region13: #{tpu_custom_call.1} parent=11 // pred_check
          %p185 = pneg %p79
        $region14: #{tpu_custom_call.1} parent=11 // pred_check_branch
          %187 = sbr.rel (%p185) target = $region16
        $region15: #{tpu_custom_call.1} parent=11 // pred_region
          %s189 = ssub.s32 3072, 3072
          %190 = vsyncadd [#allocation11], %s189
          %s191 = sshll.u32 [#allocation10], 4
          %s192 = int_to_ptr.vmem [resolvable:$true] %s191
          %197 = dma.hbm_to_vmem [thread:$0]  %s1, 3072, %s192, [#allocation11], 192, 192, 12
        $region16: #{tpu_custom_call.1} parent=11 // pred_fallthru
          _
        // Predicated region
        $region17: #{tpu_custom_call.1} parent=11 // pred_check
          %p198 = pneg %p100
        $region18: #{tpu_custom_call.1} parent=11 // pred_check_branch
          %200 = sbr.rel (%p198) target = $region20
        $region19: #{tpu_custom_call.1} parent=11 // pred_region
          %s202 = ssub.s32 1024, 1024
          %203 = vsyncadd [#allocation11], %s202
          %s204 = sshll.u32 [#allocation12], 4
          %s205 = int_to_ptr.vmem [resolvable:$true] %s204
          %210 = dma.hbm_to_vmem [thread:$0]  %s2, 1024, %s205, [#allocation11], 64, 64, 4
        $region20: #{tpu_custom_call.1} parent=11 // pred_fallthru
          _
        // Predicated region
        $region21: #{tpu_custom_call.1} parent=11 // pred_check
          %p211 = pneg %p121
        $region22: #{tpu_custom_call.1} parent=11 // pred_check_branch
          %213 = sbr.rel (%p211) target = $region24
        $region23: #{tpu_custom_call.1} parent=11 // pred_region
          _
        $region24: #{tpu_custom_call.1} parent=11 // pred_fallthru
          _
        // Predicated region
        $region25: #{tpu_custom_call.1} parent=11 // pred_check
          %p214 = pneg %p142
        $region26: #{tpu_custom_call.1} parent=11 // pred_check_branch
          %216 = sbr.rel (%p214) target = $region28
        $region27: #{tpu_custom_call.1} parent=11 // pred_region
          _
        $region28: #{tpu_custom_call.1} parent=11 // pred_fallthru
          _
      $region12: #{tpu_custom_call.1} parent=5 // pred_fallthru
        _
      %p217 = scmp.lt.s32.totalorder %s18, 2
      // Predicated region
      $region29: #{tpu_custom_call.1} parent=5 // pred_check
        %p218 = pneg %p217
      $region30: #{tpu_custom_call.1} parent=5 // pred_check_branch
        %220 = sbr.rel (%p218) target = $region32
      $region31: #{tpu_custom_call.1} parent=5 // pred_region
        // Predicated region
        $region33: #{tpu_custom_call.1} parent=31 // pred_check
          %p221 = pneg %p52
        $region34: #{tpu_custom_call.1} parent=31 // pred_check_branch
          %223 = sbr.rel (%p221) target = $region36
        $region35: #{tpu_custom_call.1} parent=31 // pred_region
          %s224 = sand.u32 %s42, 1
          %s225 = scalar_lea.sflag [#allocation8], %s224
          %s226 = sand.u32 %s42, 1
          %s227 = smul.addr %s226, 8
          %s228 = scalar_lea.vmem [#allocation7], %s227
          %s230 = ssub.s32 128, 128
          %231 = vsyncadd %s225, %s230
          %s232 = sadd.s32 %s26, %s25
          %s233 = smul.addr %s232, 128
          %s234 = scalar_lea.hbm %s0, %s233
          %s236 = sshll.u32 %s228, 4
          %s237 = int_to_ptr.vmem [resolvable:$true] %s236
          %239 = dma.hbm_to_vmem [thread:$0]  %s234, 128, %s237, %s225
        $region36: #{tpu_custom_call.1} parent=31 // pred_fallthru
          _
      $region32: #{tpu_custom_call.1} parent=5 // pred_fallthru
        _
      %p240 = scmp.le.s32.totalorder 1, %s18
      %p241 = scmp.lt.s32.totalorder %s18, 3
      %p242 = pnand %p240, %p241
      %p243 = pneg %p242
      // Predicated region
      $region37: #{tpu_custom_call.1} parent=5 // pred_check
        _
      $region38: #{tpu_custom_call.1} parent=5 // pred_check_branch
        %245 = sbr.rel (%p242) target = $region40
      $region39: #{tpu_custom_call.1} parent=5 // pred_region
        %s246 = ssub.s32 %s18, 1
        %s247 = sand.u32 %s45, 1
        %s248 = scalar_lea.sflag [#allocation8], %s247
        %s249 = sand.u32 %s45, 1
        %s250 = smul.addr %s249, 8
        %s251 = scalar_lea.vmem [#allocation7], %s250
        // Predicated region
        $region41: #{tpu_custom_call.1} parent=39 // pred_check
          %p252 = pneg %p58
        $region42: #{tpu_custom_call.1} parent=39 // pred_check_branch
          %254 = sbr.rel (%p252) target = $region44
        $region43: #{tpu_custom_call.1} parent=39 // pred_region
          %255 = dma.done %s248, 128
        $region44: #{tpu_custom_call.1} parent=39 // pred_fallthru
          _
        // Predicated region
        $region45: #{tpu_custom_call.1} parent=39 // pred_check
          %p256 = pneg %p79
        $region46: #{tpu_custom_call.1} parent=39 // pred_check_branch
          %258 = sbr.rel (%p256) target = $region48
        $region47: #{tpu_custom_call.1} parent=39 // pred_region
          %259 = dma.done [#allocation11], 3072
        $region48: #{tpu_custom_call.1} parent=39 // pred_fallthru
          _
        // Predicated region
        $region49: #{tpu_custom_call.1} parent=39 // pred_check
          %p260 = pneg %p100
        $region50: #{tpu_custom_call.1} parent=39 // pred_check_branch
          %262 = sbr.rel (%p260) target = $region52
        $region51: #{tpu_custom_call.1} parent=39 // pred_region
          %263 = dma.done [#allocation11], 1024
        $region52: #{tpu_custom_call.1} parent=39 // pred_fallthru
          _
        %s264 = sand.u32 %s45, 1
        %s265 = scalar_lea.sflag [#allocation8], %s264
        %s266 = sand.u32 %s45, 1
        %s267 = smul.addr %s266, 8
        %s268 = scalar_lea.vmem [#allocation7], %s267
        %p269 = pneg %p58
        %p270 = pneg %p55
        %p271 = pneg %p79
        %p272 = pneg %p76
        %p273 = pneg %p100
        %p274 = pneg %p97
        %p275 = pneg %p121
        %p276 = pneg %p118
        %p277 = pneg %p142
        %p278 = pneg %p139
        %p279 = pneg %p170
        %p280 = pneg %p167
        %s281 = sand.u32 %s157, 1
        %s282 = scalar_lea.sflag [#allocation9], %s281
        %s283 = sand.u32 %s157, 1
        %s284 = smul.addr %s283, 8
        %s285 = scalar_lea.vmem [#allocation13], %s284
        %s287 = smul.u32 %s28, 8
        %v288 = vld [vmem:[%s251] sm:$0xff]
        %v289 = vpack.c.bf16 %v288, %v288
        %v290 = vld [vmem:[#allocation10] sm:$0xff]
        %v291 = vld [vmem:[#allocation10 + $0x8] sm:$0xf]
        %v292 = vld [vmem:[#allocation10 + $0xc] sm:$0xff]
        %v293 = vld [vmem:[#allocation10 + $0x14] sm:$0xf]
        %v294 = vld [vmem:[#allocation10 + $0x18] sm:$0xff]
        %v295 = vld [vmem:[#allocation10 + $0x20] sm:$0xf]
        %v296 = vld [vmem:[#allocation10 + $0x24] sm:$0xff]
        %v297 = vld [vmem:[#allocation10 + $0x2c] sm:$0xf]
        %v298 = vld [vmem:[#allocation10 + $0x30] sm:$0xff]
        %v299 = vld [vmem:[#allocation10 + $0x38] sm:$0xf]
        %v300 = vld [vmem:[#allocation10 + $0x3c] sm:$0xff]
        %v301 = vld [vmem:[#allocation10 + $0x44] sm:$0xf]
        %v302 = vld [vmem:[#allocation10 + $0x48] sm:$0xff]
        %v303 = vld [vmem:[#allocation10 + $0x50] sm:$0xf]
        %v304 = vld [vmem:[#allocation10 + $0x54] sm:$0xff]
        %v305 = vld [vmem:[#allocation10 + $0x5c] sm:$0xf]
        %v306 = vld [vmem:[#allocation10 + $0x60] sm:$0xff]
        %v307 = vld [vmem:[#allocation10 + $0x68] sm:$0xf]
        %v308 = vld [vmem:[#allocation10 + $0x6c] sm:$0xff]
        %v309 = vld [vmem:[#allocation10 + $0x74] sm:$0xf]
        %v310 = vld [vmem:[#allocation10 + $0x78] sm:$0xff]
        %v311 = vld [vmem:[#allocation10 + $0x80] sm:$0xf]
        %v312 = vld [vmem:[#allocation10 + $0x84] sm:$0xff]
        %v313 = vld [vmem:[#allocation10 + $0x8c] sm:$0xf]
        %v314 = vld [vmem:[#allocation10 + $0x90] sm:$0xff]
        %v315 = vld [vmem:[#allocation10 + $0x98] sm:$0xf]
        %v316 = vld [vmem:[#allocation10 + $0x9c] sm:$0xff]
        %v317 = vld [vmem:[#allocation10 + $0xa4] sm:$0xf]
        %v318 = vld [vmem:[#allocation10 + $0xa8] sm:$0xff]
        %v319 = vld [vmem:[#allocation10 + $0xb0] sm:$0xf]
        %v320 = vld [vmem:[#allocation10 + $0xb4] sm:$0xff]
        %v321 = vld [vmem:[#allocation10 + $0xbc] sm:$0xf]
        %v354 = vunpack.c.l.b16 %v290
        %v355 = vunpack.c.h.b16 %v290
        %v356 = vunpack.c.l.b16 %v291
        %v357 = vunpack.c.l.b16 %v292
        %v358 = vunpack.c.h.b16 %v292
        %v359 = vunpack.c.l.b16 %v293
        %v360 = vunpack.c.l.b16 %v294
        %v361 = vunpack.c.h.b16 %v294
        %v362 = vunpack.c.l.b16 %v295
        %v363 = vunpack.c.l.b16 %v296
        %v364 = vunpack.c.h.b16 %v296
        %v365 = vunpack.c.l.b16 %v297
        %v366 = vunpack.c.l.b16 %v298
        %v367 = vunpack.c.h.b16 %v298
        %v368 = vunpack.c.l.b16 %v299
        %v369 = vunpack.c.l.b16 %v300
        %v370 = vunpack.c.h.b16 %v300
        %v371 = vunpack.c.l.b16 %v301
        %v372 = vunpack.c.l.b16 %v302
        %v373 = vunpack.c.h.b16 %v302
        %v374 = vunpack.c.l.b16 %v303
        %v375 = vunpack.c.l.b16 %v304
        %v376 = vunpack.c.h.b16 %v304
        %v377 = vunpack.c.l.b16 %v305
        %v378 = vunpack.c.l.b16 %v306
        %v379 = vunpack.c.h.b16 %v306
        %v380 = vunpack.c.l.b16 %v307
        %v381 = vunpack.c.l.b16 %v308
        %v382 = vunpack.c.h.b16 %v308
        %v383 = vunpack.c.l.b16 %v309
        %v384 = vunpack.c.l.b16 %v310
        %v385 = vunpack.c.h.b16 %v310
        %v386 = vunpack.c.l.b16 %v311
        %v387 = vunpack.c.l.b16 %v312
        %v388 = vunpack.c.h.b16 %v312
        %v389 = vunpack.c.l.b16 %v313
        %v390 = vunpack.c.l.b16 %v314
        %v391 = vunpack.c.h.b16 %v314
        %v392 = vunpack.c.l.b16 %v315
        %v393 = vunpack.c.l.b16 %v316
        %v394 = vunpack.c.h.b16 %v316
        %v395 = vunpack.c.l.b16 %v317
        %v396 = vunpack.c.l.b16 %v318
        %v397 = vunpack.c.h.b16 %v318
        %v398 = vunpack.c.l.b16 %v319
        %v399 = vunpack.c.l.b16 %v320
        %v400 = vunpack.c.h.b16 %v320
        %v401 = vunpack.c.l.b16 %v321
        %v402 = vpack.c.b16 %v357, %v354
        %v403 = vpack.c.b16 %v358, %v355
        %v404 = vpack.c.b16 %v359, %v356
        %v405 = vpack.c.b16 %v363, %v360
        %v406 = vpack.c.b16 %v364, %v361
        %v407 = vpack.c.b16 %v365, %v362
        %v408 = vpack.c.b16 %v369, %v366
        %v409 = vpack.c.b16 %v370, %v367
        %v410 = vpack.c.b16 %v371, %v368
        %v411 = vpack.c.b16 %v375, %v372
        %v412 = vpack.c.b16 %v376, %v373
        %v413 = vpack.c.b16 %v377, %v374
        %v414 = vpack.c.b16 %v381, %v378
        %v415 = vpack.c.b16 %v382, %v379
        %v416 = vpack.c.b16 %v383, %v380
        %v417 = vpack.c.b16 %v387, %v384
        %v418 = vpack.c.b16 %v388, %v385
        %v419 = vpack.c.b16 %v389, %v386
        %v420 = vpack.c.b16 %v393, %v390
        %v421 = vpack.c.b16 %v394, %v391
        %v422 = vpack.c.b16 %v395, %v392
        %v423 = vpack.c.b16 %v399, %v396
        %v424 = vpack.c.b16 %v400, %v397
        %v425 = vpack.c.b16 %v401, %v398
        %450 = vmatprep.subr.bf16.mxu0 %v424
        %451 = vmatpush1.bf16.msra.mxu0 %v423
        %452 = vmatprep.subr.bf16.mxu0 %v421
        %453 = vmatpush1.bf16.msra.mxu0 %v420
        %454 = vmatprep.subr.bf16.mxu0 %v418
        %455 = vmatpush1.bf16.msra.mxu0 %v417
        %456 = vmatprep.subr.bf16.mxu0 %v415
        %457 = vmatpush1.bf16.msra.mxu0 %v414
        %458 = vmatprep.subr.bf16.mxu0 %v412
        %459 = vmatpush1.bf16.msra.mxu0 %v411
        %460 = vmatprep.subr.bf16.mxu0 %v409
        %461 = vmatpush1.bf16.msra.mxu0 %v408
        %462 = vmatprep.subr.bf16.mxu0 %v406
        %463 = vmatpush1.bf16.msra.mxu0 %v405
        %464 = vmatprep.subr.bf16.mxu0 %v403
        %465 = vmatpush1.bf16.msra.mxu0 %v402
        %466 = vmatprep.subr.bf16.mxu0 0
        %467 = vmatpush2.bf16.msra.mxu0 0
        %468 = vmatprep.subr.bf16.mxu0 0
        %469 = vmatpush2.bf16.msra.mxu0 0
        %470 = vmatprep.subr.bf16.mxu0 0
        %471 = vmatpush2.bf16.msra.mxu0 0
        %472 = vmatprep.subr.bf16.mxu0 0
        %473 = vmatpush2.bf16.msra.mxu0 0
        %474 = vmatprep.subr.bf16.mxu0 0
        %475 = vmatpush2.bf16.msra.mxu0 0
        %476 = vmatprep.subr.bf16.mxu0 0
        %477 = vmatpush2.bf16.msra.mxu0 0
        %478 = vmatprep.subr.bf16.mxu0 0
        %479 = vmatpush2.bf16.msra.mxu0 0
        %480 = vmatprep.subr.bf16.mxu0 0
        %481 = vmatpush2.bf16.msra.mxu0 0
        %482 = vmatprep.mubr.bf16.mxu0 0
        %483 = vmatmul.mubr.bf16.gmra.mxu0 %v289
        %v484 = vpop.f32.mrf.mxu0
        %v485 = vadd.f32 0.0, %v484
        %v486 = vpop.f32.mrf.mxu0
        %v487 = vadd.f32 0.0, %v486
        %v488 = vpop.f32.mrf.mxu0
        %v489 = vpop.f32.mrf.mxu0
        %490 = vdwg.mxu0
        %491 = vmatprep.subr.bf16.mxu0 0
        %492 = vmatpush1.bf16.msra.mxu0 %v425
        %493 = vmatprep.subr.bf16.mxu0 0
        %494 = vmatpush1.bf16.msra.mxu0 %v422
        %495 = vmatprep.subr.bf16.mxu0 0
        %496 = vmatpush1.bf16.msra.mxu0 %v419
        %497 = vmatprep.subr.bf16.mxu0 0
        %498 = vmatpush1.bf16.msra.mxu0 %v416
        %499 = vmatprep.subr.bf16.mxu0 0
        %500 = vmatpush1.bf16.msra.mxu0 %v413
        %501 = vmatprep.subr.bf16.mxu0 0
        %502 = vmatpush1.bf16.msra.mxu0 %v410
        %503 = vmatprep.subr.bf16.mxu0 0
        %504 = vmatpush1.bf16.msra.mxu0 %v407
        %505 = vmatprep.subr.bf16.mxu0 0
        %506 = vmatpush1.bf16.msra.mxu0 %v404
        %507 = vmatprep.subr.bf16.mxu0 0
        %508 = vmatpush2.bf16.msra.mxu0 0
        %509 = vmatprep.subr.bf16.mxu0 0
        %510 = vmatpush2.bf16.msra.mxu0 0
        %511 = vmatprep.subr.bf16.mxu0 0
        %512 = vmatpush2.bf16.msra.mxu0 0
        %513 = vmatprep.subr.bf16.mxu0 0
        %514 = vmatpush2.bf16.msra.mxu0 0
        %515 = vmatprep.subr.bf16.mxu0 0
        %516 = vmatpush2.bf16.msra.mxu0 0
        %517 = vmatprep.subr.bf16.mxu0 0
        %518 = vmatpush2.bf16.msra.mxu0 0
        %519 = vmatprep.subr.bf16.mxu0 0
        %520 = vmatpush2.bf16.msra.mxu0 0
        %521 = vmatprep.subr.bf16.mxu0 0
        %522 = vmatpush2.bf16.msra.mxu0 0
        %523 = vmatprep.mubr.bf16.mxu0 0
        %524 = vmatmul.mubr.bf16.gmra.mxu0 %v289
        %v525 = vpop.f32.mrf.mxu0
        %v526 = vadd.f32 0.0, %v525
        %v527 = vpop.f32.mrf.mxu0
        %v528 = vpop.f32.mrf.mxu0
        %v529 = vpop.f32.mrf.mxu0
        %530 = vdwg.mxu0
        %v531 = vpack.c.bf16 %v487, %v487
        %533 = vrot.lane.b32.xlu0 %v531, 64
        %v534 = vpop.permute.xlu0 %533
        %v536 = vunpack.c.l.s4 1983009808
        %v537 = vunpack.c.0.s8 %v536
        %v538 = vlaneseq
        %v539 = vshrl.u32 %v538, 7
        %v540 = vsub.s32 %v537, %v539
        %v541 = vrot.slane %v531, %v540
        %v542 = vcombine.high %v541, 0
        %v544 = vunpack.c.l.s4 1934713408
        %v545 = vunpack.c.0.s8 %v544
        %v546 = vlaneseq
        %v547 = vshrl.u32 %v546, 7
        %v548 = vsub.s32 %v545, %v547
        %v549 = vrot.slane %v541, %v548
        %v551 = vunpack.c.l.s4 1934713408
        %v552 = vunpack.c.0.s8 %v551
        %v553 = vlaneseq
        %v554 = vshrl.u32 %v553, 7
        %v555 = vsub.s32 %v552, %v554
        %v556 = vrot.slane %v542, %v555
        %v557 = vcombine.high %v549, 0
        %v558 = vcombine.high %v556, 0
        %v561 = vunpack.c.l.s4 1983009808
        %v562 = vunpack.c.0.s8 %v561
        %v563 = vlaneseq
        %v564 = vshrl.u32 %v563, 7
        %v565 = vsub.s32 %v562, %v564
        %v566 = vrot.slane %v534, %v565
        %v567 = vcombine.high %v566, 0
        %v569 = vunpack.c.l.s4 1934713408
        %v570 = vunpack.c.0.s8 %v569
        %v571 = vlaneseq
        %v572 = vshrl.u32 %v571, 7
        %v573 = vsub.s32 %v570, %v572
        %v574 = vrot.slane %v566, %v573
        %v576 = vunpack.c.l.s4 1934713408
        %v577 = vunpack.c.0.s8 %v576
        %v578 = vlaneseq
        %v579 = vshrl.u32 %v578, 7
        %v580 = vsub.s32 %v577, %v579
        %v581 = vrot.slane %v567, %v580
        %v582 = vcombine.high %v574, 0
        %v583 = vcombine.high %v581, 0
        %v586 = vpack.i.b16 %v574, %v549
        %v588 = vshrl.u32 %v549, 16
        %v589 = vshrl.u32 %v574, 16
        %v590 = vpack.i.b16 %v589, %v588
        %v594 = vpack.i.b16 %v582, %v557
        %v596 = vshrl.u32 %v557, 16
        %v597 = vshrl.u32 %v582, 16
        %v598 = vpack.i.b16 %v597, %v596
        %v602 = vpack.i.b16 %v581, %v556
        %v604 = vshrl.u32 %v556, 16
        %v605 = vshrl.u32 %v581, 16
        %v606 = vpack.i.b16 %v605, %v604
        %v610 = vpack.i.b16 %v583, %v558
        %v612 = vshrl.u32 %v558, 16
        %v613 = vshrl.u32 %v583, 16
        %v614 = vpack.i.b16 %v613, %v612
        %v616 = vpack.c.bf16 %v526, %v526
        %618 = vrot.lane.b32.xlu0 %v616, 64
        %v619 = vpop.permute.xlu0 %618
        %v621 = vunpack.c.l.s4 1983009808
        %v622 = vunpack.c.0.s8 %v621
        %v623 = vlaneseq
        %v624 = vshrl.u32 %v623, 7
        %v625 = vsub.s32 %v622, %v624
        %v626 = vrot.slane %v616, %v625
        %v627 = vcombine.high %v626, 0
        %v629 = vunpack.c.l.s4 1934713408
        %v630 = vunpack.c.0.s8 %v629
        %v631 = vlaneseq
        %v632 = vshrl.u32 %v631, 7
        %v633 = vsub.s32 %v630, %v632
        %v634 = vrot.slane %v626, %v633
        %v636 = vunpack.c.l.s4 1934713408
        %v637 = vunpack.c.0.s8 %v636
        %v638 = vlaneseq
        %v639 = vshrl.u32 %v638, 7
        %v640 = vsub.s32 %v637, %v639
        %v641 = vrot.slane %v627, %v640
        %v642 = vcombine.high %v634, 0
        %v643 = vcombine.high %v641, 0
        %v646 = vunpack.c.l.s4 1983009808
        %v647 = vunpack.c.0.s8 %v646
        %v648 = vlaneseq
        %v649 = vshrl.u32 %v648, 7
        %v650 = vsub.s32 %v647, %v649
        %v651 = vrot.slane %v619, %v650
        %v652 = vcombine.high %v651, 0
        %v654 = vunpack.c.l.s4 1934713408
        %v655 = vunpack.c.0.s8 %v654
        %v656 = vlaneseq
        %v657 = vshrl.u32 %v656, 7
        %v658 = vsub.s32 %v655, %v657
        %v659 = vrot.slane %v651, %v658
        %v661 = vunpack.c.l.s4 1934713408
        %v662 = vunpack.c.0.s8 %v661
        %v663 = vlaneseq
        %v664 = vshrl.u32 %v663, 7
        %v665 = vsub.s32 %v662, %v664
        %v666 = vrot.slane %v652, %v665
        %v667 = vcombine.high %v659, 0
        %v668 = vcombine.high %v666, 0
        %v671 = vpack.i.b16 %v659, %v634
        %v673 = vshrl.u32 %v634, 16
        %v674 = vshrl.u32 %v659, 16
        %v675 = vpack.i.b16 %v674, %v673
        %v679 = vpack.i.b16 %v667, %v642
        %v681 = vshrl.u32 %v642, 16
        %v682 = vshrl.u32 %v667, 16
        %v683 = vpack.i.b16 %v682, %v681
        %v687 = vpack.i.b16 %v666, %v641
        %v689 = vshrl.u32 %v641, 16
        %v690 = vshrl.u32 %v666, 16
        %v691 = vpack.i.b16 %v690, %v689
        %v695 = vpack.i.b16 %v668, %v643
        %v697 = vshrl.u32 %v643, 16
        %v698 = vshrl.u32 %v668, 16
        %v699 = vpack.i.b16 %v698, %v697
        %v701 = vcombine.low %v586, %v602
        %v703 = vunpack.c.l.s4 1983009808
        %v704 = vunpack.c.0.s8 %v703
        %v705 = vlaneseq
        %v706 = vshrl.u32 %v705, 7
        %v707 = vsub.s32 %v704, %v706
        %v708 = vrot.slane %v701, %v707
        %v709 = vcombine.low %v594, %v610
        %v711 = vunpack.c.l.s4 1983009808
        %v712 = vunpack.c.0.s8 %v711
        %v713 = vlaneseq
        %v714 = vshrl.u32 %v713, 7
        %v715 = vsub.s32 %v712, %v714
        %v716 = vrot.slane %v709, %v715
        %v717 = vcombine.low %v708, %v716
        %v719 = vunpack.c.l.s4 1934713408
        %v720 = vunpack.c.0.s8 %v719
        %v721 = vlaneseq
        %v722 = vshrl.u32 %v721, 7
        %v723 = vsub.s32 %v720, %v722
        %v724 = vrot.slane %v717, %v723
        %v725 = vcombine.low %v590, %v606
        %v727 = vunpack.c.l.s4 1983009808
        %v728 = vunpack.c.0.s8 %v727
        %v729 = vlaneseq
        %v730 = vshrl.u32 %v729, 7
        %v731 = vsub.s32 %v728, %v730
        %v732 = vrot.slane %v725, %v731
        %v733 = vcombine.low %v598, %v614
        %v735 = vunpack.c.l.s4 1983009808
        %v736 = vunpack.c.0.s8 %v735
        %v737 = vlaneseq
        %v738 = vshrl.u32 %v737, 7
        %v739 = vsub.s32 %v736, %v738
        %v740 = vrot.slane %v733, %v739
        %v741 = vcombine.low %v732, %v740
        %v743 = vunpack.c.l.s4 1934713408
        %v744 = vunpack.c.0.s8 %v743
        %v745 = vlaneseq
        %v746 = vshrl.u32 %v745, 7
        %v747 = vsub.s32 %v744, %v746
        %v748 = vrot.slane %v741, %v747
        %v751 = vpack.i.b16 %v748, %v724
        %v753 = vshrl.u32 %v724, 16
        %v754 = vshrl.u32 %v748, 16
        %v755 = vpack.i.b16 %v754, %v753
        %s757 = smul.u32 %s28, 2
        %s758 = smul.addr %s757, 4
        %s759 = scalar_lea.vmem [#allocation2], %s758
        %vm760 = vcmask 519168
        %761 = vst.msk [vmem:[%s759] sm:$0xf] %vm760, %v751
        %762 = vst.msk [vmem:[%s759 + $0x4] sm:$0xf] %vm760, %v755
        %v763 = vcombine.low %v671, %v687
        %v765 = vunpack.c.l.s4 1983009808
        %v766 = vunpack.c.0.s8 %v765
        %v767 = vlaneseq
        %v768 = vshrl.u32 %v767, 7
        %v769 = vsub.s32 %v766, %v768
        %v770 = vrot.slane %v763, %v769
        %v771 = vcombine.low %v679, %v695
        %v773 = vunpack.c.l.s4 1983009808
        %v774 = vunpack.c.0.s8 %v773
        %v775 = vlaneseq
        %v776 = vshrl.u32 %v775, 7
        %v777 = vsub.s32 %v774, %v776
        %v778 = vrot.slane %v771, %v777
        %v779 = vcombine.low %v770, %v778
        %v781 = vunpack.c.l.s4 1934713408
        %v782 = vunpack.c.0.s8 %v781
        %v783 = vlaneseq
        %v784 = vshrl.u32 %v783, 7
        %v785 = vsub.s32 %v782, %v784
        %v786 = vrot.slane %v779, %v785
        %v787 = vcombine.low %v675, %v691
        %v789 = vunpack.c.l.s4 1983009808
        %v790 = vunpack.c.0.s8 %v789
        %v791 = vlaneseq
        %v792 = vshrl.u32 %v791, 7
        %v793 = vsub.s32 %v790, %v792
        %v794 = vrot.slane %v787, %v793
        %v795 = vcombine.low %v683, %v699
        %v797 = vunpack.c.l.s4 1983009808
        %v798 = vunpack.c.0.s8 %v797
        %v799 = vlaneseq
        %v800 = vshrl.u32 %v799, 7
        %v801 = vsub.s32 %v798, %v800
        %v802 = vrot.slane %v795, %v801
        %v803 = vcombine.low %v794, %v802
        %v805 = vunpack.c.l.s4 1934713408
        %v806 = vunpack.c.0.s8 %v805
        %v807 = vlaneseq
        %v808 = vshrl.u32 %v807, 7
        %v809 = vsub.s32 %v806, %v808
        %v810 = vrot.slane %v803, %v809
        %v813 = vpack.i.b16 %v810, %v786
        %v815 = vshrl.u32 %v786, 16
        %v816 = vshrl.u32 %v810, 16
        %v817 = vpack.i.b16 %v816, %v815
        %s819 = smul.addr %s757, 4
        %s820 = scalar_lea.vmem [#allocation3], %s819
        %821 = vst.msk [vmem:[%s820] sm:$0xf] %vm760, %v813
        %822 = vst.msk [vmem:[%s820 + $0x4] sm:$0xf] %vm760, %v817
        %v823 = vmul.f32 %v485, 0.125
        %v824 = vpack.c.bf16 %v823, %v823
        %826 = vrot.lane.b32.xlu0 %v824, 64
        %v827 = vpop.permute.xlu0 %826
        %v829 = vunpack.c.l.s4 1983009808
        %v830 = vunpack.c.0.s8 %v829
        %v831 = vlaneseq
        %v832 = vshrl.u32 %v831, 7
        %v833 = vsub.s32 %v830, %v832
        %v834 = vrot.slane %v824, %v833
        %v835 = vcombine.high %v834, 0
        %v837 = vunpack.c.l.s4 1934713408
        %v838 = vunpack.c.0.s8 %v837
        %v839 = vlaneseq
        %v840 = vshrl.u32 %v839, 7
        %v841 = vsub.s32 %v838, %v840
        %v842 = vrot.slane %v834, %v841
        %v844 = vunpack.c.l.s4 1934713408
        %v845 = vunpack.c.0.s8 %v844
        %v846 = vlaneseq
        %v847 = vshrl.u32 %v846, 7
        %v848 = vsub.s32 %v845, %v847
        %v849 = vrot.slane %v835, %v848
        %v850 = vcombine.high %v842, 0
        %v851 = vcombine.high %v849, 0
        %v854 = vunpack.c.l.s4 1983009808
        %v855 = vunpack.c.0.s8 %v854
        %v856 = vlaneseq
        %v857 = vshrl.u32 %v856, 7
        %v858 = vsub.s32 %v855, %v857
        %v859 = vrot.slane %v827, %v858
        %v860 = vcombine.high %v859, 0
        %v862 = vunpack.c.l.s4 1934713408
        %v863 = vunpack.c.0.s8 %v862
        %v864 = vlaneseq
        %v865 = vshrl.u32 %v864, 7
        %v866 = vsub.s32 %v863, %v865
        %v867 = vrot.slane %v859, %v866
        %v869 = vunpack.c.l.s4 1934713408
        %v870 = vunpack.c.0.s8 %v869
        %v871 = vlaneseq
        %v872 = vshrl.u32 %v871, 7
        %v873 = vsub.s32 %v870, %v872
        %v874 = vrot.slane %v860, %v873
        %v875 = vcombine.high %v867, 0
        %v876 = vcombine.high %v874, 0
        %v879 = vpack.i.b16 %v867, %v842
        %v881 = vshrl.u32 %v842, 16
        %v882 = vshrl.u32 %v867, 16
        %v883 = vpack.i.b16 %v882, %v881
        %v887 = vpack.i.b16 %v875, %v850
        %v889 = vshrl.u32 %v850, 16
        %v890 = vshrl.u32 %v875, 16
        %v891 = vpack.i.b16 %v890, %v889
        %v895 = vpack.i.b16 %v874, %v849
        %v897 = vshrl.u32 %v849, 16
        %v898 = vshrl.u32 %v874, 16
        %v899 = vpack.i.b16 %v898, %v897
        %v903 = vpack.i.b16 %v876, %v851
        %v905 = vshrl.u32 %v851, 16
        %v906 = vshrl.u32 %v876, 16
        %v907 = vpack.i.b16 %v906, %v905
        %v909 = vcombine.low %v879, %v895
        %v911 = vunpack.c.l.s4 1983009808
        %v912 = vunpack.c.0.s8 %v911
        %v913 = vlaneseq
        %v914 = vshrl.u32 %v913, 7
        %v915 = vsub.s32 %v912, %v914
        %v916 = vrot.slane %v909, %v915
        %v917 = vcombine.low %v887, %v903
        %v919 = vunpack.c.l.s4 1983009808
        %v920 = vunpack.c.0.s8 %v919
        %v921 = vlaneseq
        %v922 = vshrl.u32 %v921, 7
        %v923 = vsub.s32 %v920, %v922
        %v924 = vrot.slane %v917, %v923
        %v925 = vcombine.low %v916, %v924
        %v927 = vunpack.c.l.s4 1934713408
        %v928 = vunpack.c.0.s8 %v927
        %v929 = vlaneseq
        %v930 = vshrl.u32 %v929, 7
        %v931 = vsub.s32 %v928, %v930
        %v932 = vrot.slane %v925, %v931
        %v933 = vcombine.low %v883, %v899
        %v935 = vunpack.c.l.s4 1983009808
        %v936 = vunpack.c.0.s8 %v935
        %v937 = vlaneseq
        %v938 = vshrl.u32 %v937, 7
        %v939 = vsub.s32 %v936, %v938
        %v940 = vrot.slane %v933, %v939
        %v941 = vcombine.low %v891, %v907
        %v943 = vunpack.c.l.s4 1983009808
        %v944 = vunpack.c.0.s8 %v943
        %v945 = vlaneseq
        %v946 = vshrl.u32 %v945, 7
        %v947 = vsub.s32 %v944, %v946
        %v948 = vrot.slane %v941, %v947
        %v949 = vcombine.low %v940, %v948
        %v951 = vunpack.c.l.s4 1934713408
        %v952 = vunpack.c.0.s8 %v951
        %v953 = vlaneseq
        %v954 = vshrl.u32 %v953, 7
        %v955 = vsub.s32 %v952, %v954
        %v956 = vrot.slane %v949, %v955
        %v959 = vpack.i.b16 %v956, %v932
        %v960 = vshrl.u32 %v932, 16
        %v961 = vshrl.u32 %v956, 16
        %v962 = vpack.i.b16 %v961, %v960
        %vm963 = vcmask 7168
        %964 = vst.msk [vmem:[#allocation4] sm:$0xff] %vm963, -1e+30
        %965 = vst.msk [vmem:[#allocation4 + $0x8] sm:$0xff] %vm963, -1e+30
        %966 = vst.msk [vmem:[#allocation5] sm:$0xff] %vm963, 0.0
        %967 = vst.msk [vmem:[#allocation5 + $0x8] sm:$0xff] %vm963, 0.0
        %vm968 = vcmask 523264
        %969 = vst.msk [vmem:[#allocation6] sm:$0xff] %vm968, 0.0
        %970 = vst.msk [vmem:[#allocation6 + $0x8] sm:$0xff] %vm968, 0.0
        %s971 = sadd.s32 %s28, 1
        // While loop
        $region53: #{tpu_custom_call.1} parent=39 // loop_pre_header
          _
        $region54: #{tpu_custom_call.1} parent=39 // loop_header
          %s973 = sphi 0, %s975
          %p974 = scmp.ge.s32.totalorder %s973, %s971
        $region55: #{tpu_custom_call.1} parent=39 // loop_header_branch
          %977 = sbr.rel (%p974) target = $region59
        $region56: #{tpu_custom_call.1} parent=39 // loop_body
          %s978 = smul.u32 %s973, 8
          %s979 = smul.u32 %s973, 2
          %s980 = smul.addr %s979, 4
          %s981 = scalar_lea.vmem [#allocation2], %s980
          %v982 = vld [vmem:[%s981] sm:$0xf]
          %v983 = vld [vmem:[%s981 + $0x4] sm:$0xf]
          %s984 = smul.addr %s979, 4
          %s985 = scalar_lea.vmem [#allocation3], %s984
          %v986 = vld [vmem:[%s985] sm:$0xf]
          %v987 = vld [vmem:[%s985 + $0x4] sm:$0xf]
          %v989 = vsel %vm968, %v959, 0
          %v992 = vsel %vm968, %v982, 0
          %994 = vmatprep.subr.bf16.mxu0 0
          %995 = vmatpush1.bf16.xpose.msra.mxu0 0
          %996 = vmatprep.subr.bf16.mxu0 0
          %997 = vmatpush1.bf16.xpose.msra.mxu0 0
          %998 = vmatprep.subr.bf16.mxu0 0
          %999 = vmatpush1.bf16.xpose.msra.mxu0 0
          %1000 = vmatprep.subr.bf16.mxu0 0
          %1001 = vmatpush1.bf16.xpose.msra.mxu0 0
          %1002 = vmatprep.subr.bf16.mxu0 0
          %1003 = vmatpush1.bf16.xpose.msra.mxu0 0
          %1004 = vmatprep.subr.bf16.mxu0 0
          %1005 = vmatpush1.bf16.xpose.msra.mxu0 0
          %1006 = vmatprep.subr.bf16.mxu0 0
          %1007 = vmatpush1.bf16.xpose.msra.mxu0 0
          %1008 = vmatprep.subr.bf16.mxu0 0
          %1009 = vmatpush1.bf16.xpose.msra.mxu0 %v992
          %1010 = vmatprep.subr.bf16.mxu0 0
          %1011 = vmatpush2.bf16.xpose.msra.mxu0 0
          %1012 = vmatprep.subr.bf16.mxu0 0
          %1013 = vmatpush2.bf16.xpose.msra.mxu0 0
          %1014 = vmatprep.subr.bf16.mxu0 0
          %1015 = vmatpush2.bf16.xpose.msra.mxu0 0
          %1016 = vmatprep.subr.bf16.mxu0 0
          %1017 = vmatpush2.bf16.xpose.msra.mxu0 0
          %1018 = vmatprep.subr.bf16.mxu0 0
          %1019 = vmatpush2.bf16.xpose.msra.mxu0 0
          %1020 = vmatprep.subr.bf16.mxu0 0
          %1021 = vmatpush2.bf16.xpose.msra.mxu0 0
          %1022 = vmatprep.subr.bf16.mxu0 0
          %1023 = vmatpush2.bf16.xpose.msra.mxu0 0
          %1024 = vmatprep.subr.bf16.mxu0 0
          %1025 = vmatpush2.bf16.xpose.msra.mxu0 0
          %1026 = vmatprep.mubr.bf16.mxu0 0
          %1027 = vmatmul.mubr.bf16.gmra.mxu0 %v989
          %v1028 = vpop.f32.mrf.mxu0
          %v1029 = vadd.f32 0.0, %v1028
          %v1030 = vpop.f32.mrf.mxu0
          %v1031 = vpop.f32.mrf.mxu0
          %v1032 = vpop.f32.mrf.mxu0
          %1033 = vdwg.mxu0
          %v1035 = vsel %vm968, %v962, 0
          %v1038 = vsel %vm968, %v983, 0
          %1040 = vmatprep.subr.bf16.mxu0 0
          %1041 = vmatpush1.bf16.xpose.msra.mxu0 0
          %1042 = vmatprep.subr.bf16.mxu0 0
          %1043 = vmatpush1.bf16.xpose.msra.mxu0 0
          %1044 = vmatprep.subr.bf16.mxu0 0
          %1045 = vmatpush1.bf16.xpose.msra.mxu0 0
          %1046 = vmatprep.subr.bf16.mxu0 0
          %1047 = vmatpush1.bf16.xpose.msra.mxu0 0
          %1048 = vmatprep.subr.bf16.mxu0 0
          %1049 = vmatpush1.bf16.xpose.msra.mxu0 0
          %1050 = vmatprep.subr.bf16.mxu0 0
          %1051 = vmatpush1.bf16.xpose.msra.mxu0 0
          %1052 = vmatprep.subr.bf16.mxu0 0
          %1053 = vmatpush1.bf16.xpose.msra.mxu0 0
          %1054 = vmatprep.subr.bf16.mxu0 0
          %1055 = vmatpush1.bf16.xpose.msra.mxu0 %v1038
          %1056 = vmatprep.subr.bf16.mxu0 0
          %1057 = vmatpush2.bf16.xpose.msra.mxu0 0
          %1058 = vmatprep.subr.bf16.mxu0 0
          %1059 = vmatpush2.bf16.xpose.msra.mxu0 0
          %1060 = vmatprep.subr.bf16.mxu0 0
          %1061 = vmatpush2.bf16.xpose.msra.mxu0 0
          %1062 = vmatprep.subr.bf16.mxu0 0
          %1063 = vmatpush2.bf16.xpose.msra.mxu0 0
          %1064 = vmatprep.subr.bf16.mxu0 0
          %1065 = vmatpush2.bf16.xpose.msra.mxu0 0
          %1066 = vmatprep.subr.bf16.mxu0 0
          %1067 = vmatpush2.bf16.xpose.msra.mxu0 0
          %1068 = vmatprep.subr.bf16.mxu0 0
          %1069 = vmatpush2.bf16.xpose.msra.mxu0 0
          %1070 = vmatprep.subr.bf16.mxu0 0
          %1071 = vmatpush2.bf16.xpose.msra.mxu0 0
          %1072 = vmatprep.mubr.bf16.mxu0 0
          %1073 = vmatmul.mubr.bf16.gmra.mxu0 %v1035
          %v1074 = vpop.f32.mrf.mxu0
          %v1075 = vadd.f32 0.0, %v1074
          %v1076 = vpop.f32.mrf.mxu0
          %v1077 = vpop.f32.mrf.mxu0
          %v1078 = vpop.f32.mrf.mxu0
          %1079 = vdwg.mxu0
          %v1080 = vlaneseq
          %v1081 = vshrl.u32 %v1080, 7
          %v1082 = vstv %s287
          %v1083 = vadd.s32 %v1081, %v1082
          %v1084 = vlaneseq
          %v1085 = vand.u32 %v1084, 127
          %v1086 = vstv %s978
          %v1087 = vadd.s32 %v1085, %v1086
          %vm1088 = vcmp.gt.s32.totalorder %v1087, %v1083
          %v1089 = vsel %vm1088, 1, 0
          %vm1090 = vcmp.eq.s32.totalorder %v1089, 1
          %v1091 = vsel %vm1090, -10000000.0, %v1029
          %v1092 = vsel %vm1090, -10000000.0, %v1075
          %v1093 = vld [vmem:[#allocation4] sm:$0xff]
          %v1094 = vld [vmem:[#allocation4 + $0x8] sm:$0xff]
          %vm1095 = vcmask 64512
          %v1096 = vsel %vm1095, %v1091, -inf
          %1097 = vmax.xlane.f32.xlu0 %v1096
          %v1098 = vpop.xlane.xlu0 %1097
          %v1099 = vsel %vm1095, %v1092, -inf
          %1100 = vmax.xlane.f32.xlu0 %v1099
          %v1101 = vpop.xlane.xlu0 %1100
          %v1102 = vmax.f32 %v1093, %v1098
          %v1103 = vmax.f32 %v1094, %v1101
          %v1104 = vsub.f32 %v1093, %v1102
          %v1105 = vsub.f32 %v1094, %v1103
          %v1106 = vmul.f32 %v1104, 1.442695
          %v1107 = vpow.pop %v1106
          %v1108 = vmul.f32 %v1105, 1.442695
          %v1109 = vpow.pop %v1108
          %1111 = vset.pattern.permute.xlu0 0
          %1112 = vperm.xlu0 %1111, %v1102
          %v1113 = vpop.permute.xlu0 %1112
          %1116 = vset.pattern.permute.xlu0 0
          %1117 = vperm.xlu0 %1116, %v1103
          %v1118 = vpop.permute.xlu0 %1117
          %v1120 = vsub.f32 %v1091, %v1113
          %v1121 = vsub.f32 %v1092, %v1118
          %v1122 = vmul.f32 %v1120, 1.442695
          %v1123 = vpow.pop %v1122
          %v1124 = vmul.f32 %v1121, 1.442695
          %v1125 = vpow.pop %v1124
          %v1126 = vld [vmem:[#allocation5] sm:$0xff]
          %v1127 = vld [vmem:[#allocation5 + $0x8] sm:$0xff]
          %v1128 = vmul.f32 %v1107, %v1126
          %v1129 = vmul.f32 %v1109, %v1127
          %v1130 = vsel %vm1095, %v1123, 0.0
          %1131 = vadd.xlane.f32.xlu0 %v1130
          %v1132 = vpop.xlane.xlu0 %1131
          %v1133 = vsel %vm1095, %v1125, 0.0
          %1134 = vadd.xlane.f32.xlu0 %v1133
          %v1135 = vpop.xlane.xlu0 %1134
          %v1136 = vadd.f32 %v1128, %v1132
          %v1137 = vadd.f32 %v1129, %v1135
          %1138 = vst.msk [vmem:[#allocation5] sm:$0xff] %vm963, %v1136
          %1139 = vst.msk [vmem:[#allocation5 + $0x8] sm:$0xff] %vm963, %v1137
          %v1140 = vpack.c.bf16 %v1123, %v1123
          %v1141 = vpack.c.bf16 %v1125, %v1125
          %v1143 = vsel %vm1095, %v1140, 0
          %vm1145 = vcmask 1043456
          %v1147 = vsel %vm1145, %v986, 0
          %1149 = vmatprep.subr.bf16.mxu0 0
          %1150 = vmatpush1.bf16.msra.mxu0 0
          %1151 = vmatprep.subr.bf16.mxu0 0
          %1152 = vmatpush1.bf16.msra.mxu0 0
          %1153 = vmatprep.subr.bf16.mxu0 0
          %1154 = vmatpush1.bf16.msra.mxu0 0
          %1155 = vmatprep.subr.bf16.mxu0 0
          %1156 = vmatpush1.bf16.msra.mxu0 0
          %1157 = vmatprep.subr.bf16.mxu0 0
          %1158 = vmatpush1.bf16.msra.mxu0 0
          %1159 = vmatprep.subr.bf16.mxu0 0
          %1160 = vmatpush1.bf16.msra.mxu0 0
          %1161 = vmatprep.subr.bf16.mxu0 0
          %1162 = vmatpush1.bf16.msra.mxu0 0
          %1163 = vmatprep.subr.bf16.mxu0 0
          %1164 = vmatpush1.bf16.msra.mxu0 %v1147
          %1165 = vmatprep.subr.bf16.mxu0 0
          %1166 = vmatpush2.bf16.msra.mxu0 0
          %1167 = vmatprep.subr.bf16.mxu0 0
          %1168 = vmatpush2.bf16.msra.mxu0 0
          %1169 = vmatprep.subr.bf16.mxu0 0
          %1170 = vmatpush2.bf16.msra.mxu0 0
          %1171 = vmatprep.subr.bf16.mxu0 0
          %1172 = vmatpush2.bf16.msra.mxu0 0
          %1173 = vmatprep.subr.bf16.mxu0 0
          %1174 = vmatpush2.bf16.msra.mxu0 0
          %1175 = vmatprep.subr.bf16.mxu0 0
          %1176 = vmatpush2.bf16.msra.mxu0 0
          %1177 = vmatprep.subr.bf16.mxu0 0
          %1178 = vmatpush2.bf16.msra.mxu0 0
          %1179 = vmatprep.subr.bf16.mxu0 0
          %1180 = vmatpush2.bf16.msra.mxu0 0
          %1181 = vmatprep.mubr.bf16.mxu0 0
          %1182 = vmatmul.mubr.bf16.gmra.mxu0 %v1143
          %v1183 = vpop.f32.mrf.mxu0
          %v1184 = vadd.f32 0.0, %v1183
          %v1185 = vpop.f32.mrf.mxu0
          %v1186 = vpop.f32.mrf.mxu0
          %v1187 = vpop.f32.mrf.mxu0
          %1188 = vdwg.mxu0
          %v1190 = vsel %vm1095, %v1141, 0
          %v1193 = vsel %vm1145, %v987, 0
          %1195 = vmatprep.subr.bf16.mxu0 0
          %1196 = vmatpush1.bf16.msra.mxu0 0
          %1197 = vmatprep.subr.bf16.mxu0 0
          %1198 = vmatpush1.bf16.msra.mxu0 0
          %1199 = vmatprep.subr.bf16.mxu0 0
          %1200 = vmatpush1.bf16.msra.mxu0 0
          %1201 = vmatprep.subr.bf16.mxu0 0
          %1202 = vmatpush1.bf16.msra.mxu0 0
          %1203 = vmatprep.subr.bf16.mxu0 0
          %1204 = vmatpush1.bf16.msra.mxu0 0
          %1205 = vmatprep.subr.bf16.mxu0 0
          %1206 = vmatpush1.bf16.msra.mxu0 0
          %1207 = vmatprep.subr.bf16.mxu0 0
          %1208 = vmatpush1.bf16.msra.mxu0 0
          %1209 = vmatprep.subr.bf16.mxu0 0
          %1210 = vmatpush1.bf16.msra.mxu0 %v1193
          %1211 = vmatprep.subr.bf16.mxu0 0
          %1212 = vmatpush2.bf16.msra.mxu0 0
          %1213 = vmatprep.subr.bf16.mxu0 0
          %1214 = vmatpush2.bf16.msra.mxu0 0
          %1215 = vmatprep.subr.bf16.mxu0 0
          %1216 = vmatpush2.bf16.msra.mxu0 0
          %1217 = vmatprep.subr.bf16.mxu0 0
          %1218 = vmatpush2.bf16.msra.mxu0 0
          %1219 = vmatprep.subr.bf16.mxu0 0
          %1220 = vmatpush2.bf16.msra.mxu0 0
          %1221 = vmatprep.subr.bf16.mxu0 0
          %1222 = vmatpush2.bf16.msra.mxu0 0
          %1223 = vmatprep.subr.bf16.mxu0 0
          %1224 = vmatpush2.bf16.msra.mxu0 0
          %1225 = vmatprep.subr.bf16.mxu0 0
          %1226 = vmatpush2.bf16.msra.mxu0 0
          %1227 = vmatprep.mubr.bf16.mxu0 0
          %1228 = vmatmul.mubr.bf16.gmra.mxu0 %v1190
          %v1229 = vpop.f32.mrf.mxu0
          %v1230 = vadd.f32 0.0, %v1229
          %v1231 = vpop.f32.mrf.mxu0
          %v1232 = vpop.f32.mrf.mxu0
          %v1233 = vpop.f32.mrf.mxu0
          %1234 = vdwg.mxu0
          %v1235 = vld [vmem:[#allocation6] sm:$0xff]
          %v1236 = vld [vmem:[#allocation6 + $0x8] sm:$0xff]
          %1238 = vset.pattern.permute.xlu0 0
          %1239 = vperm.xlu0 %1238, %v1107
          %v1240 = vpop.permute.xlu0 %1239
          %1243 = vset.pattern.permute.xlu0 0
          %1244 = vperm.xlu0 %1243, %v1109
          %v1245 = vpop.permute.xlu0 %1244
          %v1247 = vmul.f32 %v1240, %v1235
          %v1248 = vmul.f32 %v1245, %v1236
          %v1249 = vadd.f32 %v1247, %v1184
          %v1250 = vadd.f32 %v1248, %v1230
          %1251 = vst.msk [vmem:[#allocation6] sm:$0xff] %vm968, %v1249
          %1252 = vst.msk [vmem:[#allocation6 + $0x8] sm:$0xff] %vm968, %v1250
          %1253 = vst.msk [vmem:[#allocation4] sm:$0xff] %vm963, %v1102
          %1254 = vst.msk [vmem:[#allocation4 + $0x8] sm:$0xff] %vm963, %v1103
        $region57: #{tpu_custom_call.1} parent=39 // loop_footer
          %s975 = sadd.s32 %s973, 1
        $region58: #{tpu_custom_call.1} parent=39 // loop_footer_branch
          %972 = sbr.rel target = $region54
        $region59: #{tpu_custom_call.1} parent=39 // loop_exit
          _
        %v1255 = vld [vmem:[#allocation6] sm:$0xff]
        %v1256 = vld [vmem:[#allocation6 + $0x8] sm:$0xff]
        %v1257 = vld [vmem:[#allocation5] sm:$0xff]
        %v1258 = vld [vmem:[#allocation5 + $0x8] sm:$0xff]
        %v1259 = vrcp.pop %v1257
        %v1260 = vrcp.pop %v1258
        %1262 = vset.pattern.permute.xlu0 0
        %1263 = vperm.xlu0 %1262, %v1259
        %v1264 = vpop.permute.xlu0 %1263
        %1267 = vset.pattern.permute.xlu0 0
        %1268 = vperm.xlu0 %1267, %v1260
        %v1269 = vpop.permute.xlu0 %1268
        %v1271 = vmul.f32 %v1255, %v1264
        %v1272 = vmul.f32 %v1256, %v1269
        %v1273 = vcombine.high %v1271, 0.0
        %v1275 = vunpack.c.l.s4 1983009808
        %v1276 = vunpack.c.0.s8 %v1275
        %v1277 = vlaneseq
        %v1278 = vshrl.u32 %v1277, 7
        %v1279 = vsub.s32 %v1276, %v1278
        %v1280 = vrot.slane %v1271, %v1279
        %v1282 = vunpack.c.l.s4 1983009808
        %v1283 = vunpack.c.0.s8 %v1282
        %v1284 = vlaneseq
        %v1285 = vshrl.u32 %v1284, 7
        %v1286 = vsub.s32 %v1283, %v1285
        %v1287 = vrot.slane %v1273, %v1286
        %v1288 = vcombine.high %v1272, 0.0
        %v1290 = vunpack.c.l.s4 1983009808
        %v1291 = vunpack.c.0.s8 %v1290
        %v1292 = vlaneseq
        %v1293 = vshrl.u32 %v1292, 7
        %v1294 = vsub.s32 %v1291, %v1293
        %v1295 = vrot.slane %v1272, %v1294
        %v1297 = vunpack.c.l.s4 1983009808
        %v1298 = vunpack.c.0.s8 %v1297
        %v1299 = vlaneseq
        %v1300 = vshrl.u32 %v1299, 7
        %v1301 = vsub.s32 %v1298, %v1300
        %v1302 = vrot.slane %v1288, %v1301
        %v1303 = vcombine.low %v1280, %v1295
        %v1304 = vcombine.high %v1280, %v1295
        %v1306 = vunpack.c.l.s4 1934713408
        %v1307 = vunpack.c.0.s8 %v1306
        %v1308 = vlaneseq
        %v1309 = vshrl.u32 %v1308, 7
        %v1310 = vsub.s32 %v1307, %v1309
        %v1311 = vrot.slane %v1303, %v1310
        %v1313 = vunpack.c.l.s4 1934713408
        %v1314 = vunpack.c.0.s8 %v1313
        %v1315 = vlaneseq
        %v1316 = vshrl.u32 %v1315, 7
        %v1317 = vsub.s32 %v1314, %v1316
        %v1318 = vrot.slane %v1304, %v1317
        %v1319 = vcombine.low %v1287, %v1302
        %v1320 = vcombine.high %v1287, %v1302
        %v1322 = vunpack.c.l.s4 1934713408
        %v1323 = vunpack.c.0.s8 %v1322
        %v1324 = vlaneseq
        %v1325 = vshrl.u32 %v1324, 7
        %v1326 = vsub.s32 %v1323, %v1325
        %v1327 = vrot.slane %v1319, %v1326
        %v1329 = vunpack.c.l.s4 1934713408
        %v1330 = vunpack.c.0.s8 %v1329
        %v1331 = vlaneseq
        %v1332 = vshrl.u32 %v1331, 7
        %v1333 = vsub.s32 %v1330, %v1332
        %v1334 = vrot.slane %v1320, %v1333
        %v1335 = vcombine.high %v1311, 0.0
        %v1336 = vcombine.high %v1318, 0.0
        %v1337 = vcombine.high %v1327, 0.0
        %v1338 = vcombine.high %v1334, 0.0
        %v1339 = vcombine.low %v1311, %v1318
        %v1341 = vunpack.c.l.s4 1983009808
        %v1342 = vunpack.c.0.s8 %v1341
        %v1343 = vlaneseq
        %v1344 = vshrl.u32 %v1343, 7
        %v1345 = vsub.s32 %v1342, %v1344
        %v1346 = vrot.slane %v1339, %v1345
        %v1347 = vcombine.low %v1335, %v1336
        %v1349 = vunpack.c.l.s4 1983009808
        %v1350 = vunpack.c.0.s8 %v1349
        %v1351 = vlaneseq
        %v1352 = vshrl.u32 %v1351, 7
        %v1353 = vsub.s32 %v1350, %v1352
        %v1354 = vrot.slane %v1347, %v1353
        %v1355 = vcombine.low %v1327, %v1334
        %v1357 = vunpack.c.l.s4 1983009808
        %v1358 = vunpack.c.0.s8 %v1357
        %v1359 = vlaneseq
        %v1360 = vshrl.u32 %v1359, 7
        %v1361 = vsub.s32 %v1358, %v1360
        %v1362 = vrot.slane %v1355, %v1361
        %v1363 = vcombine.low %v1337, %v1338
        %v1365 = vunpack.c.l.s4 1983009808
        %v1366 = vunpack.c.0.s8 %v1365
        %v1367 = vlaneseq
        %v1368 = vshrl.u32 %v1367, 7
        %v1369 = vsub.s32 %v1366, %v1368
        %v1370 = vrot.slane %v1363, %v1369
        %v1371 = vcombine.low %v1346, %v1354
        %v1373 = vunpack.c.l.s4 1934713408
        %v1374 = vunpack.c.0.s8 %v1373
        %v1375 = vlaneseq
        %v1376 = vshrl.u32 %v1375, 7
        %v1377 = vsub.s32 %v1374, %v1376
        %v1378 = vrot.slane %v1371, %v1377
        %v1379 = vcombine.low %v1362, %v1370
        %v1381 = vunpack.c.l.s4 1934713408
        %v1382 = vunpack.c.0.s8 %v1381
        %v1383 = vlaneseq
        %v1384 = vshrl.u32 %v1383, 7
        %v1385 = vsub.s32 %v1382, %v1384
        %v1386 = vrot.slane %v1379, %v1385
        %v1387 = vcombine.low %v1378, %v1386
        %v1388 = vcombine.high %v1378, %v1386
        %1390 = vrot.lane.b32.xlu0 %v1388, 64
        %v1391 = vpop.permute.xlu0 %1390
        %v1393 = vsel %vm968, %v1387, %v1391
        %v1394 = vpack.c.bf16 %v1393, %v1393
        %v1395 = vld [vmem:[#allocation12] sm:$0xf]
        %v1396 = vld [vmem:[#allocation12 + $0x4] sm:$0xf]
        %v1397 = vld [vmem:[#allocation12 + $0x8] sm:$0xf]
        %v1398 = vld [vmem:[#allocation12 + $0xc] sm:$0xf]
        %v1399 = vld [vmem:[#allocation12 + $0x10] sm:$0xf]
        %v1400 = vld [vmem:[#allocation12 + $0x14] sm:$0xf]
        %v1401 = vld [vmem:[#allocation12 + $0x18] sm:$0xf]
        %v1402 = vld [vmem:[#allocation12 + $0x1c] sm:$0xf]
        %v1403 = vld [vmem:[#allocation12 + $0x20] sm:$0xf]
        %v1404 = vld [vmem:[#allocation12 + $0x24] sm:$0xf]
        %v1405 = vld [vmem:[#allocation12 + $0x28] sm:$0xf]
        %v1406 = vld [vmem:[#allocation12 + $0x2c] sm:$0xf]
        %v1407 = vld [vmem:[#allocation12 + $0x30] sm:$0xf]
        %v1408 = vld [vmem:[#allocation12 + $0x34] sm:$0xf]
        %v1409 = vld [vmem:[#allocation12 + $0x38] sm:$0xf]
        %v1410 = vld [vmem:[#allocation12 + $0x3c] sm:$0xf]
        %v1427 = vunpack.c.l.b16 %v1395
        %v1428 = vunpack.c.l.b16 %v1396
        %v1429 = vunpack.c.l.b16 %v1397
        %v1430 = vunpack.c.l.b16 %v1398
        %v1431 = vunpack.c.l.b16 %v1399
        %v1432 = vunpack.c.l.b16 %v1400
        %v1433 = vunpack.c.l.b16 %v1401
        %v1434 = vunpack.c.l.b16 %v1402
        %v1435 = vunpack.c.l.b16 %v1403
        %v1436 = vunpack.c.l.b16 %v1404
        %v1437 = vunpack.c.l.b16 %v1405
        %v1438 = vunpack.c.l.b16 %v1406
        %v1439 = vunpack.c.l.b16 %v1407
        %v1440 = vunpack.c.l.b16 %v1408
        %v1441 = vunpack.c.l.b16 %v1409
        %v1442 = vunpack.c.l.b16 %v1410
        %v1443 = vpack.c.b16 %v1428, %v1427
        %v1444 = vpack.c.b16 %v1430, %v1429
        %v1445 = vpack.c.b16 %v1432, %v1431
        %v1446 = vpack.c.b16 %v1434, %v1433
        %v1447 = vpack.c.b16 %v1436, %v1435
        %v1448 = vpack.c.b16 %v1438, %v1437
        %v1449 = vpack.c.b16 %v1440, %v1439
        %v1450 = vpack.c.b16 %v1442, %v1441
        %1459 = vmatprep.subr.bf16.mxu0 0
        %1460 = vmatpush1.bf16.msra.mxu0 %v1450
        %1461 = vmatprep.subr.bf16.mxu0 0
        %1462 = vmatpush1.bf16.msra.mxu0 %v1449
        %1463 = vmatprep.subr.bf16.mxu0 0
        %1464 = vmatpush1.bf16.msra.mxu0 %v1448
        %1465 = vmatprep.subr.bf16.mxu0 0
        %1466 = vmatpush1.bf16.msra.mxu0 %v1447
        %1467 = vmatprep.subr.bf16.mxu0 0
        %1468 = vmatpush1.bf16.msra.mxu0 %v1446
        %1469 = vmatprep.subr.bf16.mxu0 0
        %1470 = vmatpush1.bf16.msra.mxu0 %v1445
        %1471 = vmatprep.subr.bf16.mxu0 0
        %1472 = vmatpush1.bf16.msra.mxu0 %v1444
        %1473 = vmatprep.subr.bf16.mxu0 0
        %1474 = vmatpush1.bf16.msra.mxu0 %v1443
        %1475 = vmatprep.subr.bf16.mxu0 0
        %1476 = vmatpush2.bf16.msra.mxu0 0
        %1477 = vmatprep.subr.bf16.mxu0 0
        %1478 = vmatpush2.bf16.msra.mxu0 0
        %1479 = vmatprep.subr.bf16.mxu0 0
        %1480 = vmatpush2.bf16.msra.mxu0 0
        %1481 = vmatprep.subr.bf16.mxu0 0
        %1482 = vmatpush2.bf16.msra.mxu0 0
        %1483 = vmatprep.subr.bf16.mxu0 0
        %1484 = vmatpush2.bf16.msra.mxu0 0
        %1485 = vmatprep.subr.bf16.mxu0 0
        %1486 = vmatpush2.bf16.msra.mxu0 0
        %1487 = vmatprep.subr.bf16.mxu0 0
        %1488 = vmatpush2.bf16.msra.mxu0 0
        %1489 = vmatprep.subr.bf16.mxu0 0
        %1490 = vmatpush2.bf16.msra.mxu0 0
        %1491 = vmatprep.mubr.bf16.mxu0 0
        %1492 = vmatmul.mubr.bf16.gmra.mxu0 %v1394
        %v1493 = vpop.f32.mrf.mxu0
        %v1494 = vadd.f32 %v288, %v1493
        %v1495 = vpop.f32.mrf.mxu0
        %v1496 = vpop.f32.mrf.mxu0
        %v1497 = vpop.f32.mrf.mxu0
        %1498 = vdwg.mxu0
        %1499 = vadd.xlane.f32.xlu0 %v1494
        %v1500 = vpop.xlane.xlu0 %1499
        %v1501 = vmul.f32 %v1500, 0.03125
        %v1502 = vlaneseq
        %v1503 = vand.u32 %v1502, 127
        %vm1504 = vcmp.lt.s32.totalorder %v1503, 32
        %v1505 = vsub.f32 %v1494, %v1501
        %v1506 = vsel %vm1504, 1, 0
        %vm1507 = vcmp.eq.s32.totalorder %v1506, 1
        %v1508 = vsel %vm1507, %v1505, 0.0
        %v1509 = vmul.f32 %v1508, %v1508
        %1510 = vadd.xlane.f32.xlu0 %v1509
        %v1511 = vpop.xlane.xlu0 %1510
        %v1512 = vmul.f32 %v1511, 0.03125
        %v1513 = vadd.f32 %v1512, 1e-05
        %v1514 = vrsqrt.pop %v1513
        %v1515 = vmul.f32 %v1508, %v1514
        %v1516 = vld [vmem:[%s3] sm:$0x1]
        %v1518 = vlaneseq
        %v1519 = vshrl.u32 %v1518, 7
        %v1520 = vsub.s32 0, %v1519
        %v1521 = vrot.slane %v1516, %v1520
        %v1523 = vmul.f32 %v1515, %v1521
        %v1524 = vld [vmem:[%s4] sm:$0x1]
        %v1526 = vlaneseq
        %v1527 = vshrl.u32 %v1526, 7
        %v1528 = vsub.s32 0, %v1527
        %v1529 = vrot.slane %v1524, %v1528
        %v1531 = vadd.f32 %v1523, %v1529
        %1532 = vst [vmem:[%s285] sm:$0xff] %v1531
        %s1533 = sand.u32 %s157, 1
        %s1534 = scalar_lea.sflag [#allocation9], %s1533
        %s1535 = sand.u32 %s157, 1
        %s1536 = smul.addr %s1535, 8
        %s1537 = scalar_lea.vmem [#allocation13], %s1536
        // Predicated region
        $region60: #{tpu_custom_call.1} parent=39 // pred_check
          %p1538 = pneg %p167
        $region61: #{tpu_custom_call.1} parent=39 // pred_check_branch
          %1540 = sbr.rel (%p1538) target = $region63
        $region62: #{tpu_custom_call.1} parent=39 // pred_region
          %s1542 = ssub.s32 128, 128
          %1543 = vsyncadd %s1534, %s1542
          %s1544 = sadd.s32 %s28, %s27
          %s1545 = smul.addr %s1544, 128
          %s1546 = scalar_lea.hbm %s5, %s1545
          %s1548 = sshll.u32 %s1537, 4
          %s1549 = int_to_ptr.vmem [resolvable:$true] %s1548
          %1551 = dma.vmem_to_hbm [thread:$0]  %s1549, 128, %s1546, %s1534
        $region63: #{tpu_custom_call.1} parent=39 // pred_fallthru
          _
      $region40: #{tpu_custom_call.1} parent=5 // pred_fallthru
        _
      %p1552 = scmp.le.s32.totalorder 2, %s18
      // Predicated region
      $region64: #{tpu_custom_call.1} parent=5 // pred_check
        %p1553 = pneg %p1552
      $region65: #{tpu_custom_call.1} parent=5 // pred_check_branch
        %1555 = sbr.rel (%p1553) target = $region67
      $region66: #{tpu_custom_call.1} parent=5 // pred_region
        %s1556 = ssub.s32 %s18, 2
        // Predicated region
        $region68: #{tpu_custom_call.1} parent=66 // pred_check
          %p1557 = pneg %p173
        $region69: #{tpu_custom_call.1} parent=66 // pred_check_branch
          %1559 = sbr.rel (%p1557) target = $region71
        $region70: #{tpu_custom_call.1} parent=66 // pred_region
          %s1560 = sand.u32 %s158, 1
          %s1561 = scalar_lea.sflag [#allocation9], %s1560
          %s1562 = sand.u32 %s158, 1
          %s1563 = smul.addr %s1562, 8
          %s1564 = scalar_lea.vmem [#allocation13], %s1563
          %1565 = dma.done %s1561, 128
        $region71: #{tpu_custom_call.1} parent=66 // pred_fallthru
          _
      $region67: #{tpu_custom_call.1} parent=5 // pred_fallthru
        _
    $region6: #{tpu_custom_call.1} parent=1 // loop_footer
      %s22 = sadd.s32 1, %s18
    $region7: #{tpu_custom_call.1} parent=1 // loop_footer_branch
      %17 = sbr.rel target = $region3
    $region8: #{tpu_custom_call.1} parent=1 // loop_exit
      _
    %1566 = vsyncpa [#allocation8], 1
    %s1567 = scalar_lea.sflag [#allocation8], 1
    %1568 = vsyncpa %s1567, 1
    %1569 = vsyncpa [#allocation11], 1
    %1570 = vsyncpa [#allocation9], 1
    %s1571 = scalar_lea.sflag [#allocation9], 1
    %1572 = vsyncpa %s1571, 1

</llo_original>
